<compile_context>
chip_gen: v5e
topology: v5e:2x2
jax: 0.10.0
libtpu: 0.0.40
codegen_flags: <defaults>
</compile_context>

<pallas_src>
import jax
import jax.numpy as jnp
from jax.experimental import pallas as pl
from jax.experimental.pallas import tpu as pltpu

B = 2                # batch
S = 45               # seq len: conv (kh=3) -> 43 rows; MaxPool2d((43,1)) -> 1 row
H = 768              # RoBERTa hidden size
C_IN = 4             # last four hidden-state layers stacked as conv channels
C_OUT = 256          # conv out channels
KH = 3               # conv kernel height
T = S - KH + 1       # 43 conv output rows (module hard-codes MaxPool2d((43,1)))
N_LAYERS = 13        # RoBERTa-base emits 13 hidden states
L_OFF = N_LAYERS - C_IN   # 9 : first layer used by the head
assert T == 43, "RoBERTaClass_l4_cnn's MaxPool2d((43,1)) requires S == 45"


def _detect_n_split():
    """2 on v7x (two TensorCores per chip), 1 everywhere else."""
    try:
        kind = jax.devices()[0].device_kind.lower()
    except Exception:
        return 1
    return 2 if ("v7" in kind or "7x" in kind) else 1


N_SPLIT = _detect_n_split()           # C_OUT halves split across TCs on v7x
C_OUT_BLK = C_OUT // N_SPLIT          # 256 (v5e/v6e) or 128 (v7x)
APPLY_FINAL = (N_SPLIT == 1)          # sigmoid fused in-kernel when not split


def fused_head_kernel(x_ref, w_ref, cb_ref, lw_ref, lb_ref, o_ref, acc_ref):
    """One (split, channel) grid step of conv+ReLU+maxpool+linear(+sigmoid).

    x_ref : (1, B, S, H)            f32   hidden_states layer L_OFF+c
    w_ref : (1, H, KH*C_OUT_BLK)    bf16  folded conv weight, channel c / split s
    cb_ref: (1, C_OUT_BLK)          f32   conv bias slice for this split
    lw_ref: (1, C_OUT_BLK)          f32   linear weight slice for this split
    lb_ref: (1, 1)                  f32   linear bias
    o_ref : (1, B, 1)               f32   (partial) logits / sigmoid outputs
    acc_ref:(B, S, KH*C_OUT_BLK)    f32   per-kernel-row conv accumulator
    """
    c = pl.program_id(1)
    cb = C_OUT_BLK

    @pl.when(c == 0)
    def _init():
        acc_ref[...] = jnp.zeros_like(acc_ref)

    # Per-channel contraction: cast activations to bf16 in-kernel (no XLA prep)
    # and run one MXU dot per batch against the folded (H, KH*C_OUT_BLK) slab.
    xb = x_ref[0].astype(jnp.bfloat16)            # (B, S, H) bf16
    w = w_ref[0]                                  # (H, KH*C_OUT_BLK) bf16
    for b in range(B):                            # B tiny & static -> unrolled
        acc_ref[b, :, :] += jnp.dot(xb[b], w, preferred_element_type=jnp.float32)

    @pl.when(c == C_IN - 1)
    def _finalize():
        bias = cb_ref[...]                        # (1, cb)
        lw = lw_ref[...]                          # (1, cb)
        logit_rows = []
        for b in range(B):
            zb = acc_ref[b]                       # (S, KH*cb) f32
            # Kernel-row shift applied to small f32 outputs: lane-aligned
            # column slices, row offsets 1/2 (tiny, runs once per grid pass).
            conv = (zb[0:T, 0:cb]
                    + zb[1:1 + T, cb:2 * cb]
                    + zb[2:2 + T, 2 * cb:3 * cb]) + bias          # (43, cb)
            # relu(maxpool(x)) == maxpool(relu(x)) since ReLU is monotone.
            pooled = jnp.maximum(jnp.max(conv, axis=0, keepdims=True), 0.0)
            logit_rows.append(jnp.sum(pooled * lw, axis=-1, keepdims=True))
        logits = jnp.concatenate(logit_rows, axis=0)              # (B, 1)
        if APPLY_FINAL:                                           # static branch
            logits = jax.nn.sigmoid(logits + lb_ref[...])
        o_ref[0] = logits                          # single (B,1) store


def roberta_l4_cnn_head(hidden_states, conv_w_fold, conv_b2d, lin_w2d, lin_b2d):
    """hidden_states: (13, B, S, H) f32 layer-major stack from the backbone."""
    kcb = KH * C_OUT_BLK

    partial = pl.pallas_call(
        fused_head_kernel,
        out_shape=jax.ShapeDtypeStruct((N_SPLIT, B, 1), jnp.float32),
        grid_spec=pltpu.PrefetchScalarGridSpec(
            num_scalar_prefetch=0,
            grid=(N_SPLIT, C_IN),        # (C_OUT halves, conv channels)
            in_specs=[
                # Only layers 9..12 of the 13-layer stack are ever DMA'd.
                pl.BlockSpec((1, B, S, H), lambda s, c: (L_OFF + c, 0, 0, 0)),
                pl.BlockSpec((1, H, kcb), lambda s, c: (c, 0, s)),
                pl.BlockSpec((1, C_OUT_BLK), lambda s, c: (0, s)),
                pl.BlockSpec((1, C_OUT_BLK), lambda s, c: (0, s)),
                pl.BlockSpec((1, 1), lambda s, c: (0, 0)),
            ],
            out_specs=pl.BlockSpec((1, B, 1), lambda s, c: (s, 0, 0)),
            scratch_shapes=[pltpu.VMEM((B, S, kcb), jnp.float32)],
        ),
        compiler_params=pltpu.CompilerParams(
            dimension_semantics=("parallel", "arbitrary"),
        ),
        cost_estimate=pl.CostEstimate(
            flops=2 * B * S * H * C_IN * KH * C_OUT,
            transcendentals=2 * B,
            bytes_accessed=(C_IN * B * S * H * 4        # f32 activations
                            + C_IN * H * KH * C_OUT * 2  # bf16 conv weight
                            + 2 * C_OUT * 4 + 4          # bias / linear
                            + N_SPLIT * B * 4),          # output
        ),
    )(hidden_states, conv_w_fold, conv_b2d, lin_w2d, lin_b2d)

    if APPLY_FINAL:
        return partial[0]                                         # (B, 1)
    # v7x two-TC path: combine the per-half partial logits (8 bytes of work).
    return jax.nn.sigmoid(jnp.sum(partial, axis=0) + lin_b2d)     # (B, 1)


def forward(ids, mask, token_type_ids, params):
    # TODO(synk): RoBERTa backbone (self.l1) not implemented; hidden states are
    # synthesized deterministically in make_params.  Dropout(0.3) = identity.
    del ids, mask, token_type_ids
    return roberta_l4_cnn_head(params["hidden_states"], params["conv_w"],
                               params["conv_b"], params["lin_w"], params["lin_b"])


def reference_forward(hs_last4, conv_w_pt, conv_b_vec, lin_w_pt, lin_b_vec):
    """Pure-JAX f32 reference of the PyTorch forward (conv in NCHW semantics)."""
    x = jnp.transpose(hs_last4, (1, 0, 2, 3))                       # (B, C_IN, S, H)
    windows = jnp.stack([x[:, :, t:t + KH, :] for t in range(T)], axis=2)  # (B,C,T,KH,H)
    conv = jnp.einsum("bctkh,ockh->bot", windows, conv_w_pt)        # (B, C_OUT, T)
    conv = jnp.maximum(conv + conv_b_vec[None, :, None], 0.0)       # bias + ReLU
    pooled = jnp.max(conv, axis=2)                                  # MaxPool2d((43,1))
    logits = pooled @ lin_w_pt.T + lin_b_vec                        # (B, 1)
    return jax.nn.sigmoid(logits)


def make_params(key):
    k_hs, k_w, k_b, k_wl, k_bl = jax.random.split(key, 5)

    hidden_states = jax.random.normal(k_hs, (N_LAYERS, B, S, H), jnp.float32) * 0.1

    fan_in = C_IN * KH * H
    bound = 1.0 / (fan_in ** 0.5)
    # PyTorch Conv2d weight layout (C_OUT, C_IN, KH, KW=H)
    conv_w_pt = jax.random.uniform(k_w, (C_OUT, C_IN, KH, H), jnp.float32, -bound, bound)
    conv_b = jax.random.uniform(k_b, (C_OUT,), jnp.float32, -bound, bound)

    lbound = 1.0 / (C_OUT ** 0.5)
    lin_w_pt = jax.random.uniform(k_wl, (1, C_OUT), jnp.float32, -lbound, lbound)
    lin_b = jax.random.uniform(k_bl, (1,), jnp.float32, -lbound, lbound)

    # Fold conv weight to one contiguous slab per (channel, split):
    # w_fold[c, h, s*KH*CB + kh*CB + j] = conv_w_pt[s*CB + j, c, kh, h]
    w = conv_w_pt.reshape(N_SPLIT, C_OUT_BLK, C_IN, KH, H)
    w = jnp.transpose(w, (2, 4, 0, 3, 1))                 # (C_IN, H, N_SPLIT, KH, CB)
    conv_w_fold = w.reshape(C_IN, H, N_SPLIT * KH * C_OUT_BLK).astype(jnp.bfloat16)

    return {
        "hidden_states": hidden_states,       # (13, B, S, H) f32, kernel reads 9..12
        "conv_w": conv_w_fold,                # (C_IN, 768, 768) bf16 folded slab
        "conv_b": conv_b.reshape(1, C_OUT),   # (1, 256) f32
        "lin_w": lin_w_pt,                    # (1, 256) f32 lane-dense row layout
        "lin_b": lin_b.reshape(1, 1),         # (1, 1) f32
        # f32 PyTorch-layout copies kept only for the reference checks:
        "conv_w_pt": conv_w_pt,
        "conv_b_vec": conv_b,
        "lin_w_pt": lin_w_pt,
        "lin_b_vec": lin_b,
    }


if __name__ == "__main__":
    key = jax.random.PRNGKey(0)
    params = make_params(key)

    # Example inputs matching the module signature (consumed only by the
    # unimplemented backbone).
    k_ids = jax.random.PRNGKey(1)
    ids = jax.random.randint(k_ids, (B, S), 0, 50265, dtype=jnp.int32)
    mask = jnp.ones((B, S), dtype=jnp.int32)
    token_type_ids = jnp.zeros((B, S), dtype=jnp.int32)

    out = forward(ids, mask, token_type_ids, params)
    jax.block_until_ready(out)
    assert out.shape == (B, 1)

    hs_last4 = params["hidden_states"][L_OFF:L_OFF + C_IN]

    # Primary check: reference with the same bf16 operand rounding as the kernel
    # (accumulation is f32 in both paths) -> tight tolerance.
    hs_last4_r = hs_last4.astype(jnp.bfloat16).astype(jnp.float32)
    conv_w_r = params["conv_w_pt"].astype(jnp.bfloat16).astype(jnp.float32)
    ref_bf16 = reference_forward(hs_last4_r, conv_w_r, params["conv_b_vec"],
                                 params["lin_w_pt"], params["lin_b_vec"])
    assert jnp.allclose(out, ref_bf16, atol=5e-3), (out, ref_bf16)

    # Secondary check: unrounded f32 reference with a loose tolerance, so bf16
    # operand rounding can't hide a real bug (per review's correctness note).
    ref_f32 = reference_forward(hs_last4, params["conv_w_pt"], params["conv_b_vec"],
                                params["lin_w_pt"], params["lin_b_vec"])
    assert jnp.allclose(out, ref_f32, atol=5e-2), (out, ref_f32)

    print("KERNEL_OK")
</pallas_src>

<mosaic_0001>
module attributes {stable_mosaic.version = 11 : i64} {
  func.func @fused_head_kernel(%arg0: i32, %arg1: i32, %arg2: memref<1x2x45x768xf32, #tpu.memory_space<vmem>>, %arg3: memref<1x768x768xbf16, #tpu.memory_space<vmem>>, %arg4: memref<1x256xf32, #tpu.memory_space<vmem>>, %arg5: memref<1x256xf32, #tpu.memory_space<vmem>>, %arg6: memref<1x1xf32, #tpu.memory_space<vmem>>, %arg7: memref<1x2x1xf32, #tpu.memory_space<vmem>>, %arg8: memref<2x45x768xf32, #tpu.memory_space<vmem>>) attributes {dimension_semantics = [#tpu.dimension_semantics<parallel>, #tpu.dimension_semantics<arbitrary>], iteration_bounds = array<i64: 1, 4>, scalar_prefetch = 0 : i64, scratch_operands = 1 : i64, tpu.core_type = #tpu.core_type<tc>, window_params = [{transform_indices = @transform_0, window_bounds = array<i64: 1, 2, 45, 768>}, {transform_indices = @transform_1, window_bounds = array<i64: 1, 768, 768>}, {transform_indices = @transform_2, window_bounds = array<i64: 1, 256>}, {transform_indices = @transform_3, window_bounds = array<i64: 1, 256>}, {pipeline_mode = #tpu.pipeline_mode<synchronous>, transform_indices = @transform_4, window_bounds = array<i64: 1, 1>}, {transform_indices = @transform_5, window_bounds = array<i64: 1, 2, 1>}]} {
    %c0_i32 = arith.constant 0 : i32
    %0 = arith.cmpi eq, %arg1, %c0_i32 : i32
    %1 = arith.extui %0 : i1 to i32
    %c0_i32_0 = arith.constant 0 : i32
    %2 = arith.cmpi ne, %1, %c0_i32_0 : i32
    scf.if %2 {
      %cst_20 = arith.constant 0.000000e+00 : f32
      %29 = vector.broadcast %cst_20 : f32 to vector<2x45x768xf32>
      %c0_21 = arith.constant 0 : index
      %c0_22 = arith.constant 0 : index
      %c0_23 = arith.constant 0 : index
      %30 = vector.load %arg8[%c0_21, %c0_22, %c0_23] : memref<2x45x768xf32, #tpu.memory_space<vmem>>, vector<2x45x768xf32>
      tpu.vector_store %arg8[%c0_21, %c0_22, %c0_23], %29 {strides = array<i32>} : memref<2x45x768xf32, #tpu.memory_space<vmem>>, vector<2x45x768xf32>,
    } else {
    }
    %c0 = arith.constant 0 : index
    %c0_1 = arith.constant 0 : index
    %c0_2 = arith.constant 0 : index
    %c0_3 = arith.constant 0 : index
    %3 = vector.load %arg2[%c0, %c0_1, %c0_2, %c0_3] : memref<1x2x45x768xf32, #tpu.memory_space<vmem>>, vector<1x2x45x768xf32>
    %4 = vector.shape_cast %3 : vector<1x2x45x768xf32> to vector<2x45x768xf32>
    %5 = arith.truncf %4 : vector<2x45x768xf32> to vector<2x45x768xbf16>
    %c0_4 = arith.constant 0 : index
    %c0_5 = arith.constant 0 : index
    %c0_6 = arith.constant 0 : index
    %6 = vector.load %arg3[%c0_4, %c0_5, %c0_6] : memref<1x768x768xbf16, #tpu.memory_space<vmem>>, vector<1x768x768xbf16>
    %7 = vector.shape_cast %6 : vector<1x768x768xbf16> to vector<768x768xbf16>
    %c0_7 = arith.constant 0 : index
    %c0_8 = arith.constant 0 : index
    %c0_9 = arith.constant 0 : index
    %8 = vector.load %arg8[%c0_7, %c0_8, %c0_9] : memref<2x45x768xf32, #tpu.memory_space<vmem>>, vector<1x45x768xf32>
    %9 = vector.shape_cast %8 : vector<1x45x768xf32> to vector<45x768xf32>
    %10 = vector.extract_strided_slice %5 {offsets = [0, 0, 0], sizes = [1, 45, 768], strides = [1, 1, 1]} : vector<2x45x768xbf16> to vector<1x45x768xbf16>
    %11 = vector.shape_cast %10 : vector<1x45x768xbf16> to vector<45x768xbf16>
    %cst = arith.constant dense<0.000000e+00> : vector<45x768xf32>
    %12 = tpu.matmul %11, %7, %cst {dimension_numbers = #tpu.dot_dimension_numbers<[1], [0], [0], [1], [0, 0, 1, 1], [], []>} : vector<45x768xbf16>, vector<768x768xbf16>, vector<45x768xf32> -> vector<45x768xf32>
    %13 = arith.addf %9, %12 : vector<45x768xf32>
    %c0_10 = arith.constant 0 : index
    %c0_11 = arith.constant 0 : index
    %c0_12 = arith.constant 0 : index
    %14 = vector.load %arg8[%c0_10, %c0_11, %c0_12] : memref<2x45x768xf32, #tpu.memory_space<vmem>>, vector<1x45x768xf32>
    %15 = vector.shape_cast %14 : vector<1x45x768xf32> to vector<45x768xf32>
    %16 = vector.shape_cast %13 : vector<45x768xf32> to vector<1x45x768xf32>
    tpu.vector_store %arg8[%c0_10, %c0_11, %c0_12], %16 {strides = array<i32>} : memref<2x45x768xf32, #tpu.memory_space<vmem>>, vector<1x45x768xf32>,
    %c1 = arith.constant 1 : index
    %c0_13 = arith.constant 0 : index
    %c0_14 = arith.constant 0 : index
    %17 = vector.load %arg8[%c1, %c0_13, %c0_14] : memref<2x45x768xf32, #tpu.memory_space<vmem>>, vector<1x45x768xf32>
    %18 = vector.shape_cast %17 : vector<1x45x768xf32> to vector<45x768xf32>
    %19 = vector.extract_strided_slice %5 {offsets = [1, 0, 0], sizes = [1, 45, 768], strides = [1, 1, 1]} : vector<2x45x768xbf16> to vector<1x45x768xbf16>
    %20 = vector.shape_cast %19 : vector<1x45x768xbf16> to vector<45x768xbf16>
    %cst_15 = arith.constant dense<0.000000e+00> : vector<45x768xf32>
    %21 = tpu.matmul %20, %7, %cst_15 {dimension_numbers = #tpu.dot_dimension_numbers<[1], [0], [0], [1], [0, 0, 1, 1], [], []>} : vector<45x768xbf16>, vector<768x768xbf16>, vector<45x768xf32> -> vector<45x768xf32>
    %22 = arith.addf %18, %21 : vector<45x768xf32>
    %c1_16 = arith.constant 1 : index
    %c0_17 = arith.constant 0 : index
    %c0_18 = arith.constant 0 : index
    %23 = vector.load %arg8[%c1_16, %c0_17, %c0_18] : memref<2x45x768xf32, #tpu.memory_space<vmem>>, vector<1x45x768xf32>
    %24 = vector.shape_cast %23 : vector<1x45x768xf32> to vector<45x768xf32>
    %25 = vector.shape_cast %22 : vector<45x768xf32> to vector<1x45x768xf32>
    tpu.vector_store %arg8[%c1_16, %c0_17, %c0_18], %25 {strides = array<i32>} : memref<2x45x768xf32, #tpu.memory_space<vmem>>, vector<1x45x768xf32>,
    %c3_i32 = arith.constant 3 : i32
    %26 = arith.cmpi eq, %arg1, %c3_i32 : i32
    %27 = arith.extui %26 : i1 to i32
    %c0_i32_19 = arith.constant 0 : i32
    %28 = arith.cmpi ne, %27, %c0_i32_19 : i32
    scf.if %28 {
      %c0_20 = arith.constant 0 : index
      %c0_21 = arith.constant 0 : index
      %29 = vector.load %arg4[%c0_20, %c0_21] : memref<1x256xf32, #tpu.memory_space<vmem>>, vector<1x256xf32>
      %c0_22 = arith.constant 0 : index
      %c0_23 = arith.constant 0 : index
      %30 = vector.load %arg5[%c0_22, %c0_23] : memref<1x256xf32, #tpu.memory_space<vmem>>, vector<1x256xf32>
      %c0_24 = arith.constant 0 : index
      %c0_25 = arith.constant 0 : index
      %c0_26 = arith.constant 0 : index
      %31 = vector.load %arg8[%c0_24, %c0_25, %c0_26] : memref<2x45x768xf32, #tpu.memory_space<vmem>>, vector<1x45x768xf32>
      %32 = vector.shape_cast %31 : vector<1x45x768xf32> to vector<45x768xf32>
      %33 = vector.extract_strided_slice %32 {offsets = [0, 0], sizes = [43, 256], strides = [1, 1]} : vector<45x768xf32> to vector<43x256xf32>
      %34 = vector.extract_strided_slice %32 {offsets = [1, 256], sizes = [43, 256], strides = [1, 1]} : vector<45x768xf32> to vector<43x256xf32>
      %35 = arith.addf %33, %34 : vector<43x256xf32>
      %36 = vector.extract_strided_slice %32 {offsets = [2, 512], sizes = [43, 256], strides = [1, 1]} : vector<45x768xf32> to vector<43x256xf32>
      %37 = arith.addf %35, %36 : vector<43x256xf32>
      %38 = vector.broadcast %29 : vector<1x256xf32> to vector<43x256xf32>
      %39 = arith.addf %37, %38 : vector<43x256xf32>
      %cst_27 = arith.constant dense<0xFF800000> : vector<256xf32>
      %40 = vector.multi_reduction <maximumf>, %39, %cst_27 [0] : vector<43x256xf32> to vector<256xf32>
      %41 = vector.shape_cast %40 : vector<256xf32> to vector<1x256xf32>
      %cst_28 = arith.constant 0.000000e+00 : f32
      %42 = vector.broadcast %cst_28 : f32 to vector<1x256xf32>
      %43 = arith.maximumf %41, %42 : vector<1x256xf32>
      %44 = arith.mulf %43, %30 : vector<1x256xf32>
      %cst_29 = arith.constant dense<0.000000e+00> : vector<1xf32>
      %45 = vector.multi_reduction <add>, %44, %cst_29 [1] : vector<1x256xf32> to vector<1xf32>
      %46 = vector.shape_cast %45 : vector<1xf32> to vector<1x1xf32>
      %c1_30 = arith.constant 1 : index
      %c0_31 = arith.constant 0 : index
      %c0_32 = arith.constant 0 : index
      %47 = vector.load %arg8[%c1_30, %c0_31, %c0_32] : memref<2x45x768xf32, #tpu.memory_space<vmem>>, vector<1x45x768xf32>
      %48 = vector.shape_cast %47 : vector<1x45x768xf32> to vector<45x768xf32>
      %49 = vector.extract_strided_slice %48 {offsets = [0, 0], sizes = [43, 256], strides = [1, 1]} : vector<45x768xf32> to vector<43x256xf32>
      %50 = vector.extract_strided_slice %48 {offsets = [1, 256], sizes = [43, 256], strides = [1, 1]} : vector<45x768xf32> to vector<43x256xf32>
      %51 = arith.addf %49, %50 : vector<43x256xf32>
      %52 = vector.extract_strided_slice %48 {offsets = [2, 512], sizes = [43, 256], strides = [1, 1]} : vector<45x768xf32> to vector<43x256xf32>
      %53 = arith.addf %51, %52 : vector<43x256xf32>
      %54 = vector.broadcast %29 : vector<1x256xf32> to vector<43x256xf32>
      %55 = arith.addf %53, %54 : vector<43x256xf32>
      %cst_33 = arith.constant dense<0xFF800000> : vector<256xf32>
      %56 = vector.multi_reduction <maximumf>, %55, %cst_33 [0] : vector<43x256xf32> to vector<256xf32>
      %57 = vector.shape_cast %56 : vector<256xf32> to vector<1x256xf32>
      %cst_34 = arith.constant 0.000000e+00 : f32
      %58 = vector.broadcast %cst_34 : f32 to vector<1x256xf32>
      %59 = arith.maximumf %57, %58 : vector<1x256xf32>
      %60 = arith.mulf %59, %30 : vector<1x256xf32>
      %cst_35 = arith.constant dense<0.000000e+00> : vector<1xf32>
      %61 = vector.multi_reduction <add>, %60, %cst_35 [1] : vector<1x256xf32> to vector<1xf32>
      %62 = vector.shape_cast %61 : vector<1xf32> to vector<1x1xf32>
      %63 = tpu.concatenate %46, %62 in 0 : vector<1x1xf32>, vector<1x1xf32> -> vector<2x1xf32>
      %c0_36 = arith.constant 0 : index
      %c0_37 = arith.constant 0 : index
      %64 = vector.load %arg6[%c0_36, %c0_37] : memref<1x1xf32, #tpu.memory_space<vmem>>, vector<1x1xf32>
      %65 = vector.broadcast %64 : vector<1x1xf32> to vector<2x1xf32>
      %66 = arith.addf %63, %65 : vector<2x1xf32>
      %67 = arith.negf %66 : vector<2x1xf32>
      %68 = math.exp %67 : vector<2x1xf32>
      %cst_38 = arith.constant 1.000000e+00 : f32
      %69 = vector.broadcast %cst_38 : f32 to vector<2x1xf32>
      %70 = arith.addf %69, %68 : vector<2x1xf32>
      %71 = arith.divf %69, %70 : vector<2x1xf32>
      %c0_39 = arith.constant 0 : index
      %c0_40 = arith.constant 0 : index
      %c0_41 = arith.constant 0 : index
      %72 = vector.load %arg7[%c0_39, %c0_40, %c0_41] : memref<1x2x1xf32, #tpu.memory_space<vmem>>, vector<1x2x1xf32>
      %73 = vector.shape_cast %72 : vector<1x2x1xf32> to vector<2x1xf32>
      %74 = vector.shape_cast %71 : vector<2x1xf32> to vector<1x2x1xf32>
      tpu.vector_store %arg7[%c0_39, %c0_40, %c0_41], %74 {strides = array<i32>} : memref<1x2x1xf32, #tpu.memory_space<vmem>>, vector<1x2x1xf32>,
    } else {
    }
    return
  }
  func.func @transform_0(%arg0: i32, %arg1: i32) -> (i32, i32, i32, i32) {
    %c9_i32 = arith.constant 9 : i32
    %0 = arith.addi %c9_i32, %arg1 : i32
    %c0_i32 = arith.constant 0 : i32
    %c0_i32_0 = arith.constant 0 : i32
    %c0_i32_1 = arith.constant 0 : i32
    %c0_i32_2 = arith.constant 0 : i32
    return %0, %c0_i32, %c0_i32_0, %c0_i32_1 : i32, i32, i32, i32
  }
  func.func @transform_1(%arg0: i32, %arg1: i32) -> (i32, i32, i32) {
    %c0_i32 = arith.constant 0 : i32
    %c0_i32_0 = arith.constant 0 : i32
    return %arg1, %c0_i32, %arg0 : i32, i32, i32
  }
  func.func @transform_2(%arg0: i32, %arg1: i32) -> (i32, i32) {
    %c0_i32 = arith.constant 0 : i32
    %c0_i32_0 = arith.constant 0 : i32
    return %c0_i32, %arg0 : i32, i32
  }
  func.func @transform_3(%arg0: i32, %arg1: i32) -> (i32, i32) {
    %c0_i32 = arith.constant 0 : i32
    %c0_i32_0 = arith.constant 0 : i32
    return %c0_i32, %arg0 : i32, i32
  }
  func.func @transform_4(%arg0: i32, %arg1: i32) -> (i32, i32) {
    %c0_i32 = arith.constant 0 : i32
    %c0_i32_0 = arith.constant 0 : i32
    %c0_i32_1 = arith.constant 0 : i32
    return %c0_i32, %c0_i32_0 : i32, i32
  }
  func.func @transform_5(%arg0: i32, %arg1: i32) -> (i32, i32, i32) {
    %c0_i32 = arith.constant 0 : i32
    %c0_i32_0 = arith.constant 0 : i32
    %c0_i32_1 = arith.constant 0 : i32
    return %arg0, %c0_i32, %c0_i32_0 : i32, i32, i32
  }
}

</mosaic_0001>

<llo_original>
// kernel: tpu_custom_call.1
$region0: #{tpu_custom_call.1}
  #allocation0 [shape = 'u32[]', space=smem, size = 0x4, offset = 0x4, fixed_abs, tag = 'smem constant byte address 0x4 - core index']
  #allocation1 [shape = 'u32[72,128]{1,0:T(1,128)}', space=vmem, size = 0x9000, scoped, tag = 'internal scratch']
  #allocation2 [shape = 'f32[2,45,768]{2,1,0:T(8,128)}', space=vmem, size = 0x48000, scoped, tag = 'scratch operand']
  #allocation3 [shape = 'f32[1,1]{1,0:T(1,128)S(1)}', space=vmem, size = 0x200, scoped, tag = 'scoped memory for tpu_custom_call.1']
  %s0 = inlined_call_operand.vmem [shape: f32[13,2,45,768], index: 0, kind: input, shape index: {}]
  %s1 = inlined_call_operand.vmem [shape: bf16[4,768,768], index: 1, kind: input, shape index: {}]
  %s2 = inlined_call_operand.vmem [shape: f32[1,256], index: 2, kind: input, shape index: {}]
  %s3 = inlined_call_operand.vmem [shape: f32[1,256], index: 3, kind: input, shape index: {}]
  %s4 = inlined_call_operand.<no memory space> [shape: f32[1,1], index: 4, kind: input, shape index: {}]
  %s5 = inlined_call_operand.vmem [shape: f32[1,2,1], index: 5, kind: output, shape index: {}]
  %s6 = sld [smem:[#allocation0]]
  $region61: #{tpu_custom_call.1} parent=0
    _
  %s8 = ssub.s32 1, %s6
  %s9 = scalar_select 0, %s8, %s6
  %v10 = vstv %s4
  %11 = vst [vmem:[#allocation3] sm:$0x1] %v10
  loop: start=0, step=1, limit=6
  $region2: #{tpu_custom_call.1} parent=0 // loop_pre_header
    _
  $region3: #{tpu_custom_call.1} parent=0 // loop_header
    %s13 = sphi 0, %s17
    %p14 = scmp.ge.s32.totalorder %s13, 6
    %s20 = sphi 0, %s32
    %s21 = sphi 0, %s28
    %s22 = sphi 0, %s20
    %s23 = sphi 0, %s21
    %s24 = sphi 0, %s22
    %s25 = sphi 0, %s23
    %s37 = sphi 0, %s39
    %s40 = sphi 0, %s37
    %s41 = sphi 0, %s40
    %s57 = sphi 0, %s41
    %s65 = sphi 0, %s67
    %s68 = sphi 0, %s65
    %s69 = sphi 0, %s68
    %s85 = sphi 0, %s69
    %s91 = sphi 0, %s93
    %s94 = sphi 0, %s91
    %s95 = sphi 0, %s94
    %s111 = sphi 0, %s95
    %s117 = sphi 0, %s119
    %s120 = sphi 0, %s117
    %s121 = sphi 0, %s120
    %s137 = sphi 0, %s121
    %s141 = sphi 0, %s141
    %s143 = sphi 0, %s141
    %s144 = sphi 0, %s143
    %s158 = sphi 0, %s144
    %s164 = sphi 0, %s166
    %s167 = sphi 0, %s164
    %s168 = sphi 0, %s167
    %s184 = sphi 0, %s168
  $region4: #{tpu_custom_call.1} parent=0 // loop_header_branch
    %16 = sbr.rel (%p14) target = $region8
  $region5: #{tpu_custom_call.1} parent=0 // loop_body
    %s18 = ssub.s32 %s13, 1
    %s19 = ssub.s32 %s13, 2
    %s26 = sadd.s32 1, %s21
    %p27 = scmp.ge.s32.totalorder %s26, 4
    %s28 = scalar_select %p27, 0, %s26
    %s29 = sadd.s32 1, %s20
    %s30 = scalar_select %p27, %s29, %s20
    %p31 = scmp.ge.s32.totalorder %s30, 1
    %s32 = scalar_select %p31, 0, %s30
    %s33 = sadd.s32 %s21, 9
    %s34 = sadd.s32 %s28, 9
    %s35 = ssub.s32 %s33, %s34
    %p36 = scmp.eq.s32.totalorder %s35, 0
    %s38 = sadd.s32 %s37, 1
    %s39 = scalar_select %p36, %s37, %s38
    %p42 = pneg %p36
    %p43 = scmp.eq.s32.totalorder %s13, 3
    %p44 = por %p42, %p43
    %p45 = scmp.ne.s32.totalorder %s37, %s40
    %p46 = scmp.eq.s32.totalorder %s13, 0
    %p47 = por %p45, %p46
    %p48 = scmp.ne.s32.totalorder %s37, %s40
    %p49 = scmp.eq.s32.totalorder %s18, 3
    %p50 = por %p48, %p49
    %p51 = scmp.ne.s32.totalorder %s40, %s41
    %p52 = scmp.eq.s32.totalorder %s18, 0
    %p53 = por %p51, %p52
    %p54 = scmp.ne.s32.totalorder %s40, %s41
    %p55 = scmp.eq.s32.totalorder %s19, 3
    %p56 = por %p54, %p55
    %p58 = scmp.ne.s32.totalorder %s41, %s57
    %p59 = scmp.eq.s32.totalorder %s19, 0
    %p60 = por %p58, %p59
    %s61 = ssub.s32 %s21, %s28
    %s62 = ssub.s32 %s20, %s32
    %s63 = sor.u32 %s61, %s62
    %p64 = scmp.eq.s32.totalorder %s63, 0
    %s66 = sadd.s32 %s65, 1
    %s67 = scalar_select %p64, %s65, %s66
    %p70 = pneg %p64
    %p71 = scmp.eq.s32.totalorder %s13, 3
    %p72 = por %p70, %p71
    %p73 = scmp.ne.s32.totalorder %s65, %s68
    %p74 = scmp.eq.s32.totalorder %s13, 0
    %p75 = por %p73, %p74
    %p76 = scmp.ne.s32.totalorder %s65, %s68
    %p77 = scmp.eq.s32.totalorder %s18, 3
    %p78 = por %p76, %p77
    %p79 = scmp.ne.s32.totalorder %s68, %s69
    %p80 = scmp.eq.s32.totalorder %s18, 0
    %p81 = por %p79, %p80
    %p82 = scmp.ne.s32.totalorder %s68, %s69
    %p83 = scmp.eq.s32.totalorder %s19, 3
    %p84 = por %p82, %p83
    %p86 = scmp.ne.s32.totalorder %s69, %s85
    %p87 = scmp.eq.s32.totalorder %s19, 0
    %p88 = por %p86, %p87
    %s89 = ssub.s32 %s20, %s32
    %p90 = scmp.eq.s32.totalorder %s89, 0
    %s92 = sadd.s32 %s91, 1
    %s93 = scalar_select %p90, %s91, %s92
    %p96 = pneg %p90
    %p97 = scmp.eq.s32.totalorder %s13, 3
    %p98 = por %p96, %p97
    %p99 = scmp.ne.s32.totalorder %s91, %s94
    %p100 = scmp.eq.s32.totalorder %s13, 0
    %p101 = por %p99, %p100
    %p102 = scmp.ne.s32.totalorder %s91, %s94
    %p103 = scmp.eq.s32.totalorder %s18, 3
    %p104 = por %p102, %p103
    %p105 = scmp.ne.s32.totalorder %s94, %s95
    %p106 = scmp.eq.s32.totalorder %s18, 0
    %p107 = por %p105, %p106
    %p108 = scmp.ne.s32.totalorder %s94, %s95
    %p109 = scmp.eq.s32.totalorder %s19, 3
    %p110 = por %p108, %p109
    %p112 = scmp.ne.s32.totalorder %s95, %s111
    %p113 = scmp.eq.s32.totalorder %s19, 0
    %p114 = por %p112, %p113
    %s115 = ssub.s32 %s20, %s32
    %p116 = scmp.eq.s32.totalorder %s115, 0
    %s118 = sadd.s32 %s117, 1
    %s119 = scalar_select %p116, %s117, %s118
    %p122 = pneg %p116
    %p123 = scmp.eq.s32.totalorder %s13, 3
    %p124 = por %p122, %p123
    %p125 = scmp.ne.s32.totalorder %s117, %s120
    %p126 = scmp.eq.s32.totalorder %s13, 0
    %p127 = por %p125, %p126
    %p128 = scmp.ne.s32.totalorder %s117, %s120
    %p129 = scmp.eq.s32.totalorder %s18, 3
    %p130 = por %p128, %p129
    %p131 = scmp.ne.s32.totalorder %s120, %s121
    %p132 = scmp.eq.s32.totalorder %s18, 0
    %p133 = por %p131, %p132
    %p134 = scmp.ne.s32.totalorder %s120, %s121
    %p135 = scmp.eq.s32.totalorder %s19, 3
    %p136 = por %p134, %p135
    %p138 = scmp.ne.s32.totalorder %s121, %s137
    %p139 = scmp.eq.s32.totalorder %s19, 0
    %p140 = por %p138, %p139
    %s142 = sadd.s32 %s141, 1
    %p145 = scmp.eq.s32.totalorder %s13, 3
    %p146 = scmp.ne.s32.totalorder %s141, %s143
    %p147 = scmp.eq.s32.totalorder %s13, 0
    %p148 = por %p146, %p147
    %p149 = scmp.ne.s32.totalorder %s141, %s143
    %p150 = scmp.eq.s32.totalorder %s18, 3
    %p151 = por %p149, %p150
    %p152 = scmp.ne.s32.totalorder %s143, %s144
    %p153 = scmp.eq.s32.totalorder %s18, 0
    %p154 = por %p152, %p153
    %p155 = scmp.ne.s32.totalorder %s143, %s144
    %p156 = scmp.eq.s32.totalorder %s19, 3
    %p157 = por %p155, %p156
    %p159 = scmp.ne.s32.totalorder %s144, %s158
    %p160 = scmp.eq.s32.totalorder %s19, 0
    %p161 = por %p159, %p160
    %s162 = ssub.s32 %s20, %s32
    %p163 = scmp.eq.s32.totalorder %s162, 0
    %s165 = sadd.s32 %s164, 1
    %s166 = scalar_select %p163, %s164, %s165
    %p169 = pneg %p163
    %p170 = scmp.eq.s32.totalorder %s13, 3
    %p171 = por %p169, %p170
    %p172 = scmp.ne.s32.totalorder %s164, %s167
    %p173 = scmp.eq.s32.totalorder %s13, 0
    %p174 = por %p172, %p173
    %p175 = scmp.ne.s32.totalorder %s164, %s167
    %p176 = scmp.eq.s32.totalorder %s18, 3
    %p177 = por %p175, %p176
    %p178 = scmp.ne.s32.totalorder %s167, %s168
    %p179 = scmp.eq.s32.totalorder %s18, 0
    %p180 = por %p178, %p179
    %p181 = scmp.ne.s32.totalorder %s167, %s168
    %p182 = scmp.eq.s32.totalorder %s19, 3
    %p183 = por %p181, %p182
    %p185 = scmp.ne.s32.totalorder %s168, %s184
    %p186 = scmp.eq.s32.totalorder %s19, 0
    %p187 = por %p185, %p186
    %p188 = scmp.le.s32.totalorder 1, %s13
    %p189 = scmp.lt.s32.totalorder %s13, 5
    %p190 = pnand %p188, %p189
    %p191 = pneg %p190
    // Predicated region
    $region9: #{tpu_custom_call.1} parent=5 // pred_check
      _
    $region10: #{tpu_custom_call.1} parent=5 // pred_check_branch
      %193 = sbr.rel (%p190) target = $region12
    $region11: #{tpu_custom_call.1} parent=5 // pred_region
      %s194 = ssub.s32 %s13, 1
      // Predicated region
      $region13: #{tpu_custom_call.1} parent=11 // pred_check
        %p195 = pneg %p107
      $region14: #{tpu_custom_call.1} parent=11 // pred_check_branch
        %197 = sbr.rel (%p195) target = $region16
      $region15: #{tpu_custom_call.1} parent=11 // pred_region
        %s198 = smul.u32 2, %s22
        %p199 = scmp.lt.s32.totalorder %s198, 1
        %s200 = scalar_select %p199, %s198, 1
        %s201 = scalar_lea.vmem %s2, %s200
        %s202 = smul.u32 2, %s22
      $region16: #{tpu_custom_call.1} parent=11 // pred_fallthru
        _
      // Predicated region
      $region17: #{tpu_custom_call.1} parent=11 // pred_check
        %p203 = pneg %p133
      $region18: #{tpu_custom_call.1} parent=11 // pred_check_branch
        %205 = sbr.rel (%p203) target = $region20
      $region19: #{tpu_custom_call.1} parent=11 // pred_region
        %s206 = smul.u32 2, %s22
        %p207 = scmp.lt.s32.totalorder %s206, 1
        %s208 = scalar_select %p207, %s206, 1
        %s209 = scalar_lea.vmem %s3, %s208
        %s210 = smul.u32 2, %s22
      $region20: #{tpu_custom_call.1} parent=11 // pred_fallthru
        _
      // Predicated region
      $region21: #{tpu_custom_call.1} parent=11 // pred_check
        %p211 = pneg %p154
      $region22: #{tpu_custom_call.1} parent=11 // pred_check_branch
        %213 = sbr.rel (%p211) target = $region24
      $region23: #{tpu_custom_call.1} parent=11 // pred_region
        _
      $region24: #{tpu_custom_call.1} parent=11 // pred_fallthru
        _
    $region12: #{tpu_custom_call.1} parent=5 // pred_fallthru
      _
    %p214 = scmp.lt.s32.totalorder %s13, 4
    // Predicated region
    $region25: #{tpu_custom_call.1} parent=5 // pred_check
      %p215 = pneg %p214
    $region26: #{tpu_custom_call.1} parent=5 // pred_check_branch
      %217 = sbr.rel (%p215) target = $region28
    $region27: #{tpu_custom_call.1} parent=5 // pred_region
      // Predicated region
      $region29: #{tpu_custom_call.1} parent=27 // pred_check
        %p218 = pneg %p47
      $region30: #{tpu_custom_call.1} parent=27 // pred_check_branch
        %220 = sbr.rel (%p218) target = $region32
      $region31: #{tpu_custom_call.1} parent=27 // pred_region
        %s221 = sadd.s32 %s21, 9
        %p222 = scmp.lt.s32.totalorder %s221, 12
        %s223 = scalar_select %p222, %s221, 12
        %s224 = smul.addr %s223, 72
        %s225 = smul.addr %s224, 8
        %s226 = scalar_lea.vmem %s0, %s225
        %s227 = sadd.s32 %s21, 9
      $region32: #{tpu_custom_call.1} parent=27 // pred_fallthru
        _
      // Predicated region
      $region33: #{tpu_custom_call.1} parent=27 // pred_check
        %p228 = pneg %p75
      $region34: #{tpu_custom_call.1} parent=27 // pred_check_branch
        %230 = sbr.rel (%p228) target = $region36
      $region35: #{tpu_custom_call.1} parent=27 // pred_region
        %s231 = smul.u32 6, %s20
        %p232 = scmp.lt.s32.totalorder %s21, 3
        %s233 = scalar_select %p232, %s21, 3
        %p234 = scmp.lt.s32.totalorder %s231, 5
        %s235 = scalar_select %p234, %s231, 5
        %s236 = smul.addr %s233, 576
        %s237 = sadd.s32 %s235, %s236
        %s238 = smul.addr %s237, 4
        %s239 = scalar_lea.vmem %s1, %s238
        %s240 = smul.u32 6, %s20
      $region36: #{tpu_custom_call.1} parent=27 // pred_fallthru
        _
    $region28: #{tpu_custom_call.1} parent=5 // pred_fallthru
      _
    %p241 = scmp.le.s32.totalorder 1, %s13
    %p242 = scmp.lt.s32.totalorder %s13, 5
    %p243 = pnand %p241, %p242
    %p244 = pneg %p243
    // Predicated region
    $region37: #{tpu_custom_call.1} parent=5 // pred_check
      _
    $region38: #{tpu_custom_call.1} parent=5 // pred_check_branch
      %246 = sbr.rel (%p243) target = $region40
    $region39: #{tpu_custom_call.1} parent=5 // pred_region
      %s247 = ssub.s32 %s13, 1
      %s248 = sadd.s32 %s23, 9
      %p249 = scmp.lt.s32.totalorder %s248, 12
      %s250 = scalar_select %p249, %s248, 12
      %s251 = smul.addr %s250, 72
      %s252 = smul.addr %s251, 8
      %s253 = scalar_lea.vmem %s0, %s252
      %p254 = pneg %p53
      %p255 = pneg %p50
      %s256 = smul.u32 6, %s22
      %p257 = scmp.lt.s32.totalorder %s23, 3
      %s258 = scalar_select %p257, %s23, 3
      %p259 = scmp.lt.s32.totalorder %s256, 5
      %s260 = scalar_select %p259, %s256, 5
      %s261 = smul.addr %s258, 576
      %s262 = sadd.s32 %s260, %s261
      %s263 = smul.addr %s262, 4
      %s264 = scalar_lea.vmem %s1, %s263
      %p265 = pneg %p81
      %p266 = pneg %p78
      %s267 = smul.u32 2, %s22
      %p268 = scmp.lt.s32.totalorder %s267, 1
      %s269 = scalar_select %p268, %s267, 1
      %s270 = scalar_lea.vmem %s2, %s269
      %p271 = pneg %p107
      %p272 = pneg %p104
      %s273 = smul.u32 2, %s22
      %p274 = scmp.lt.s32.totalorder %s273, 1
      %s275 = scalar_select %p274, %s273, 1
      %s276 = scalar_lea.vmem %s3, %s275
      %p277 = pneg %p133
      %p278 = pneg %p130
      %p279 = pneg %p154
      %p280 = pneg %p151
      %p281 = pneg %p180
      %p282 = pneg %p177
      %p283 = scmp.lt.s32.totalorder %s22, 0
      %s284 = scalar_select %p283, %s22, 0
      %s285 = smul.addr %s284, 2
      %s286 = scalar_lea.vmem %s5, %s285
      %s287 = sadd.s32 %s23, 9
      %p288 = scmp.lt.s32.totalorder %s287, 12
      %s289 = scalar_select %p288, %s287, 12
      %s290 = smul.addr %s289, 72
      %s291 = smul.addr %s290, 8
      %s292 = scalar_lea.vmem %s0, %s291
      %s293 = sadd.s32 %s23, 9
      %s294 = smul.u32 6, %s22
      %p295 = scmp.lt.s32.totalorder %s23, 3
      %s296 = scalar_select %p295, %s23, 3
      %p297 = scmp.lt.s32.totalorder %s294, 5
      %s298 = scalar_select %p297, %s294, 5
      %s299 = smul.addr %s296, 576
      %s300 = sadd.s32 %s298, %s299
      %s301 = smul.addr %s300, 4
      %s302 = scalar_lea.vmem %s1, %s301
      %s303 = smul.u32 6, %s22
      %s304 = smul.u32 2, %s22
      %p305 = scmp.lt.s32.totalorder %s304, 1
      %s306 = scalar_select %p305, %s304, 1
      %s307 = scalar_lea.vmem %s2, %s306
      %s308 = smul.u32 2, %s22
      %s309 = smul.u32 2, %s22
      %p310 = scmp.lt.s32.totalorder %s309, 1
      %s311 = scalar_select %p310, %s309, 1
      %s312 = scalar_lea.vmem %s3, %s311
      %s313 = smul.u32 2, %s22
      %p314 = scmp.lt.s32.totalorder %s22, 0
      %s315 = scalar_select %p314, %s22, 0
      %s316 = smul.addr %s315, 2
      %s317 = scalar_lea.vmem %s5, %s316
      %p318 = scmp.eq.s32.totalorder %s23, 0
      // Predicated region
      $region41: #{tpu_custom_call.1} parent=39 // pred_check
        %p319 = pneg %p318
      $region42: #{tpu_custom_call.1} parent=39 // pred_check_branch
        %321 = sbr.rel (%p319) target = $region44
      $region43: #{tpu_custom_call.1} parent=39 // pred_region
        %322 = vst [vmem:[#allocation2] sm:$0xff] 0.0
        %323 = vst [vmem:[#allocation2 + $0x8] sm:$0xff] 0.0
        %324 = vst [vmem:[#allocation2 + $0x10] sm:$0xff] 0.0
        %325 = vst [vmem:[#allocation2 + $0x18] sm:$0xff] 0.0
        %326 = vst [vmem:[#allocation2 + $0x20] sm:$0xff] 0.0
        %327 = vst [vmem:[#allocation2 + $0x28] sm:$0xff] 0.0
        %328 = vst [vmem:[#allocation2 + $0x30] sm:$0xff] 0.0
        %329 = vst [vmem:[#allocation2 + $0x38] sm:$0xff] 0.0
        %330 = vst [vmem:[#allocation2 + $0x40] sm:$0xff] 0.0
        %331 = vst [vmem:[#allocation2 + $0x48] sm:$0xff] 0.0
        %332 = vst [vmem:[#allocation2 + $0x50] sm:$0xff] 0.0
        %333 = vst [vmem:[#allocation2 + $0x58] sm:$0xff] 0.0
        %334 = vst [vmem:[#allocation2 + $0x60] sm:$0xff] 0.0
        %335 = vst [vmem:[#allocation2 + $0x68] sm:$0xff] 0.0
        %336 = vst [vmem:[#allocation2 + $0x70] sm:$0xff] 0.0
        %337 = vst [vmem:[#allocation2 + $0x78] sm:$0xff] 0.0
        %338 = vst [vmem:[#allocation2 + $0x80] sm:$0xff] 0.0
        %339 = vst [vmem:[#allocation2 + $0x88] sm:$0xff] 0.0
        %340 = vst [vmem:[#allocation2 + $0x90] sm:$0xff] 0.0
        %341 = vst [vmem:[#allocation2 + $0x98] sm:$0xff] 0.0
        %342 = vst [vmem:[#allocation2 + $0xa0] sm:$0xff] 0.0
        %343 = vst [vmem:[#allocation2 + $0xa8] sm:$0xff] 0.0
        %344 = vst [vmem:[#allocation2 + $0xb0] sm:$0xff] 0.0
        %345 = vst [vmem:[#allocation2 + $0xb8] sm:$0xff] 0.0
        %346 = vst [vmem:[#allocation2 + $0xc0] sm:$0xff] 0.0
        %347 = vst [vmem:[#allocation2 + $0xc8] sm:$0xff] 0.0
        %348 = vst [vmem:[#allocation2 + $0xd0] sm:$0xff] 0.0
        %349 = vst [vmem:[#allocation2 + $0xd8] sm:$0xff] 0.0
        %350 = vst [vmem:[#allocation2 + $0xe0] sm:$0xff] 0.0
        %351 = vst [vmem:[#allocation2 + $0xe8] sm:$0xff] 0.0
        %352 = vst [vmem:[#allocation2 + $0xf0] sm:$0x1f] 0.0
        %353 = vst [vmem:[#allocation2 + $0xf8] sm:$0x1f] 0.0
        %354 = vst [vmem:[#allocation2 + $0x100] sm:$0x1f] 0.0
        %355 = vst [vmem:[#allocation2 + $0x108] sm:$0x1f] 0.0
        %356 = vst [vmem:[#allocation2 + $0x110] sm:$0x1f] 0.0
        %357 = vst [vmem:[#allocation2 + $0x118] sm:$0x1f] 0.0
        %358 = vst [vmem:[#allocation2 + $0x120] sm:$0xff] 0.0
        %359 = vst [vmem:[#allocation2 + $0x128] sm:$0xff] 0.0
        %360 = vst [vmem:[#allocation2 + $0x130] sm:$0xff] 0.0
        %361 = vst [vmem:[#allocation2 + $0x138] sm:$0xff] 0.0
        %362 = vst [vmem:[#allocation2 + $0x140] sm:$0xff] 0.0
        %363 = vst [vmem:[#allocation2 + $0x148] sm:$0xff] 0.0
        %364 = vst [vmem:[#allocation2 + $0x150] sm:$0xff] 0.0
        %365 = vst [vmem:[#allocation2 + $0x158] sm:$0xff] 0.0
        %366 = vst [vmem:[#allocation2 + $0x160] sm:$0xff] 0.0
        %367 = vst [vmem:[#allocation2 + $0x168] sm:$0xff] 0.0
        %368 = vst [vmem:[#allocation2 + $0x170] sm:$0xff] 0.0
        %369 = vst [vmem:[#allocation2 + $0x178] sm:$0xff] 0.0
        %370 = vst [vmem:[#allocation2 + $0x180] sm:$0xff] 0.0
        %371 = vst [vmem:[#allocation2 + $0x188] sm:$0xff] 0.0
        %372 = vst [vmem:[#allocation2 + $0x190] sm:$0xff] 0.0
        %373 = vst [vmem:[#allocation2 + $0x198] sm:$0xff] 0.0
        %374 = vst [vmem:[#allocation2 + $0x1a0] sm:$0xff] 0.0
        %375 = vst [vmem:[#allocation2 + $0x1a8] sm:$0xff] 0.0
        %376 = vst [vmem:[#allocation2 + $0x1b0] sm:$0xff] 0.0
        %377 = vst [vmem:[#allocation2 + $0x1b8] sm:$0xff] 0.0
        %378 = vst [vmem:[#allocation2 + $0x1c0] sm:$0xff] 0.0
        %379 = vst [vmem:[#allocation2 + $0x1c8] sm:$0xff] 0.0
        %380 = vst [vmem:[#allocation2 + $0x1d0] sm:$0xff] 0.0
        %381 = vst [vmem:[#allocation2 + $0x1d8] sm:$0xff] 0.0
        %382 = vst [vmem:[#allocation2 + $0x1e0] sm:$0xff] 0.0
        %383 = vst [vmem:[#allocation2 + $0x1e8] sm:$0xff] 0.0
        %384 = vst [vmem:[#allocation2 + $0x1f0] sm:$0xff] 0.0
        %385 = vst [vmem:[#allocation2 + $0x1f8] sm:$0xff] 0.0
        %386 = vst [vmem:[#allocation2 + $0x200] sm:$0xff] 0.0
        %387 = vst [vmem:[#allocation2 + $0x208] sm:$0xff] 0.0
        %388 = vst [vmem:[#allocation2 + $0x210] sm:$0x1f] 0.0
        %389 = vst [vmem:[#allocation2 + $0x218] sm:$0x1f] 0.0
        %390 = vst [vmem:[#allocation2 + $0x220] sm:$0x1f] 0.0
        %391 = vst [vmem:[#allocation2 + $0x228] sm:$0x1f] 0.0
        %392 = vst [vmem:[#allocation2 + $0x230] sm:$0x1f] 0.0
        %393 = vst [vmem:[#allocation2 + $0x238] sm:$0x1f] 0.0
      $region44: #{tpu_custom_call.1} parent=39 // pred_fallthru
        _
      %v394 = vld [vmem:[%s292] sm:$0xff]
      %v395 = vld [vmem:[%s292 + $0x8] sm:$0xff]
      %v396 = vld [vmem:[%s292 + $0x10] sm:$0xff]
      %v397 = vld [vmem:[%s292 + $0x18] sm:$0xff]
      %v398 = vld [vmem:[%s292 + $0x20] sm:$0xff]
      %v399 = vld [vmem:[%s292 + $0x28] sm:$0xff]
      %v400 = vld [vmem:[%s292 + $0x30] sm:$0xff]
      %v401 = vld [vmem:[%s292 + $0x38] sm:$0xff]
      %v402 = vld [vmem:[%s292 + $0x40] sm:$0xff]
      %v403 = vld [vmem:[%s292 + $0x48] sm:$0xff]
      %v404 = vld [vmem:[%s292 + $0x50] sm:$0xff]
      %v405 = vld [vmem:[%s292 + $0x58] sm:$0xff]
      %v406 = vld [vmem:[%s292 + $0x60] sm:$0xff]
      %v407 = vld [vmem:[%s292 + $0x68] sm:$0xff]
      %v408 = vld [vmem:[%s292 + $0x70] sm:$0xff]
      %v409 = vld [vmem:[%s292 + $0x78] sm:$0xff]
      %v410 = vld [vmem:[%s292 + $0x80] sm:$0xff]
      %v411 = vld [vmem:[%s292 + $0x88] sm:$0xff]
      %v412 = vld [vmem:[%s292 + $0x90] sm:$0xff]
      %v413 = vld [vmem:[%s292 + $0x98] sm:$0xff]
      %v414 = vld [vmem:[%s292 + $0xa0] sm:$0xff]
      %v415 = vld [vmem:[%s292 + $0xa8] sm:$0xff]
      %v416 = vld [vmem:[%s292 + $0xb0] sm:$0xff]
      %v417 = vld [vmem:[%s292 + $0xb8] sm:$0xff]
      %v418 = vld [vmem:[%s292 + $0xc0] sm:$0xff]
      %v419 = vld [vmem:[%s292 + $0xc8] sm:$0xff]
      %v420 = vld [vmem:[%s292 + $0xd0] sm:$0xff]
      %v421 = vld [vmem:[%s292 + $0xd8] sm:$0xff]
      %v422 = vld [vmem:[%s292 + $0xe0] sm:$0xff]
      %v423 = vld [vmem:[%s292 + $0xe8] sm:$0xff]
      %v424 = vld [vmem:[%s292 + $0xf0] sm:$0x1f]
      %v425 = vld [vmem:[%s292 + $0xf8] sm:$0x1f]
      %v426 = vld [vmem:[%s292 + $0x100] sm:$0x1f]
      %v427 = vld [vmem:[%s292 + $0x108] sm:$0x1f]
      %v428 = vld [vmem:[%s292 + $0x110] sm:$0x1f]
      %v429 = vld [vmem:[%s292 + $0x118] sm:$0x1f]
      %v430 = vld [vmem:[%s292 + $0x120] sm:$0xff]
      %v431 = vld [vmem:[%s292 + $0x128] sm:$0xff]
      %v432 = vld [vmem:[%s292 + $0x130] sm:$0xff]
      %v433 = vld [vmem:[%s292 + $0x138] sm:$0xff]
      %v434 = vld [vmem:[%s292 + $0x140] sm:$0xff]
      %v435 = vld [vmem:[%s292 + $0x148] sm:$0xff]
      %v436 = vld [vmem:[%s292 + $0x150] sm:$0xff]
      %v437 = vld [vmem:[%s292 + $0x158] sm:$0xff]
      %v438 = vld [vmem:[%s292 + $0x160] sm:$0xff]
      %v439 = vld [vmem:[%s292 + $0x168] sm:$0xff]
      %v440 = vld [vmem:[%s292 + $0x170] sm:$0xff]
      %v441 = vld [vmem:[%s292 + $0x178] sm:$0xff]
      %v442 = vld [vmem:[%s292 + $0x180] sm:$0xff]
      %v443 = vld [vmem:[%s292 + $0x188] sm:$0xff]
      %v444 = vld [vmem:[%s292 + $0x190] sm:$0xff]
      %v445 = vld [vmem:[%s292 + $0x198] sm:$0xff]
      %v446 = vld [vmem:[%s292 + $0x1a0] sm:$0xff]
      %v447 = vld [vmem:[%s292 + $0x1a8] sm:$0xff]
      %v448 = vld [vmem:[%s292 + $0x1b0] sm:$0xff]
      %v449 = vld [vmem:[%s292 + $0x1b8] sm:$0xff]
      %v450 = vld [vmem:[%s292 + $0x1c0] sm:$0xff]
      %v451 = vld [vmem:[%s292 + $0x1c8] sm:$0xff]
      %v452 = vld [vmem:[%s292 + $0x1d0] sm:$0xff]
      %v453 = vld [vmem:[%s292 + $0x1d8] sm:$0xff]
      %v454 = vld [vmem:[%s292 + $0x1e0] sm:$0xff]
      %v455 = vld [vmem:[%s292 + $0x1e8] sm:$0xff]
      %v456 = vld [vmem:[%s292 + $0x1f0] sm:$0xff]
      %v457 = vld [vmem:[%s292 + $0x1f8] sm:$0xff]
      %v458 = vld [vmem:[%s292 + $0x200] sm:$0xff]
      %v459 = vld [vmem:[%s292 + $0x208] sm:$0xff]
      %v460 = vld [vmem:[%s292 + $0x210] sm:$0x1f]
      %v461 = vld [vmem:[%s292 + $0x218] sm:$0x1f]
      %v462 = vld [vmem:[%s292 + $0x220] sm:$0x1f]
      %v463 = vld [vmem:[%s292 + $0x228] sm:$0x1f]
      %v464 = vld [vmem:[%s292 + $0x230] sm:$0x1f]
      %v465 = vld [vmem:[%s292 + $0x238] sm:$0x1f]
      %v466 = vpack.c.bf16 %v395, %v394
      %v467 = vpack.c.bf16 %v397, %v396
      %v468 = vpack.c.bf16 %v399, %v398
      %v469 = vpack.c.bf16 %v401, %v400
      %v470 = vpack.c.bf16 %v403, %v402
      %v471 = vpack.c.bf16 %v405, %v404
      %v472 = vpack.c.bf16 %v407, %v406
      %v473 = vpack.c.bf16 %v409, %v408
      %v474 = vpack.c.bf16 %v411, %v410
      %v475 = vpack.c.bf16 %v413, %v412
      %v476 = vpack.c.bf16 %v415, %v414
      %v477 = vpack.c.bf16 %v417, %v416
      %v478 = vpack.c.bf16 %v419, %v418
      %v479 = vpack.c.bf16 %v421, %v420
      %v480 = vpack.c.bf16 %v423, %v422
      %v481 = vpack.c.bf16 %v425, %v424
      %v482 = vpack.c.bf16 %v427, %v426
      %v483 = vpack.c.bf16 %v429, %v428
      %v484 = vpack.c.bf16 %v431, %v430
      %v485 = vpack.c.bf16 %v433, %v432
      %v486 = vpack.c.bf16 %v435, %v434
      %v487 = vpack.c.bf16 %v437, %v436
      %v488 = vpack.c.bf16 %v439, %v438
      %v489 = vpack.c.bf16 %v441, %v440
      %v490 = vpack.c.bf16 %v443, %v442
      %v491 = vpack.c.bf16 %v445, %v444
      %v492 = vpack.c.bf16 %v447, %v446
      %v493 = vpack.c.bf16 %v449, %v448
      %v494 = vpack.c.bf16 %v451, %v450
      %v495 = vpack.c.bf16 %v453, %v452
      %v496 = vpack.c.bf16 %v455, %v454
      %v497 = vpack.c.bf16 %v457, %v456
      %v498 = vpack.c.bf16 %v459, %v458
      %v499 = vpack.c.bf16 %v461, %v460
      %v500 = vpack.c.bf16 %v463, %v462
      %v501 = vpack.c.bf16 %v465, %v464
      %v502 = vld [vmem:[%s302] sm:$0xff]
      %v503 = vld [vmem:[%s302 + $0x8] sm:$0xff]
      %v504 = vld [vmem:[%s302 + $0x10] sm:$0xff]
      %v505 = vld [vmem:[%s302 + $0x18] sm:$0xff]
      %v506 = vld [vmem:[%s302 + $0x20] sm:$0xff]
      %v507 = vld [vmem:[%s302 + $0x28] sm:$0xff]
      %v508 = vld [vmem:[%s302 + $0x30] sm:$0xff]
      %v509 = vld [vmem:[%s302 + $0x38] sm:$0xff]
      %v510 = vld [vmem:[%s302 + $0x40] sm:$0xff]
      %v511 = vld [vmem:[%s302 + $0x48] sm:$0xff]
      %v512 = vld [vmem:[%s302 + $0x50] sm:$0xff]
      %v513 = vld [vmem:[%s302 + $0x58] sm:$0xff]
      %v514 = vld [vmem:[%s302 + $0x60] sm:$0xff]
      %v515 = vld [vmem:[%s302 + $0x68] sm:$0xff]
      %v516 = vld [vmem:[%s302 + $0x70] sm:$0xff]
      %v517 = vld [vmem:[%s302 + $0x78] sm:$0xff]
      %v518 = vld [vmem:[%s302 + $0x80] sm:$0xff]
      %v519 = vld [vmem:[%s302 + $0x88] sm:$0xff]
      %v520 = vld [vmem:[%s302 + $0x90] sm:$0xff]
      %v521 = vld [vmem:[%s302 + $0x98] sm:$0xff]
      %v522 = vld [vmem:[%s302 + $0xa0] sm:$0xff]
      %v523 = vld [vmem:[%s302 + $0xa8] sm:$0xff]
      %v524 = vld [vmem:[%s302 + $0xb0] sm:$0xff]
      %v525 = vld [vmem:[%s302 + $0xb8] sm:$0xff]
      %v526 = vld [vmem:[%s302 + $0xc0] sm:$0xff]
      %v527 = vld [vmem:[%s302 + $0xc8] sm:$0xff]
      %v528 = vld [vmem:[%s302 + $0xd0] sm:$0xff]
      %v529 = vld [vmem:[%s302 + $0xd8] sm:$0xff]
      %v530 = vld [vmem:[%s302 + $0xe0] sm:$0xff]
      %v531 = vld [vmem:[%s302 + $0xe8] sm:$0xff]
      %v532 = vld [vmem:[%s302 + $0xf0] sm:$0xff]
      %v533 = vld [vmem:[%s302 + $0xf8] sm:$0xff]
      %v534 = vld [vmem:[%s302 + $0x100] sm:$0xff]
      %v535 = vld [vmem:[%s302 + $0x108] sm:$0xff]
      %v536 = vld [vmem:[%s302 + $0x110] sm:$0xff]
      %v537 = vld [vmem:[%s302 + $0x118] sm:$0xff]
      %v538 = vld [vmem:[%s302 + $0x120] sm:$0xff]
      %v539 = vld [vmem:[%s302 + $0x128] sm:$0xff]
      %v540 = vld [vmem:[%s302 + $0x130] sm:$0xff]
      %v541 = vld [vmem:[%s302 + $0x138] sm:$0xff]
      %v542 = vld [vmem:[%s302 + $0x140] sm:$0xff]
      %v543 = vld [vmem:[%s302 + $0x148] sm:$0xff]
      %v544 = vld [vmem:[%s302 + $0x150] sm:$0xff]
      %v545 = vld [vmem:[%s302 + $0x158] sm:$0xff]
      %v546 = vld [vmem:[%s302 + $0x160] sm:$0xff]
      %v547 = vld [vmem:[%s302 + $0x168] sm:$0xff]
      %v548 = vld [vmem:[%s302 + $0x170] sm:$0xff]
      %v549 = vld [vmem:[%s302 + $0x178] sm:$0xff]
      %v550 = vld [vmem:[%s302 + $0x180] sm:$0xff]
      %v551 = vld [vmem:[%s302 + $0x188] sm:$0xff]
      %v552 = vld [vmem:[%s302 + $0x190] sm:$0xff]
      %v553 = vld [vmem:[%s302 + $0x198] sm:$0xff]
      %v554 = vld [vmem:[%s302 + $0x1a0] sm:$0xff]
      %v555 = vld [vmem:[%s302 + $0x1a8] sm:$0xff]
      %v556 = vld [vmem:[%s302 + $0x1b0] sm:$0xff]
      %v557 = vld [vmem:[%s302 + $0x1b8] sm:$0xff]
      %v558 = vld [vmem:[%s302 + $0x1c0] sm:$0xff]
      %v559 = vld [vmem:[%s302 + $0x1c8] sm:$0xff]
      %v560 = vld [vmem:[%s302 + $0x1d0] sm:$0xff]
      %v561 = vld [vmem:[%s302 + $0x1d8] sm:$0xff]
      %v562 = vld [vmem:[%s302 + $0x1e0] sm:$0xff]
      %v563 = vld [vmem:[%s302 + $0x1e8] sm:$0xff]
      %v564 = vld [vmem:[%s302 + $0x1f0] sm:$0xff]
      %v565 = vld [vmem:[%s302 + $0x1f8] sm:$0xff]
      %v566 = vld [vmem:[%s302 + $0x200] sm:$0xff]
      %v567 = vld [vmem:[%s302 + $0x208] sm:$0xff]
      %v568 = vld [vmem:[%s302 + $0x210] sm:$0xff]
      %v569 = vld [vmem:[%s302 + $0x218] sm:$0xff]
      %v570 = vld [vmem:[%s302 + $0x220] sm:$0xff]
      %v571 = vld [vmem:[%s302 + $0x228] sm:$0xff]
      %v572 = vld [vmem:[%s302 + $0x230] sm:$0xff]
      %v573 = vld [vmem:[%s302 + $0x238] sm:$0xff]
      %v574 = vld [vmem:[%s302 + $0x240] sm:$0xff]
      %v575 = vld [vmem:[%s302 + $0x248] sm:$0xff]
      %v576 = vld [vmem:[%s302 + $0x250] sm:$0xff]
      %v577 = vld [vmem:[%s302 + $0x258] sm:$0xff]
      %v578 = vld [vmem:[%s302 + $0x260] sm:$0xff]
      %v579 = vld [vmem:[%s302 + $0x268] sm:$0xff]
      %v580 = vld [vmem:[%s302 + $0x270] sm:$0xff]
      %v581 = vld [vmem:[%s302 + $0x278] sm:$0xff]
      %v582 = vld [vmem:[%s302 + $0x280] sm:$0xff]
      %v583 = vld [vmem:[%s302 + $0x288] sm:$0xff]
      %v584 = vld [vmem:[%s302 + $0x290] sm:$0xff]
      %v585 = vld [vmem:[%s302 + $0x298] sm:$0xff]
      %v586 = vld [vmem:[%s302 + $0x2a0] sm:$0xff]
      %v587 = vld [vmem:[%s302 + $0x2a8] sm:$0xff]
      %v588 = vld [vmem:[%s302 + $0x2b0] sm:$0xff]
      %v589 = vld [vmem:[%s302 + $0x2b8] sm:$0xff]
      %v590 = vld [vmem:[%s302 + $0x2c0] sm:$0xff]
      %v591 = vld [vmem:[%s302 + $0x2c8] sm:$0xff]
      %v592 = vld [vmem:[%s302 + $0x2d0] sm:$0xff]
      %v593 = vld [vmem:[%s302 + $0x2d8] sm:$0xff]
      %v594 = vld [vmem:[%s302 + $0x2e0] sm:$0xff]
      %v595 = vld [vmem:[%s302 + $0x2e8] sm:$0xff]
      %v596 = vld [vmem:[%s302 + $0x2f0] sm:$0xff]
      %v597 = vld [vmem:[%s302 + $0x2f8] sm:$0xff]
      %v598 = vld [vmem:[%s302 + $0x300] sm:$0xff]
      %v599 = vld [vmem:[%s302 + $0x308] sm:$0xff]
      %v600 = vld [vmem:[%s302 + $0x310] sm:$0xff]
      %v601 = vld [vmem:[%s302 + $0x318] sm:$0xff]
      %v602 = vld [vmem:[%s302 + $0x320] sm:$0xff]
      %v603 = vld [vmem:[%s302 + $0x328] sm:$0xff]
      %v604 = vld [vmem:[%s302 + $0x330] sm:$0xff]
      %v605 = vld [vmem:[%s302 + $0x338] sm:$0xff]
      %v606 = vld [vmem:[%s302 + $0x340] sm:$0xff]
      %v607 = vld [vmem:[%s302 + $0x348] sm:$0xff]
      %v608 = vld [vmem:[%s302 + $0x350] sm:$0xff]
      %v609 = vld [vmem:[%s302 + $0x358] sm:$0xff]
      %v610 = vld [vmem:[%s302 + $0x360] sm:$0xff]
      %v611 = vld [vmem:[%s302 + $0x368] sm:$0xff]
      %v612 = vld [vmem:[%s302 + $0x370] sm:$0xff]
      %v613 = vld [vmem:[%s302 + $0x378] sm:$0xff]
      %v614 = vld [vmem:[%s302 + $0x380] sm:$0xff]
      %v615 = vld [vmem:[%s302 + $0x388] sm:$0xff]
      %v616 = vld [vmem:[%s302 + $0x390] sm:$0xff]
      %v617 = vld [vmem:[%s302 + $0x398] sm:$0xff]
      %v618 = vld [vmem:[%s302 + $0x3a0] sm:$0xff]
      %v619 = vld [vmem:[%s302 + $0x3a8] sm:$0xff]
      %v620 = vld [vmem:[%s302 + $0x3b0] sm:$0xff]
      %v621 = vld [vmem:[%s302 + $0x3b8] sm:$0xff]
      %v622 = vld [vmem:[%s302 + $0x3c0] sm:$0xff]
      %v623 = vld [vmem:[%s302 + $0x3c8] sm:$0xff]
      %v624 = vld [vmem:[%s302 + $0x3d0] sm:$0xff]
      %v625 = vld [vmem:[%s302 + $0x3d8] sm:$0xff]
      %v626 = vld [vmem:[%s302 + $0x3e0] sm:$0xff]
      %v627 = vld [vmem:[%s302 + $0x3e8] sm:$0xff]
      %v628 = vld [vmem:[%s302 + $0x3f0] sm:$0xff]
      %v629 = vld [vmem:[%s302 + $0x3f8] sm:$0xff]
      %v630 = vld [vmem:[%s302 + $0x400] sm:$0xff]
      %v631 = vld [vmem:[%s302 + $0x408] sm:$0xff]
      %v632 = vld [vmem:[%s302 + $0x410] sm:$0xff]
      %v633 = vld [vmem:[%s302 + $0x418] sm:$0xff]
      %v634 = vld [vmem:[%s302 + $0x420] sm:$0xff]
      %v635 = vld [vmem:[%s302 + $0x428] sm:$0xff]
      %v636 = vld [vmem:[%s302 + $0x430] sm:$0xff]
      %v637 = vld [vmem:[%s302 + $0x438] sm:$0xff]
      %v638 = vld [vmem:[%s302 + $0x440] sm:$0xff]
      %v639 = vld [vmem:[%s302 + $0x448] sm:$0xff]
      %v640 = vld [vmem:[%s302 + $0x450] sm:$0xff]
      %v641 = vld [vmem:[%s302 + $0x458] sm:$0xff]
      %v642 = vld [vmem:[%s302 + $0x460] sm:$0xff]
      %v643 = vld [vmem:[%s302 + $0x468] sm:$0xff]
      %v644 = vld [vmem:[%s302 + $0x470] sm:$0xff]
      %v645 = vld [vmem:[%s302 + $0x478] sm:$0xff]
      %v646 = vld [vmem:[%s302 + $0x480] sm:$0xff]
      %v647 = vld [vmem:[%s302 + $0x488] sm:$0xff]
      %v648 = vld [vmem:[%s302 + $0x490] sm:$0xff]
      %v649 = vld [vmem:[%s302 + $0x498] sm:$0xff]
      %v650 = vld [vmem:[%s302 + $0x4a0] sm:$0xff]
      %v651 = vld [vmem:[%s302 + $0x4a8] sm:$0xff]
      %v652 = vld [vmem:[%s302 + $0x4b0] sm:$0xff]
      %v653 = vld [vmem:[%s302 + $0x4b8] sm:$0xff]
      %v654 = vld [vmem:[%s302 + $0x4c0] sm:$0xff]
      %v655 = vld [vmem:[%s302 + $0x4c8] sm:$0xff]
      %v656 = vld [vmem:[%s302 + $0x4d0] sm:$0xff]
      %v657 = vld [vmem:[%s302 + $0x4d8] sm:$0xff]
      %v658 = vld [vmem:[%s302 + $0x4e0] sm:$0xff]
      %v659 = vld [vmem:[%s302 + $0x4e8] sm:$0xff]
      %v660 = vld [vmem:[%s302 + $0x4f0] sm:$0xff]
      %v661 = vld [vmem:[%s302 + $0x4f8] sm:$0xff]
      %v662 = vld [vmem:[%s302 + $0x500] sm:$0xff]
      %v663 = vld [vmem:[%s302 + $0x508] sm:$0xff]
      %v664 = vld [vmem:[%s302 + $0x510] sm:$0xff]
      %v665 = vld [vmem:[%s302 + $0x518] sm:$0xff]
      %v666 = vld [vmem:[%s302 + $0x520] sm:$0xff]
      %v667 = vld [vmem:[%s302 + $0x528] sm:$0xff]
      %v668 = vld [vmem:[%s302 + $0x530] sm:$0xff]
      %v669 = vld [vmem:[%s302 + $0x538] sm:$0xff]
      %v670 = vld [vmem:[%s302 + $0x540] sm:$0xff]
      %v671 = vld [vmem:[%s302 + $0x548] sm:$0xff]
      %v672 = vld [vmem:[%s302 + $0x550] sm:$0xff]
      %v673 = vld [vmem:[%s302 + $0x558] sm:$0xff]
      %v674 = vld [vmem:[%s302 + $0x560] sm:$0xff]
      %v675 = vld [vmem:[%s302 + $0x568] sm:$0xff]
      %v676 = vld [vmem:[%s302 + $0x570] sm:$0xff]
      %v677 = vld [vmem:[%s302 + $0x578] sm:$0xff]
      %v678 = vld [vmem:[%s302 + $0x580] sm:$0xff]
      %v679 = vld [vmem:[%s302 + $0x588] sm:$0xff]
      %v680 = vld [vmem:[%s302 + $0x590] sm:$0xff]
      %v681 = vld [vmem:[%s302 + $0x598] sm:$0xff]
      %v682 = vld [vmem:[%s302 + $0x5a0] sm:$0xff]
      %v683 = vld [vmem:[%s302 + $0x5a8] sm:$0xff]
      %v684 = vld [vmem:[%s302 + $0x5b0] sm:$0xff]
      %v685 = vld [vmem:[%s302 + $0x5b8] sm:$0xff]
      %v686 = vld [vmem:[%s302 + $0x5c0] sm:$0xff]
      %v687 = vld [vmem:[%s302 + $0x5c8] sm:$0xff]
      %v688 = vld [vmem:[%s302 + $0x5d0] sm:$0xff]
      %v689 = vld [vmem:[%s302 + $0x5d8] sm:$0xff]
      %v690 = vld [vmem:[%s302 + $0x5e0] sm:$0xff]
      %v691 = vld [vmem:[%s302 + $0x5e8] sm:$0xff]
      %v692 = vld [vmem:[%s302 + $0x5f0] sm:$0xff]
      %v693 = vld [vmem:[%s302 + $0x5f8] sm:$0xff]
      %v694 = vld [vmem:[%s302 + $0x600] sm:$0xff]
      %v695 = vld [vmem:[%s302 + $0x608] sm:$0xff]
      %v696 = vld [vmem:[%s302 + $0x610] sm:$0xff]
      %v697 = vld [vmem:[%s302 + $0x618] sm:$0xff]
      %v698 = vld [vmem:[%s302 + $0x620] sm:$0xff]
      %v699 = vld [vmem:[%s302 + $0x628] sm:$0xff]
      %v700 = vld [vmem:[%s302 + $0x630] sm:$0xff]
      %v701 = vld [vmem:[%s302 + $0x638] sm:$0xff]
      %v702 = vld [vmem:[%s302 + $0x640] sm:$0xff]
      %v703 = vld [vmem:[%s302 + $0x648] sm:$0xff]
      %v704 = vld [vmem:[%s302 + $0x650] sm:$0xff]
      %v705 = vld [vmem:[%s302 + $0x658] sm:$0xff]
      %v706 = vld [vmem:[%s302 + $0x660] sm:$0xff]
      %v707 = vld [vmem:[%s302 + $0x668] sm:$0xff]
      %v708 = vld [vmem:[%s302 + $0x670] sm:$0xff]
      %v709 = vld [vmem:[%s302 + $0x678] sm:$0xff]
      %v710 = vld [vmem:[%s302 + $0x680] sm:$0xff]
      %v711 = vld [vmem:[%s302 + $0x688] sm:$0xff]
      %v712 = vld [vmem:[%s302 + $0x690] sm:$0xff]
      %v713 = vld [vmem:[%s302 + $0x698] sm:$0xff]
      %v714 = vld [vmem:[%s302 + $0x6a0] sm:$0xff]
      %v715 = vld [vmem:[%s302 + $0x6a8] sm:$0xff]
      %v716 = vld [vmem:[%s302 + $0x6b0] sm:$0xff]
      %v717 = vld [vmem:[%s302 + $0x6b8] sm:$0xff]
      %v718 = vld [vmem:[%s302 + $0x6c0] sm:$0xff]
      %v719 = vld [vmem:[%s302 + $0x6c8] sm:$0xff]
      %v720 = vld [vmem:[%s302 + $0x6d0] sm:$0xff]
      %v721 = vld [vmem:[%s302 + $0x6d8] sm:$0xff]
      %v722 = vld [vmem:[%s302 + $0x6e0] sm:$0xff]
      %v723 = vld [vmem:[%s302 + $0x6e8] sm:$0xff]
      %v724 = vld [vmem:[%s302 + $0x6f0] sm:$0xff]
      %v725 = vld [vmem:[%s302 + $0x6f8] sm:$0xff]
      %v726 = vld [vmem:[%s302 + $0x700] sm:$0xff]
      %v727 = vld [vmem:[%s302 + $0x708] sm:$0xff]
      %v728 = vld [vmem:[%s302 + $0x710] sm:$0xff]
      %v729 = vld [vmem:[%s302 + $0x718] sm:$0xff]
      %v730 = vld [vmem:[%s302 + $0x720] sm:$0xff]
      %v731 = vld [vmem:[%s302 + $0x728] sm:$0xff]
      %v732 = vld [vmem:[%s302 + $0x730] sm:$0xff]
      %v733 = vld [vmem:[%s302 + $0x738] sm:$0xff]
      %v734 = vld [vmem:[%s302 + $0x740] sm:$0xff]
      %v735 = vld [vmem:[%s302 + $0x748] sm:$0xff]
      %v736 = vld [vmem:[%s302 + $0x750] sm:$0xff]
      %v737 = vld [vmem:[%s302 + $0x758] sm:$0xff]
      %v738 = vld [vmem:[%s302 + $0x760] sm:$0xff]
      %v739 = vld [vmem:[%s302 + $0x768] sm:$0xff]
      %v740 = vld [vmem:[%s302 + $0x770] sm:$0xff]
      %v741 = vld [vmem:[%s302 + $0x778] sm:$0xff]
      %v742 = vld [vmem:[%s302 + $0x780] sm:$0xff]
      %v743 = vld [vmem:[%s302 + $0x788] sm:$0xff]
      %v744 = vld [vmem:[%s302 + $0x790] sm:$0xff]
      %v745 = vld [vmem:[%s302 + $0x798] sm:$0xff]
      %v746 = vld [vmem:[%s302 + $0x7a0] sm:$0xff]
      %v747 = vld [vmem:[%s302 + $0x7a8] sm:$0xff]
      %v748 = vld [vmem:[%s302 + $0x7b0] sm:$0xff]
      %v749 = vld [vmem:[%s302 + $0x7b8] sm:$0xff]
      %v750 = vld [vmem:[%s302 + $0x7c0] sm:$0xff]
      %v751 = vld [vmem:[%s302 + $0x7c8] sm:$0xff]
      %v752 = vld [vmem:[%s302 + $0x7d0] sm:$0xff]
      %v753 = vld [vmem:[%s302 + $0x7d8] sm:$0xff]
      %v754 = vld [vmem:[%s302 + $0x7e0] sm:$0xff]
      %v755 = vld [vmem:[%s302 + $0x7e8] sm:$0xff]
      %v756 = vld [vmem:[%s302 + $0x7f0] sm:$0xff]
      %v757 = vld [vmem:[%s302 + $0x7f8] sm:$0xff]
      %v758 = vld [vmem:[%s302 + $0x800] sm:$0xff]
      %v759 = vld [vmem:[%s302 + $0x808] sm:$0xff]
      %v760 = vld [vmem:[%s302 + $0x810] sm:$0xff]
      %v761 = vld [vmem:[%s302 + $0x818] sm:$0xff]
      %v762 = vld [vmem:[%s302 + $0x820] sm:$0xff]
      %v763 = vld [vmem:[%s302 + $0x828] sm:$0xff]
      %v764 = vld [vmem:[%s302 + $0x830] sm:$0xff]
      %v765 = vld [vmem:[%s302 + $0x838] sm:$0xff]
      %v766 = vld [vmem:[%s302 + $0x840] sm:$0xff]
      %v767 = vld [vmem:[%s302 + $0x848] sm:$0xff]
      %v768 = vld [vmem:[%s302 + $0x850] sm:$0xff]
      %v769 = vld [vmem:[%s302 + $0x858] sm:$0xff]
      %v770 = vld [vmem:[%s302 + $0x860] sm:$0xff]
      %v771 = vld [vmem:[%s302 + $0x868] sm:$0xff]
      %v772 = vld [vmem:[%s302 + $0x870] sm:$0xff]
      %v773 = vld [vmem:[%s302 + $0x878] sm:$0xff]
      %v774 = vld [vmem:[%s302 + $0x880] sm:$0xff]
      %v775 = vld [vmem:[%s302 + $0x888] sm:$0xff]
      %v776 = vld [vmem:[%s302 + $0x890] sm:$0xff]
      %v777 = vld [vmem:[%s302 + $0x898] sm:$0xff]
      %v778 = vld [vmem:[%s302 + $0x8a0] sm:$0xff]
      %v779 = vld [vmem:[%s302 + $0x8a8] sm:$0xff]
      %v780 = vld [vmem:[%s302 + $0x8b0] sm:$0xff]
      %v781 = vld [vmem:[%s302 + $0x8b8] sm:$0xff]
      %v782 = vld [vmem:[%s302 + $0x8c0] sm:$0xff]
      %v783 = vld [vmem:[%s302 + $0x8c8] sm:$0xff]
      %v784 = vld [vmem:[%s302 + $0x8d0] sm:$0xff]
      %v785 = vld [vmem:[%s302 + $0x8d8] sm:$0xff]
      %v786 = vld [vmem:[%s302 + $0x8e0] sm:$0xff]
      %v787 = vld [vmem:[%s302 + $0x8e8] sm:$0xff]
      %v788 = vld [vmem:[%s302 + $0x8f0] sm:$0xff]
      %v789 = vld [vmem:[%s302 + $0x8f8] sm:$0xff]
      %v790 = vld [vmem:[#allocation2] sm:$0xff]
      %v791 = vld [vmem:[#allocation2 + $0x8] sm:$0xff]
      %v792 = vld [vmem:[#allocation2 + $0x10] sm:$0xff]
      %v793 = vld [vmem:[#allocation2 + $0x18] sm:$0xff]
      %v794 = vld [vmem:[#allocation2 + $0x20] sm:$0xff]
      %v795 = vld [vmem:[#allocation2 + $0x28] sm:$0xff]
      %v796 = vld [vmem:[#allocation2 + $0x30] sm:$0xff]
      %v797 = vld [vmem:[#allocation2 + $0x38] sm:$0xff]
      %v798 = vld [vmem:[#allocation2 + $0x40] sm:$0xff]
      %v799 = vld [vmem:[#allocation2 + $0x48] sm:$0xff]
      %v800 = vld [vmem:[#allocation2 + $0x50] sm:$0xff]
      %v801 = vld [vmem:[#allocation2 + $0x58] sm:$0xff]
      %v802 = vld [vmem:[#allocation2 + $0x60] sm:$0xff]
      %v803 = vld [vmem:[#allocation2 + $0x68] sm:$0xff]
      %v804 = vld [vmem:[#allocation2 + $0x70] sm:$0xff]
      %v805 = vld [vmem:[#allocation2 + $0x78] sm:$0xff]
      %v806 = vld [vmem:[#allocation2 + $0x80] sm:$0xff]
      %v807 = vld [vmem:[#allocation2 + $0x88] sm:$0xff]
      %v808 = vld [vmem:[#allocation2 + $0x90] sm:$0xff]
      %v809 = vld [vmem:[#allocation2 + $0x98] sm:$0xff]
      %v810 = vld [vmem:[#allocation2 + $0xa0] sm:$0xff]
      %v811 = vld [vmem:[#allocation2 + $0xa8] sm:$0xff]
      %v812 = vld [vmem:[#allocation2 + $0xb0] sm:$0xff]
      %v813 = vld [vmem:[#allocation2 + $0xb8] sm:$0xff]
      %v814 = vld [vmem:[#allocation2 + $0xc0] sm:$0xff]
      %v815 = vld [vmem:[#allocation2 + $0xc8] sm:$0xff]
      %v816 = vld [vmem:[#allocation2 + $0xd0] sm:$0xff]
      %v817 = vld [vmem:[#allocation2 + $0xd8] sm:$0xff]
      %v818 = vld [vmem:[#allocation2 + $0xe0] sm:$0xff]
      %v819 = vld [vmem:[#allocation2 + $0xe8] sm:$0xff]
      %v820 = vld [vmem:[#allocation2 + $0xf0] sm:$0x1f]
      %v821 = vld [vmem:[#allocation2 + $0xf8] sm:$0x1f]
      %v822 = vld [vmem:[#allocation2 + $0x100] sm:$0x1f]
      %v823 = vld [vmem:[#allocation2 + $0x108] sm:$0x1f]
      %v824 = vld [vmem:[#allocation2 + $0x110] sm:$0x1f]
      %v825 = vld [vmem:[#allocation2 + $0x118] sm:$0x1f]
      %v844 = vunpack.c.l.b16 %v466
      %v845 = vunpack.c.h.b16 %v466
      %v846 = vunpack.c.l.b16 %v467
      %v847 = vunpack.c.h.b16 %v467
      %v848 = vunpack.c.l.b16 %v468
      %v849 = vunpack.c.h.b16 %v468
      %v850 = vunpack.c.l.b16 %v469
      %v851 = vunpack.c.h.b16 %v469
      %v852 = vunpack.c.l.b16 %v470
      %v853 = vunpack.c.h.b16 %v470
      %v854 = vunpack.c.l.b16 %v471
      %v855 = vunpack.c.h.b16 %v471
      %v856 = vunpack.c.l.b16 %v472
      %v857 = vunpack.c.h.b16 %v472
      %v858 = vunpack.c.l.b16 %v473
      %v859 = vunpack.c.h.b16 %v473
      %v860 = vunpack.c.l.b16 %v474
      %v861 = vunpack.c.h.b16 %v474
      %v862 = vunpack.c.l.b16 %v475
      %v863 = vunpack.c.h.b16 %v475
      %v864 = vunpack.c.l.b16 %v476
      %v865 = vunpack.c.h.b16 %v476
      %v866 = vunpack.c.l.b16 %v477
      %v867 = vunpack.c.h.b16 %v477
      %v868 = vunpack.c.l.b16 %v478
      %v869 = vunpack.c.h.b16 %v478
      %v870 = vunpack.c.l.b16 %v479
      %v871 = vunpack.c.h.b16 %v479
      %v872 = vunpack.c.l.b16 %v480
      %v873 = vunpack.c.h.b16 %v480
      %v874 = vunpack.c.l.b16 %v481
      %v875 = vunpack.c.h.b16 %v481
      %v876 = vunpack.c.l.b16 %v482
      %v877 = vunpack.c.h.b16 %v482
      %v878 = vunpack.c.l.b16 %v483
      %v879 = vunpack.c.h.b16 %v483
      %v880 = vpack.c.b16 %v850, %v844
      %v881 = vpack.c.b16 %v851, %v845
      %v882 = vpack.c.b16 %v852, %v846
      %v883 = vpack.c.b16 %v853, %v847
      %v884 = vpack.c.b16 %v854, %v848
      %v885 = vpack.c.b16 %v855, %v849
      %v886 = vpack.c.b16 %v862, %v856
      %v887 = vpack.c.b16 %v863, %v857
      %v888 = vpack.c.b16 %v864, %v858
      %v889 = vpack.c.b16 %v865, %v859
      %v890 = vpack.c.b16 %v866, %v860
      %v891 = vpack.c.b16 %v867, %v861
      %v892 = vpack.c.b16 %v874, %v868
      %v893 = vpack.c.b16 %v875, %v869
      %v894 = vpack.c.b16 %v876, %v870
      %v895 = vpack.c.b16 %v877, %v871
      %v896 = vpack.c.b16 %v878, %v872
      %v897 = vpack.c.b16 %v879, %v873
      %v1204 = vunpack.c.l.b16 %v502
      %v1205 = vunpack.c.h.b16 %v502
      %v1206 = vunpack.c.l.b16 %v503
      %v1207 = vunpack.c.h.b16 %v503
      %v1208 = vunpack.c.l.b16 %v504
      %v1209 = vunpack.c.h.b16 %v504
      %v1210 = vunpack.c.l.b16 %v505
      %v1211 = vunpack.c.h.b16 %v505
      %v1212 = vunpack.c.l.b16 %v506
      %v1213 = vunpack.c.h.b16 %v506
      %v1214 = vunpack.c.l.b16 %v507
      %v1215 = vunpack.c.h.b16 %v507
      %v1216 = vunpack.c.l.b16 %v508
      %v1217 = vunpack.c.h.b16 %v508
      %v1218 = vunpack.c.l.b16 %v509
      %v1219 = vunpack.c.h.b16 %v509
      %v1220 = vunpack.c.l.b16 %v510
      %v1221 = vunpack.c.h.b16 %v510
      %v1222 = vunpack.c.l.b16 %v511
      %v1223 = vunpack.c.h.b16 %v511
      %v1224 = vunpack.c.l.b16 %v512
      %v1225 = vunpack.c.h.b16 %v512
      %v1226 = vunpack.c.l.b16 %v513
      %v1227 = vunpack.c.h.b16 %v513
      %v1228 = vunpack.c.l.b16 %v514
      %v1229 = vunpack.c.h.b16 %v514
      %v1230 = vunpack.c.l.b16 %v515
      %v1231 = vunpack.c.h.b16 %v515
      %v1232 = vunpack.c.l.b16 %v516
      %v1233 = vunpack.c.h.b16 %v516
      %v1234 = vunpack.c.l.b16 %v517
      %v1235 = vunpack.c.h.b16 %v517
      %v1236 = vunpack.c.l.b16 %v518
      %v1237 = vunpack.c.h.b16 %v518
      %v1238 = vunpack.c.l.b16 %v519
      %v1239 = vunpack.c.h.b16 %v519
      %v1240 = vunpack.c.l.b16 %v520
      %v1241 = vunpack.c.h.b16 %v520
      %v1242 = vunpack.c.l.b16 %v521
      %v1243 = vunpack.c.h.b16 %v521
      %v1244 = vunpack.c.l.b16 %v522
      %v1245 = vunpack.c.h.b16 %v522
      %v1246 = vunpack.c.l.b16 %v523
      %v1247 = vunpack.c.h.b16 %v523
      %v1248 = vunpack.c.l.b16 %v524
      %v1249 = vunpack.c.h.b16 %v524
      %v1250 = vunpack.c.l.b16 %v525
      %v1251 = vunpack.c.h.b16 %v525
      %v1252 = vunpack.c.l.b16 %v526
      %v1253 = vunpack.c.h.b16 %v526
      %v1254 = vunpack.c.l.b16 %v527
      %v1255 = vunpack.c.h.b16 %v527
      %v1256 = vunpack.c.l.b16 %v528
      %v1257 = vunpack.c.h.b16 %v528
      %v1258 = vunpack.c.l.b16 %v529
      %v1259 = vunpack.c.h.b16 %v529
      %v1260 = vunpack.c.l.b16 %v530
      %v1261 = vunpack.c.h.b16 %v530
      %v1262 = vunpack.c.l.b16 %v531
      %v1263 = vunpack.c.h.b16 %v531
      %v1264 = vunpack.c.l.b16 %v532
      %v1265 = vunpack.c.h.b16 %v532
      %v1266 = vunpack.c.l.b16 %v533
      %v1267 = vunpack.c.h.b16 %v533
      %v1268 = vunpack.c.l.b16 %v534
      %v1269 = vunpack.c.h.b16 %v534
      %v1270 = vunpack.c.l.b16 %v535
      %v1271 = vunpack.c.h.b16 %v535
      %v1272 = vunpack.c.l.b16 %v536
      %v1273 = vunpack.c.h.b16 %v536
      %v1274 = vunpack.c.l.b16 %v537
      %v1275 = vunpack.c.h.b16 %v537
      %v1276 = vunpack.c.l.b16 %v538
      %v1277 = vunpack.c.h.b16 %v538
      %v1278 = vunpack.c.l.b16 %v539
      %v1279 = vunpack.c.h.b16 %v539
      %v1280 = vunpack.c.l.b16 %v540
      %v1281 = vunpack.c.h.b16 %v540
      %v1282 = vunpack.c.l.b16 %v541
      %v1283 = vunpack.c.h.b16 %v541
      %v1284 = vunpack.c.l.b16 %v542
      %v1285 = vunpack.c.h.b16 %v542
      %v1286 = vunpack.c.l.b16 %v543
      %v1287 = vunpack.c.h.b16 %v543
      %v1288 = vunpack.c.l.b16 %v544
      %v1289 = vunpack.c.h.b16 %v544
      %v1290 = vunpack.c.l.b16 %v545
      %v1291 = vunpack.c.h.b16 %v545
      %v1292 = vunpack.c.l.b16 %v546
      %v1293 = vunpack.c.h.b16 %v546
      %v1294 = vunpack.c.l.b16 %v547
      %v1295 = vunpack.c.h.b16 %v547
      %v1296 = vunpack.c.l.b16 %v548
      %v1297 = vunpack.c.h.b16 %v548
      %v1298 = vunpack.c.l.b16 %v549
      %v1299 = vunpack.c.h.b16 %v549
      %v1300 = vunpack.c.l.b16 %v550
      %v1301 = vunpack.c.h.b16 %v550
      %v1302 = vunpack.c.l.b16 %v551
      %v1303 = vunpack.c.h.b16 %v551
      %v1304 = vunpack.c.l.b16 %v552
      %v1305 = vunpack.c.h.b16 %v552
      %v1306 = vunpack.c.l.b16 %v553
      %v1307 = vunpack.c.h.b16 %v553
      %v1308 = vunpack.c.l.b16 %v554
      %v1309 = vunpack.c.h.b16 %v554
      %v1310 = vunpack.c.l.b16 %v555
      %v1311 = vunpack.c.h.b16 %v555
      %v1312 = vunpack.c.l.b16 %v556
      %v1313 = vunpack.c.h.b16 %v556
      %v1314 = vunpack.c.l.b16 %v557
      %v1315 = vunpack.c.h.b16 %v557
      %v1316 = vunpack.c.l.b16 %v558
      %v1317 = vunpack.c.h.b16 %v558
      %v1318 = vunpack.c.l.b16 %v559
      %v1319 = vunpack.c.h.b16 %v559
      %v1320 = vunpack.c.l.b16 %v560
      %v1321 = vunpack.c.h.b16 %v560
      %v1322 = vunpack.c.l.b16 %v561
      %v1323 = vunpack.c.h.b16 %v561
      %v1324 = vunpack.c.l.b16 %v562
      %v1325 = vunpack.c.h.b16 %v562
      %v1326 = vunpack.c.l.b16 %v563
      %v1327 = vunpack.c.h.b16 %v563
      %v1328 = vunpack.c.l.b16 %v564
      %v1329 = vunpack.c.h.b16 %v564
      %v1330 = vunpack.c.l.b16 %v565
      %v1331 = vunpack.c.h.b16 %v565
      %v1332 = vunpack.c.l.b16 %v566
      %v1333 = vunpack.c.h.b16 %v566
      %v1334 = vunpack.c.l.b16 %v567
      %v1335 = vunpack.c.h.b16 %v567
      %v1336 = vunpack.c.l.b16 %v568
      %v1337 = vunpack.c.h.b16 %v568
      %v1338 = vunpack.c.l.b16 %v569
      %v1339 = vunpack.c.h.b16 %v569
      %v1340 = vunpack.c.l.b16 %v570
      %v1341 = vunpack.c.h.b16 %v570
      %v1342 = vunpack.c.l.b16 %v571
      %v1343 = vunpack.c.h.b16 %v571
      %v1344 = vunpack.c.l.b16 %v572
      %v1345 = vunpack.c.h.b16 %v572
      %v1346 = vunpack.c.l.b16 %v573
      %v1347 = vunpack.c.h.b16 %v573
      %v1348 = vunpack.c.l.b16 %v574
      %v1349 = vunpack.c.h.b16 %v574
      %v1350 = vunpack.c.l.b16 %v575
      %v1351 = vunpack.c.h.b16 %v575
      %v1352 = vunpack.c.l.b16 %v576
      %v1353 = vunpack.c.h.b16 %v576
      %v1354 = vunpack.c.l.b16 %v577
      %v1355 = vunpack.c.h.b16 %v577
      %v1356 = vunpack.c.l.b16 %v578
      %v1357 = vunpack.c.h.b16 %v578
      %v1358 = vunpack.c.l.b16 %v579
      %v1359 = vunpack.c.h.b16 %v579
      %v1360 = vunpack.c.l.b16 %v580
      %v1361 = vunpack.c.h.b16 %v580
      %v1362 = vunpack.c.l.b16 %v581
      %v1363 = vunpack.c.h.b16 %v581
      %v1364 = vunpack.c.l.b16 %v582
      %v1365 = vunpack.c.h.b16 %v582
      %v1366 = vunpack.c.l.b16 %v583
      %v1367 = vunpack.c.h.b16 %v583
      %v1368 = vunpack.c.l.b16 %v584
      %v1369 = vunpack.c.h.b16 %v584
      %v1370 = vunpack.c.l.b16 %v585
      %v1371 = vunpack.c.h.b16 %v585
      %v1372 = vunpack.c.l.b16 %v586
      %v1373 = vunpack.c.h.b16 %v586
      %v1374 = vunpack.c.l.b16 %v587
      %v1375 = vunpack.c.h.b16 %v587
      %v1376 = vunpack.c.l.b16 %v588
      %v1377 = vunpack.c.h.b16 %v588
      %v1378 = vunpack.c.l.b16 %v589
      %v1379 = vunpack.c.h.b16 %v589
      %v1380 = vunpack.c.l.b16 %v590
      %v1381 = vunpack.c.h.b16 %v590
      %v1382 = vunpack.c.l.b16 %v591
      %v1383 = vunpack.c.h.b16 %v591
      %v1384 = vunpack.c.l.b16 %v592
      %v1385 = vunpack.c.h.b16 %v592
      %v1386 = vunpack.c.l.b16 %v593
      %v1387 = vunpack.c.h.b16 %v593
      %v1388 = vunpack.c.l.b16 %v594
      %v1389 = vunpack.c.h.b16 %v594
      %v1390 = vunpack.c.l.b16 %v595
      %v1391 = vunpack.c.h.b16 %v595
      %v1392 = vunpack.c.l.b16 %v596
      %v1393 = vunpack.c.h.b16 %v596
      %v1394 = vunpack.c.l.b16 %v597
      %v1395 = vunpack.c.h.b16 %v597
      %v1396 = vunpack.c.l.b16 %v598
      %v1397 = vunpack.c.h.b16 %v598
      %v1398 = vunpack.c.l.b16 %v599
      %v1399 = vunpack.c.h.b16 %v599
      %v1400 = vunpack.c.l.b16 %v600
      %v1401 = vunpack.c.h.b16 %v600
      %v1402 = vunpack.c.l.b16 %v601
      %v1403 = vunpack.c.h.b16 %v601
      %v1404 = vunpack.c.l.b16 %v602
      %v1405 = vunpack.c.h.b16 %v602
      %v1406 = vunpack.c.l.b16 %v603
      %v1407 = vunpack.c.h.b16 %v603
      %v1408 = vunpack.c.l.b16 %v604
      %v1409 = vunpack.c.h.b16 %v604
      %v1410 = vunpack.c.l.b16 %v605
      %v1411 = vunpack.c.h.b16 %v605
      %v1412 = vunpack.c.l.b16 %v606
      %v1413 = vunpack.c.h.b16 %v606
      %v1414 = vunpack.c.l.b16 %v607
      %v1415 = vunpack.c.h.b16 %v607
      %v1416 = vunpack.c.l.b16 %v608
      %v1417 = vunpack.c.h.b16 %v608
      %v1418 = vunpack.c.l.b16 %v609
      %v1419 = vunpack.c.h.b16 %v609
      %v1420 = vunpack.c.l.b16 %v610
      %v1421 = vunpack.c.h.b16 %v610
      %v1422 = vunpack.c.l.b16 %v611
      %v1423 = vunpack.c.h.b16 %v611
      %v1424 = vunpack.c.l.b16 %v612
      %v1425 = vunpack.c.h.b16 %v612
      %v1426 = vunpack.c.l.b16 %v613
      %v1427 = vunpack.c.h.b16 %v613
      %v1428 = vunpack.c.l.b16 %v614
      %v1429 = vunpack.c.h.b16 %v614
      %v1430 = vunpack.c.l.b16 %v615
      %v1431 = vunpack.c.h.b16 %v615
      %v1432 = vunpack.c.l.b16 %v616
      %v1433 = vunpack.c.h.b16 %v616
      %v1434 = vunpack.c.l.b16 %v617
      %v1435 = vunpack.c.h.b16 %v617
      %v1436 = vunpack.c.l.b16 %v618
      %v1437 = vunpack.c.h.b16 %v618
      %v1438 = vunpack.c.l.b16 %v619
      %v1439 = vunpack.c.h.b16 %v619
      %v1440 = vunpack.c.l.b16 %v620
      %v1441 = vunpack.c.h.b16 %v620
      %v1442 = vunpack.c.l.b16 %v621
      %v1443 = vunpack.c.h.b16 %v621
      %v1444 = vunpack.c.l.b16 %v622
      %v1445 = vunpack.c.h.b16 %v622
      %v1446 = vunpack.c.l.b16 %v623
      %v1447 = vunpack.c.h.b16 %v623
      %v1448 = vunpack.c.l.b16 %v624
      %v1449 = vunpack.c.h.b16 %v624
      %v1450 = vunpack.c.l.b16 %v625
      %v1451 = vunpack.c.h.b16 %v625
      %v1452 = vunpack.c.l.b16 %v626
      %v1453 = vunpack.c.h.b16 %v626
      %v1454 = vunpack.c.l.b16 %v627
      %v1455 = vunpack.c.h.b16 %v627
      %v1456 = vunpack.c.l.b16 %v628
      %v1457 = vunpack.c.h.b16 %v628
      %v1458 = vunpack.c.l.b16 %v629
      %v1459 = vunpack.c.h.b16 %v629
      %v1460 = vunpack.c.l.b16 %v630
      %v1461 = vunpack.c.h.b16 %v630
      %v1462 = vunpack.c.l.b16 %v631
      %v1463 = vunpack.c.h.b16 %v631
      %v1464 = vunpack.c.l.b16 %v632
      %v1465 = vunpack.c.h.b16 %v632
      %v1466 = vunpack.c.l.b16 %v633
      %v1467 = vunpack.c.h.b16 %v633
      %v1468 = vunpack.c.l.b16 %v634
      %v1469 = vunpack.c.h.b16 %v634
      %v1470 = vunpack.c.l.b16 %v635
      %v1471 = vunpack.c.h.b16 %v635
      %v1472 = vunpack.c.l.b16 %v636
      %v1473 = vunpack.c.h.b16 %v636
      %v1474 = vunpack.c.l.b16 %v637
      %v1475 = vunpack.c.h.b16 %v637
      %v1476 = vunpack.c.l.b16 %v638
      %v1477 = vunpack.c.h.b16 %v638
      %v1478 = vunpack.c.l.b16 %v639
      %v1479 = vunpack.c.h.b16 %v639
      %v1480 = vunpack.c.l.b16 %v640
      %v1481 = vunpack.c.h.b16 %v640
      %v1482 = vunpack.c.l.b16 %v641
      %v1483 = vunpack.c.h.b16 %v641
      %v1484 = vunpack.c.l.b16 %v642
      %v1485 = vunpack.c.h.b16 %v642
      %v1486 = vunpack.c.l.b16 %v643
      %v1487 = vunpack.c.h.b16 %v643
      %v1488 = vunpack.c.l.b16 %v644
      %v1489 = vunpack.c.h.b16 %v644
      %v1490 = vunpack.c.l.b16 %v645
      %v1491 = vunpack.c.h.b16 %v645
      %v1492 = vunpack.c.l.b16 %v646
      %v1493 = vunpack.c.h.b16 %v646
      %v1494 = vunpack.c.l.b16 %v647
      %v1495 = vunpack.c.h.b16 %v647
      %v1496 = vunpack.c.l.b16 %v648
      %v1497 = vunpack.c.h.b16 %v648
      %v1498 = vunpack.c.l.b16 %v649
      %v1499 = vunpack.c.h.b16 %v649
      %v1500 = vunpack.c.l.b16 %v650
      %v1501 = vunpack.c.h.b16 %v650
      %v1502 = vunpack.c.l.b16 %v651
      %v1503 = vunpack.c.h.b16 %v651
      %v1504 = vunpack.c.l.b16 %v652
      %v1505 = vunpack.c.h.b16 %v652
      %v1506 = vunpack.c.l.b16 %v653
      %v1507 = vunpack.c.h.b16 %v653
      %v1508 = vunpack.c.l.b16 %v654
      %v1509 = vunpack.c.h.b16 %v654
      %v1510 = vunpack.c.l.b16 %v655
      %v1511 = vunpack.c.h.b16 %v655
      %v1512 = vunpack.c.l.b16 %v656
      %v1513 = vunpack.c.h.b16 %v656
      %v1514 = vunpack.c.l.b16 %v657
      %v1515 = vunpack.c.h.b16 %v657
      %v1516 = vunpack.c.l.b16 %v658
      %v1517 = vunpack.c.h.b16 %v658
      %v1518 = vunpack.c.l.b16 %v659
      %v1519 = vunpack.c.h.b16 %v659
      %v1520 = vunpack.c.l.b16 %v660
      %v1521 = vunpack.c.h.b16 %v660
      %v1522 = vunpack.c.l.b16 %v661
      %v1523 = vunpack.c.h.b16 %v661
      %v1524 = vunpack.c.l.b16 %v662
      %v1525 = vunpack.c.h.b16 %v662
      %v1526 = vunpack.c.l.b16 %v663
      %v1527 = vunpack.c.h.b16 %v663
      %v1528 = vunpack.c.l.b16 %v664
      %v1529 = vunpack.c.h.b16 %v664
      %v1530 = vunpack.c.l.b16 %v665
      %v1531 = vunpack.c.h.b16 %v665
      %v1532 = vunpack.c.l.b16 %v666
      %v1533 = vunpack.c.h.b16 %v666
      %v1534 = vunpack.c.l.b16 %v667
      %v1535 = vunpack.c.h.b16 %v667
      %v1536 = vunpack.c.l.b16 %v668
      %v1537 = vunpack.c.h.b16 %v668
      %v1538 = vunpack.c.l.b16 %v669
      %v1539 = vunpack.c.h.b16 %v669
      %v1540 = vunpack.c.l.b16 %v670
      %v1541 = vunpack.c.h.b16 %v670
      %v1542 = vunpack.c.l.b16 %v671
      %v1543 = vunpack.c.h.b16 %v671
      %v1544 = vunpack.c.l.b16 %v672
      %v1545 = vunpack.c.h.b16 %v672
      %v1546 = vunpack.c.l.b16 %v673
      %v1547 = vunpack.c.h.b16 %v673
      %v1548 = vunpack.c.l.b16 %v674
      %v1549 = vunpack.c.h.b16 %v674
      %v1550 = vunpack.c.l.b16 %v675
      %v1551 = vunpack.c.h.b16 %v675
      %v1552 = vunpack.c.l.b16 %v676
      %v1553 = vunpack.c.h.b16 %v676
      %v1554 = vunpack.c.l.b16 %v677
      %v1555 = vunpack.c.h.b16 %v677
      %v1556 = vunpack.c.l.b16 %v678
      %v1557 = vunpack.c.h.b16 %v678
      %v1558 = vunpack.c.l.b16 %v679
      %v1559 = vunpack.c.h.b16 %v679
      %v1560 = vunpack.c.l.b16 %v680
      %v1561 = vunpack.c.h.b16 %v680
      %v1562 = vunpack.c.l.b16 %v681
      %v1563 = vunpack.c.h.b16 %v681
      %v1564 = vunpack.c.l.b16 %v682
      %v1565 = vunpack.c.h.b16 %v682
      %v1566 = vunpack.c.l.b16 %v683
      %v1567 = vunpack.c.h.b16 %v683
      %v1568 = vunpack.c.l.b16 %v684
      %v1569 = vunpack.c.h.b16 %v684
      %v1570 = vunpack.c.l.b16 %v685
      %v1571 = vunpack.c.h.b16 %v685
      %v1572 = vunpack.c.l.b16 %v686
      %v1573 = vunpack.c.h.b16 %v686
      %v1574 = vunpack.c.l.b16 %v687
      %v1575 = vunpack.c.h.b16 %v687
      %v1576 = vunpack.c.l.b16 %v688
      %v1577 = vunpack.c.h.b16 %v688
      %v1578 = vunpack.c.l.b16 %v689
      %v1579 = vunpack.c.h.b16 %v689
      %v1580 = vunpack.c.l.b16 %v690
      %v1581 = vunpack.c.h.b16 %v690
      %v1582 = vunpack.c.l.b16 %v691
      %v1583 = vunpack.c.h.b16 %v691
      %v1584 = vunpack.c.l.b16 %v692
      %v1585 = vunpack.c.h.b16 %v692
      %v1586 = vunpack.c.l.b16 %v693
      %v1587 = vunpack.c.h.b16 %v693
      %v1588 = vunpack.c.l.b16 %v694
      %v1589 = vunpack.c.h.b16 %v694
      %v1590 = vunpack.c.l.b16 %v695
      %v1591 = vunpack.c.h.b16 %v695
      %v1592 = vunpack.c.l.b16 %v696
      %v1593 = vunpack.c.h.b16 %v696
      %v1594 = vunpack.c.l.b16 %v697
      %v1595 = vunpack.c.h.b16 %v697
      %v1596 = vunpack.c.l.b16 %v698
      %v1597 = vunpack.c.h.b16 %v698
      %v1598 = vunpack.c.l.b16 %v699
      %v1599 = vunpack.c.h.b16 %v699
      %v1600 = vunpack.c.l.b16 %v700
      %v1601 = vunpack.c.h.b16 %v700
      %v1602 = vunpack.c.l.b16 %v701
      %v1603 = vunpack.c.h.b16 %v701
      %v1604 = vunpack.c.l.b16 %v702
      %v1605 = vunpack.c.h.b16 %v702
      %v1606 = vunpack.c.l.b16 %v703
      %v1607 = vunpack.c.h.b16 %v703
      %v1608 = vunpack.c.l.b16 %v704
      %v1609 = vunpack.c.h.b16 %v704
      %v1610 = vunpack.c.l.b16 %v705
      %v1611 = vunpack.c.h.b16 %v705
      %v1612 = vunpack.c.l.b16 %v706
      %v1613 = vunpack.c.h.b16 %v706
      %v1614 = vunpack.c.l.b16 %v707
      %v1615 = vunpack.c.h.b16 %v707
      %v1616 = vunpack.c.l.b16 %v708
      %v1617 = vunpack.c.h.b16 %v708
      %v1618 = vunpack.c.l.b16 %v709
      %v1619 = vunpack.c.h.b16 %v709
      %v1620 = vunpack.c.l.b16 %v710
      %v1621 = vunpack.c.h.b16 %v710
      %v1622 = vunpack.c.l.b16 %v711
      %v1623 = vunpack.c.h.b16 %v711
      %v1624 = vunpack.c.l.b16 %v712
      %v1625 = vunpack.c.h.b16 %v712
      %v1626 = vunpack.c.l.b16 %v713
      %v1627 = vunpack.c.h.b16 %v713
      %v1628 = vunpack.c.l.b16 %v714
      %v1629 = vunpack.c.h.b16 %v714
      %v1630 = vunpack.c.l.b16 %v715
      %v1631 = vunpack.c.h.b16 %v715
      %v1632 = vunpack.c.l.b16 %v716
      %v1633 = vunpack.c.h.b16 %v716
      %v1634 = vunpack.c.l.b16 %v717
      %v1635 = vunpack.c.h.b16 %v717
      %v1636 = vunpack.c.l.b16 %v718
      %v1637 = vunpack.c.h.b16 %v718
      %v1638 = vunpack.c.l.b16 %v719
      %v1639 = vunpack.c.h.b16 %v719
      %v1640 = vunpack.c.l.b16 %v720
      %v1641 = vunpack.c.h.b16 %v720
      %v1642 = vunpack.c.l.b16 %v721
      %v1643 = vunpack.c.h.b16 %v721
      %v1644 = vunpack.c.l.b16 %v722
      %v1645 = vunpack.c.h.b16 %v722
      %v1646 = vunpack.c.l.b16 %v723
      %v1647 = vunpack.c.h.b16 %v723
      %v1648 = vunpack.c.l.b16 %v724
      %v1649 = vunpack.c.h.b16 %v724
      %v1650 = vunpack.c.l.b16 %v725
      %v1651 = vunpack.c.h.b16 %v725
      %v1652 = vunpack.c.l.b16 %v726
      %v1653 = vunpack.c.h.b16 %v726
      %v1654 = vunpack.c.l.b16 %v727
      %v1655 = vunpack.c.h.b16 %v727
      %v1656 = vunpack.c.l.b16 %v728
      %v1657 = vunpack.c.h.b16 %v728
      %v1658 = vunpack.c.l.b16 %v729
      %v1659 = vunpack.c.h.b16 %v729
      %v1660 = vunpack.c.l.b16 %v730
      %v1661 = vunpack.c.h.b16 %v730
      %v1662 = vunpack.c.l.b16 %v731
      %v1663 = vunpack.c.h.b16 %v731
      %v1664 = vunpack.c.l.b16 %v732
      %v1665 = vunpack.c.h.b16 %v732
      %v1666 = vunpack.c.l.b16 %v733
      %v1667 = vunpack.c.h.b16 %v733
      %v1668 = vunpack.c.l.b16 %v734
      %v1669 = vunpack.c.h.b16 %v734
      %v1670 = vunpack.c.l.b16 %v735
      %v1671 = vunpack.c.h.b16 %v735
      %v1672 = vunpack.c.l.b16 %v736
      %v1673 = vunpack.c.h.b16 %v736
      %v1674 = vunpack.c.l.b16 %v737
      %v1675 = vunpack.c.h.b16 %v737
      %v1676 = vunpack.c.l.b16 %v738
      %v1677 = vunpack.c.h.b16 %v738
      %v1678 = vunpack.c.l.b16 %v739
      %v1679 = vunpack.c.h.b16 %v739
      %v1680 = vunpack.c.l.b16 %v740
      %v1681 = vunpack.c.h.b16 %v740
      %v1682 = vunpack.c.l.b16 %v741
      %v1683 = vunpack.c.h.b16 %v741
      %v1684 = vunpack.c.l.b16 %v742
      %v1685 = vunpack.c.h.b16 %v742
      %v1686 = vunpack.c.l.b16 %v743
      %v1687 = vunpack.c.h.b16 %v743
      %v1688 = vunpack.c.l.b16 %v744
      %v1689 = vunpack.c.h.b16 %v744
      %v1690 = vunpack.c.l.b16 %v745
      %v1691 = vunpack.c.h.b16 %v745
      %v1692 = vunpack.c.l.b16 %v746
      %v1693 = vunpack.c.h.b16 %v746
      %v1694 = vunpack.c.l.b16 %v747
      %v1695 = vunpack.c.h.b16 %v747
      %v1696 = vunpack.c.l.b16 %v748
      %v1697 = vunpack.c.h.b16 %v748
      %v1698 = vunpack.c.l.b16 %v749
      %v1699 = vunpack.c.h.b16 %v749
      %v1700 = vunpack.c.l.b16 %v750
      %v1701 = vunpack.c.h.b16 %v750
      %v1702 = vunpack.c.l.b16 %v751
      %v1703 = vunpack.c.h.b16 %v751
      %v1704 = vunpack.c.l.b16 %v752
      %v1705 = vunpack.c.h.b16 %v752
      %v1706 = vunpack.c.l.b16 %v753
      %v1707 = vunpack.c.h.b16 %v753
      %v1708 = vunpack.c.l.b16 %v754
      %v1709 = vunpack.c.h.b16 %v754
      %v1710 = vunpack.c.l.b16 %v755
      %v1711 = vunpack.c.h.b16 %v755
      %v1712 = vunpack.c.l.b16 %v756
      %v1713 = vunpack.c.h.b16 %v756
      %v1714 = vunpack.c.l.b16 %v757
      %v1715 = vunpack.c.h.b16 %v757
      %v1716 = vunpack.c.l.b16 %v758
      %v1717 = vunpack.c.h.b16 %v758
      %v1718 = vunpack.c.l.b16 %v759
      %v1719 = vunpack.c.h.b16 %v759
      %v1720 = vunpack.c.l.b16 %v760
      %v1721 = vunpack.c.h.b16 %v760
      %v1722 = vunpack.c.l.b16 %v761
      %v1723 = vunpack.c.h.b16 %v761
      %v1724 = vunpack.c.l.b16 %v762
      %v1725 = vunpack.c.h.b16 %v762
      %v1726 = vunpack.c.l.b16 %v763
      %v1727 = vunpack.c.h.b16 %v763
      %v1728 = vunpack.c.l.b16 %v764
      %v1729 = vunpack.c.h.b16 %v764
      %v1730 = vunpack.c.l.b16 %v765
      %v1731 = vunpack.c.h.b16 %v765
      %v1732 = vunpack.c.l.b16 %v766
      %v1733 = vunpack.c.h.b16 %v766
      %v1734 = vunpack.c.l.b16 %v767
      %v1735 = vunpack.c.h.b16 %v767
      %v1736 = vunpack.c.l.b16 %v768
      %v1737 = vunpack.c.h.b16 %v768
      %v1738 = vunpack.c.l.b16 %v769
      %v1739 = vunpack.c.h.b16 %v769
      %v1740 = vunpack.c.l.b16 %v770
      %v1741 = vunpack.c.h.b16 %v770
      %v1742 = vunpack.c.l.b16 %v771
      %v1743 = vunpack.c.h.b16 %v771
      %v1744 = vunpack.c.l.b16 %v772
      %v1745 = vunpack.c.h.b16 %v772
      %v1746 = vunpack.c.l.b16 %v773
      %v1747 = vunpack.c.h.b16 %v773
      %v1748 = vunpack.c.l.b16 %v774
      %v1749 = vunpack.c.h.b16 %v774
      %v1750 = vunpack.c.l.b16 %v775
      %v1751 = vunpack.c.h.b16 %v775
      %v1752 = vunpack.c.l.b16 %v776
      %v1753 = vunpack.c.h.b16 %v776
      %v1754 = vunpack.c.l.b16 %v777
      %v1755 = vunpack.c.h.b16 %v777
      %v1756 = vunpack.c.l.b16 %v778
      %v1757 = vunpack.c.h.b16 %v778
      %v1758 = vunpack.c.l.b16 %v779
      %v1759 = vunpack.c.h.b16 %v779
      %v1760 = vunpack.c.l.b16 %v780
      %v1761 = vunpack.c.h.b16 %v780
      %v1762 = vunpack.c.l.b16 %v781
      %v1763 = vunpack.c.h.b16 %v781
      %v1764 = vunpack.c.l.b16 %v782
      %v1765 = vunpack.c.h.b16 %v782
      %v1766 = vunpack.c.l.b16 %v783
      %v1767 = vunpack.c.h.b16 %v783
      %v1768 = vunpack.c.l.b16 %v784
      %v1769 = vunpack.c.h.b16 %v784
      %v1770 = vunpack.c.l.b16 %v785
      %v1771 = vunpack.c.h.b16 %v785
      %v1772 = vunpack.c.l.b16 %v786
      %v1773 = vunpack.c.h.b16 %v786
      %v1774 = vunpack.c.l.b16 %v787
      %v1775 = vunpack.c.h.b16 %v787
      %v1776 = vunpack.c.l.b16 %v788
      %v1777 = vunpack.c.h.b16 %v788
      %v1778 = vunpack.c.l.b16 %v789
      %v1779 = vunpack.c.h.b16 %v789
      %v1780 = vpack.c.b16 %v1210, %v1204
      %v1781 = vpack.c.b16 %v1211, %v1205
      %v1782 = vpack.c.b16 %v1212, %v1206
      %v1783 = vpack.c.b16 %v1213, %v1207
      %v1784 = vpack.c.b16 %v1214, %v1208
      %v1785 = vpack.c.b16 %v1215, %v1209
      %v1786 = vpack.c.b16 %v1222, %v1216
      %v1787 = vpack.c.b16 %v1223, %v1217
      %v1788 = vpack.c.b16 %v1224, %v1218
      %v1789 = vpack.c.b16 %v1225, %v1219
      %v1790 = vpack.c.b16 %v1226, %v1220
      %v1791 = vpack.c.b16 %v1227, %v1221
      %v1792 = vpack.c.b16 %v1234, %v1228
      %v1793 = vpack.c.b16 %v1235, %v1229
      %v1794 = vpack.c.b16 %v1236, %v1230
      %v1795 = vpack.c.b16 %v1237, %v1231
      %v1796 = vpack.c.b16 %v1238, %v1232
      %v1797 = vpack.c.b16 %v1239, %v1233
      %v1798 = vpack.c.b16 %v1246, %v1240
      %v1799 = vpack.c.b16 %v1247, %v1241
      %v1800 = vpack.c.b16 %v1248, %v1242
      %v1801 = vpack.c.b16 %v1249, %v1243
      %v1802 = vpack.c.b16 %v1250, %v1244
      %v1803 = vpack.c.b16 %v1251, %v1245
      %v1804 = vpack.c.b16 %v1258, %v1252
      %v1805 = vpack.c.b16 %v1259, %v1253
      %v1806 = vpack.c.b16 %v1260, %v1254
      %v1807 = vpack.c.b16 %v1261, %v1255
      %v1808 = vpack.c.b16 %v1262, %v1256
      %v1809 = vpack.c.b16 %v1263, %v1257
      %v1810 = vpack.c.b16 %v1270, %v1264
      %v1811 = vpack.c.b16 %v1271, %v1265
      %v1812 = vpack.c.b16 %v1272, %v1266
      %v1813 = vpack.c.b16 %v1273, %v1267
      %v1814 = vpack.c.b16 %v1274, %v1268
      %v1815 = vpack.c.b16 %v1275, %v1269
      %v1816 = vpack.c.b16 %v1282, %v1276
      %v1817 = vpack.c.b16 %v1283, %v1277
      %v1818 = vpack.c.b16 %v1284, %v1278
      %v1819 = vpack.c.b16 %v1285, %v1279
      %v1820 = vpack.c.b16 %v1286, %v1280
      %v1821 = vpack.c.b16 %v1287, %v1281
      %v1822 = vpack.c.b16 %v1294, %v1288
      %v1823 = vpack.c.b16 %v1295, %v1289
      %v1824 = vpack.c.b16 %v1296, %v1290
      %v1825 = vpack.c.b16 %v1297, %v1291
      %v1826 = vpack.c.b16 %v1298, %v1292
      %v1827 = vpack.c.b16 %v1299, %v1293
      %v1828 = vpack.c.b16 %v1306, %v1300
      %v1829 = vpack.c.b16 %v1307, %v1301
      %v1830 = vpack.c.b16 %v1308, %v1302
      %v1831 = vpack.c.b16 %v1309, %v1303
      %v1832 = vpack.c.b16 %v1310, %v1304
      %v1833 = vpack.c.b16 %v1311, %v1305
      %v1834 = vpack.c.b16 %v1318, %v1312
      %v1835 = vpack.c.b16 %v1319, %v1313
      %v1836 = vpack.c.b16 %v1320, %v1314
      %v1837 = vpack.c.b16 %v1321, %v1315
      %v1838 = vpack.c.b16 %v1322, %v1316
      %v1839 = vpack.c.b16 %v1323, %v1317
      %v1840 = vpack.c.b16 %v1330, %v1324
      %v1841 = vpack.c.b16 %v1331, %v1325
      %v1842 = vpack.c.b16 %v1332, %v1326
      %v1843 = vpack.c.b16 %v1333, %v1327
      %v1844 = vpack.c.b16 %v1334, %v1328
      %v1845 = vpack.c.b16 %v1335, %v1329
      %v1846 = vpack.c.b16 %v1342, %v1336
      %v1847 = vpack.c.b16 %v1343, %v1337
      %v1848 = vpack.c.b16 %v1344, %v1338
      %v1849 = vpack.c.b16 %v1345, %v1339
      %v1850 = vpack.c.b16 %v1346, %v1340
      %v1851 = vpack.c.b16 %v1347, %v1341
      %v1852 = vpack.c.b16 %v1354, %v1348
      %v1853 = vpack.c.b16 %v1355, %v1349
      %v1854 = vpack.c.b16 %v1356, %v1350
      %v1855 = vpack.c.b16 %v1357, %v1351
      %v1856 = vpack.c.b16 %v1358, %v1352
      %v1857 = vpack.c.b16 %v1359, %v1353
      %v1858 = vpack.c.b16 %v1366, %v1360
      %v1859 = vpack.c.b16 %v1367, %v1361
      %v1860 = vpack.c.b16 %v1368, %v1362
      %v1861 = vpack.c.b16 %v1369, %v1363
      %v1862 = vpack.c.b16 %v1370, %v1364
      %v1863 = vpack.c.b16 %v1371, %v1365
      %v1864 = vpack.c.b16 %v1378, %v1372
      %v1865 = vpack.c.b16 %v1379, %v1373
      %v1866 = vpack.c.b16 %v1380, %v1374
      %v1867 = vpack.c.b16 %v1381, %v1375
      %v1868 = vpack.c.b16 %v1382, %v1376
      %v1869 = vpack.c.b16 %v1383, %v1377
      %v1870 = vpack.c.b16 %v1390, %v1384
      %v1871 = vpack.c.b16 %v1391, %v1385
      %v1872 = vpack.c.b16 %v1392, %v1386
      %v1873 = vpack.c.b16 %v1393, %v1387
      %v1874 = vpack.c.b16 %v1394, %v1388
      %v1875 = vpack.c.b16 %v1395, %v1389
      %v1876 = vpack.c.b16 %v1402, %v1396
      %v1877 = vpack.c.b16 %v1403, %v1397
      %v1878 = vpack.c.b16 %v1404, %v1398
      %v1879 = vpack.c.b16 %v1405, %v1399
      %v1880 = vpack.c.b16 %v1406, %v1400
      %v1881 = vpack.c.b16 %v1407, %v1401
      %v1882 = vpack.c.b16 %v1414, %v1408
      %v1883 = vpack.c.b16 %v1415, %v1409
      %v1884 = vpack.c.b16 %v1416, %v1410
      %v1885 = vpack.c.b16 %v1417, %v1411
      %v1886 = vpack.c.b16 %v1418, %v1412
      %v1887 = vpack.c.b16 %v1419, %v1413
      %v1888 = vpack.c.b16 %v1426, %v1420
      %v1889 = vpack.c.b16 %v1427, %v1421
      %v1890 = vpack.c.b16 %v1428, %v1422
      %v1891 = vpack.c.b16 %v1429, %v1423
      %v1892 = vpack.c.b16 %v1430, %v1424
      %v1893 = vpack.c.b16 %v1431, %v1425
      %v1894 = vpack.c.b16 %v1438, %v1432
      %v1895 = vpack.c.b16 %v1439, %v1433
      %v1896 = vpack.c.b16 %v1440, %v1434
      %v1897 = vpack.c.b16 %v1441, %v1435
      %v1898 = vpack.c.b16 %v1442, %v1436
      %v1899 = vpack.c.b16 %v1443, %v1437
      %v1900 = vpack.c.b16 %v1450, %v1444
      %v1901 = vpack.c.b16 %v1451, %v1445
      %v1902 = vpack.c.b16 %v1452, %v1446
      %v1903 = vpack.c.b16 %v1453, %v1447
      %v1904 = vpack.c.b16 %v1454, %v1448
      %v1905 = vpack.c.b16 %v1455, %v1449
      %v1906 = vpack.c.b16 %v1462, %v1456
      %v1907 = vpack.c.b16 %v1463, %v1457
      %v1908 = vpack.c.b16 %v1464, %v1458
      %v1909 = vpack.c.b16 %v1465, %v1459
      %v1910 = vpack.c.b16 %v1466, %v1460
      %v1911 = vpack.c.b16 %v1467, %v1461
      %v1912 = vpack.c.b16 %v1474, %v1468
      %v1913 = vpack.c.b16 %v1475, %v1469
      %v1914 = vpack.c.b16 %v1476, %v1470
      %v1915 = vpack.c.b16 %v1477, %v1471
      %v1916 = vpack.c.b16 %v1478, %v1472
      %v1917 = vpack.c.b16 %v1479, %v1473
      %v1918 = vpack.c.b16 %v1486, %v1480
      %v1919 = vpack.c.b16 %v1487, %v1481
      %v1920 = vpack.c.b16 %v1488, %v1482
      %v1921 = vpack.c.b16 %v1489, %v1483
      %v1922 = vpack.c.b16 %v1490, %v1484
      %v1923 = vpack.c.b16 %v1491, %v1485
      %v1924 = vpack.c.b16 %v1498, %v1492
      %v1925 = vpack.c.b16 %v1499, %v1493
      %v1926 = vpack.c.b16 %v1500, %v1494
      %v1927 = vpack.c.b16 %v1501, %v1495
      %v1928 = vpack.c.b16 %v1502, %v1496
      %v1929 = vpack.c.b16 %v1503, %v1497
      %v1930 = vpack.c.b16 %v1510, %v1504
      %v1931 = vpack.c.b16 %v1511, %v1505
      %v1932 = vpack.c.b16 %v1512, %v1506
      %v1933 = vpack.c.b16 %v1513, %v1507
      %v1934 = vpack.c.b16 %v1514, %v1508
      %v1935 = vpack.c.b16 %v1515, %v1509
      %v1936 = vpack.c.b16 %v1522, %v1516
      %v1937 = vpack.c.b16 %v1523, %v1517
      %v1938 = vpack.c.b16 %v1524, %v1518
      %v1939 = vpack.c.b16 %v1525, %v1519
      %v1940 = vpack.c.b16 %v1526, %v1520
      %v1941 = vpack.c.b16 %v1527, %v1521
      %v1942 = vpack.c.b16 %v1534, %v1528
      %v1943 = vpack.c.b16 %v1535, %v1529
      %v1944 = vpack.c.b16 %v1536, %v1530
      %v1945 = vpack.c.b16 %v1537, %v1531
      %v1946 = vpack.c.b16 %v1538, %v1532
      %v1947 = vpack.c.b16 %v1539, %v1533
      %v1948 = vpack.c.b16 %v1546, %v1540
      %v1949 = vpack.c.b16 %v1547, %v1541
      %v1950 = vpack.c.b16 %v1548, %v1542
      %v1951 = vpack.c.b16 %v1549, %v1543
      %v1952 = vpack.c.b16 %v1550, %v1544
      %v1953 = vpack.c.b16 %v1551, %v1545
      %v1954 = vpack.c.b16 %v1558, %v1552
      %v1955 = vpack.c.b16 %v1559, %v1553
      %v1956 = vpack.c.b16 %v1560, %v1554
      %v1957 = vpack.c.b16 %v1561, %v1555
      %v1958 = vpack.c.b16 %v1562, %v1556
      %v1959 = vpack.c.b16 %v1563, %v1557
      %v1960 = vpack.c.b16 %v1570, %v1564
      %v1961 = vpack.c.b16 %v1571, %v1565
      %v1962 = vpack.c.b16 %v1572, %v1566
      %v1963 = vpack.c.b16 %v1573, %v1567
      %v1964 = vpack.c.b16 %v1574, %v1568
      %v1965 = vpack.c.b16 %v1575, %v1569
      %v1966 = vpack.c.b16 %v1582, %v1576
      %v1967 = vpack.c.b16 %v1583, %v1577
      %v1968 = vpack.c.b16 %v1584, %v1578
      %v1969 = vpack.c.b16 %v1585, %v1579
      %v1970 = vpack.c.b16 %v1586, %v1580
      %v1971 = vpack.c.b16 %v1587, %v1581
      %v1972 = vpack.c.b16 %v1594, %v1588
      %v1973 = vpack.c.b16 %v1595, %v1589
      %v1974 = vpack.c.b16 %v1596, %v1590
      %v1975 = vpack.c.b16 %v1597, %v1591
      %v1976 = vpack.c.b16 %v1598, %v1592
      %v1977 = vpack.c.b16 %v1599, %v1593
      %v1978 = vpack.c.b16 %v1606, %v1600
      %v1979 = vpack.c.b16 %v1607, %v1601
      %v1980 = vpack.c.b16 %v1608, %v1602
      %v1981 = vpack.c.b16 %v1609, %v1603
      %v1982 = vpack.c.b16 %v1610, %v1604
      %v1983 = vpack.c.b16 %v1611, %v1605
      %v1984 = vpack.c.b16 %v1618, %v1612
      %v1985 = vpack.c.b16 %v1619, %v1613
      %v1986 = vpack.c.b16 %v1620, %v1614
      %v1987 = vpack.c.b16 %v1621, %v1615
      %v1988 = vpack.c.b16 %v1622, %v1616
      %v1989 = vpack.c.b16 %v1623, %v1617
      %v1990 = vpack.c.b16 %v1630, %v1624
      %v1991 = vpack.c.b16 %v1631, %v1625
      %v1992 = vpack.c.b16 %v1632, %v1626
      %v1993 = vpack.c.b16 %v1633, %v1627
      %v1994 = vpack.c.b16 %v1634, %v1628
      %v1995 = vpack.c.b16 %v1635, %v1629
      %v1996 = vpack.c.b16 %v1642, %v1636
      %v1997 = vpack.c.b16 %v1643, %v1637
      %v1998 = vpack.c.b16 %v1644, %v1638
      %v1999 = vpack.c.b16 %v1645, %v1639
      %v2000 = vpack.c.b16 %v1646, %v1640
      %v2001 = vpack.c.b16 %v1647, %v1641
      %v2002 = vpack.c.b16 %v1654, %v1648
      %v2003 = vpack.c.b16 %v1655, %v1649
      %v2004 = vpack.c.b16 %v1656, %v1650
      %v2005 = vpack.c.b16 %v1657, %v1651
      %v2006 = vpack.c.b16 %v1658, %v1652
      %v2007 = vpack.c.b16 %v1659, %v1653
      %v2008 = vpack.c.b16 %v1666, %v1660
      %v2009 = vpack.c.b16 %v1667, %v1661
      %v2010 = vpack.c.b16 %v1668, %v1662
      %v2011 = vpack.c.b16 %v1669, %v1663
      %v2012 = vpack.c.b16 %v1670, %v1664
      %v2013 = vpack.c.b16 %v1671, %v1665
      %v2014 = vpack.c.b16 %v1678, %v1672
      %v2015 = vpack.c.b16 %v1679, %v1673
      %v2016 = vpack.c.b16 %v1680, %v1674
      %v2017 = vpack.c.b16 %v1681, %v1675
      %v2018 = vpack.c.b16 %v1682, %v1676
      %v2019 = vpack.c.b16 %v1683, %v1677
      %v2020 = vpack.c.b16 %v1690, %v1684
      %v2021 = vpack.c.b16 %v1691, %v1685
      %v2022 = vpack.c.b16 %v1692, %v1686
      %v2023 = vpack.c.b16 %v1693, %v1687
      %v2024 = vpack.c.b16 %v1694, %v1688
      %v2025 = vpack.c.b16 %v1695, %v1689
      %v2026 = vpack.c.b16 %v1702, %v1696
      %v2027 = vpack.c.b16 %v1703, %v1697
      %v2028 = vpack.c.b16 %v1704, %v1698
      %v2029 = vpack.c.b16 %v1705, %v1699
      %v2030 = vpack.c.b16 %v1706, %v1700
      %v2031 = vpack.c.b16 %v1707, %v1701
      %v2032 = vpack.c.b16 %v1714, %v1708
      %v2033 = vpack.c.b16 %v1715, %v1709
      %v2034 = vpack.c.b16 %v1716, %v1710
      %v2035 = vpack.c.b16 %v1717, %v1711
      %v2036 = vpack.c.b16 %v1718, %v1712
      %v2037 = vpack.c.b16 %v1719, %v1713
      %v2038 = vpack.c.b16 %v1726, %v1720
      %v2039 = vpack.c.b16 %v1727, %v1721
      %v2040 = vpack.c.b16 %v1728, %v1722
      %v2041 = vpack.c.b16 %v1729, %v1723
      %v2042 = vpack.c.b16 %v1730, %v1724
      %v2043 = vpack.c.b16 %v1731, %v1725
      %v2044 = vpack.c.b16 %v1738, %v1732
      %v2045 = vpack.c.b16 %v1739, %v1733
      %v2046 = vpack.c.b16 %v1740, %v1734
      %v2047 = vpack.c.b16 %v1741, %v1735
      %v2048 = vpack.c.b16 %v1742, %v1736
      %v2049 = vpack.c.b16 %v1743, %v1737
      %v2050 = vpack.c.b16 %v1750, %v1744
      %v2051 = vpack.c.b16 %v1751, %v1745
      %v2052 = vpack.c.b16 %v1752, %v1746
      %v2053 = vpack.c.b16 %v1753, %v1747
      %v2054 = vpack.c.b16 %v1754, %v1748
      %v2055 = vpack.c.b16 %v1755, %v1749
      %v2056 = vpack.c.b16 %v1762, %v1756
      %v2057 = vpack.c.b16 %v1763, %v1757
      %v2058 = vpack.c.b16 %v1764, %v1758
      %v2059 = vpack.c.b16 %v1765, %v1759
      %v2060 = vpack.c.b16 %v1766, %v1760
      %v2061 = vpack.c.b16 %v1767, %v1761
      %v2062 = vpack.c.b16 %v1774, %v1768
      %v2063 = vpack.c.b16 %v1775, %v1769
      %v2064 = vpack.c.b16 %v1776, %v1770
      %v2065 = vpack.c.b16 %v1777, %v1771
      %v2066 = vpack.c.b16 %v1778, %v1772
      %v2067 = vpack.c.b16 %v1779, %v1773
      %2356 = vmatpush.bf16.msra.mxu0 %v1822
      %2357 = vmatpush.bf16.msra.mxu0 %v1816
      %2358 = vmatpush.bf16.msra.mxu0 %v1810
      %2359 = vmatpush.bf16.msra.mxu0 %v1804
      %2360 = vmatpush.bf16.msra.mxu0 %v1798
      %2361 = vmatpush.bf16.msra.mxu0 %v1792
      %2362 = vmatpush.bf16.msra.mxu0 %v1786
      %2363 = vmatpush.bf16.msra.mxu0 %v1780
      %2364 = vmatmul.bf16.gmra.mxu0 %v880
      %v2365 = vpop.f32.mrf.mxu0
      %v2366 = vadd.f32 0.0, %v2365
      %v2367 = vpop.f32.mrf.mxu0
      %v2368 = vadd.f32 0.0, %v2367
      %2369 = vmatmul.bf16.gmra.mxu0 %v886
      %v2370 = vpop.f32.mrf.mxu0
      %v2371 = vadd.f32 0.0, %v2370
      %v2372 = vpop.f32.mrf.mxu0
      %v2373 = vadd.f32 0.0, %v2372
      %2374 = vmatmul.bf16.gmra.mxu0 %v892
      %v2375 = vpop.f32.mrf.mxu0
      %v2376 = vadd.f32 0.0, %v2375
      %v2377 = vpop.f32.mrf.mxu0
      %v2378 = vadd.f32 0.0, %v2377
      %2379 = vdwg.mxu0
      %2380 = vmatpush.bf16.msra.mxu0 %v1870
      %2381 = vmatpush.bf16.msra.mxu0 %v1864
      %2382 = vmatpush.bf16.msra.mxu0 %v1858
      %2383 = vmatpush.bf16.msra.mxu0 %v1852
      %2384 = vmatpush.bf16.msra.mxu0 %v1846
      %2385 = vmatpush.bf16.msra.mxu0 %v1840
      %2386 = vmatpush.bf16.msra.mxu0 %v1834
      %2387 = vmatpush.bf16.msra.mxu0 %v1828
      %2388 = vmatmul.bf16.gmra.mxu0 %v881
      %v2389 = vpop.f32.mrf.mxu0
      %v2390 = vadd.f32 %v2366, %v2389
      %v2391 = vpop.f32.mrf.mxu0
      %v2392 = vadd.f32 %v2368, %v2391
      %2393 = vmatmul.bf16.gmra.mxu0 %v887
      %v2394 = vpop.f32.mrf.mxu0
      %v2395 = vadd.f32 %v2371, %v2394
      %v2396 = vpop.f32.mrf.mxu0
      %v2397 = vadd.f32 %v2373, %v2396
      %2398 = vmatmul.bf16.gmra.mxu0 %v893
      %v2399 = vpop.f32.mrf.mxu0
      %v2400 = vadd.f32 %v2376, %v2399
      %v2401 = vpop.f32.mrf.mxu0
      %v2402 = vadd.f32 %v2378, %v2401
      %2403 = vdwg.mxu0
      %2404 = vmatpush.bf16.msra.mxu0 %v1918
      %2405 = vmatpush.bf16.msra.mxu0 %v1912
      %2406 = vmatpush.bf16.msra.mxu0 %v1906
      %2407 = vmatpush.bf16.msra.mxu0 %v1900
      %2408 = vmatpush.bf16.msra.mxu0 %v1894
      %2409 = vmatpush.bf16.msra.mxu0 %v1888
      %2410 = vmatpush.bf16.msra.mxu0 %v1882
      %2411 = vmatpush.bf16.msra.mxu0 %v1876
      %2412 = vmatmul.bf16.gmra.mxu0 %v882
      %v2413 = vpop.f32.mrf.mxu0
      %v2414 = vadd.f32 %v2390, %v2413
      %v2415 = vpop.f32.mrf.mxu0
      %v2416 = vadd.f32 %v2392, %v2415
      %2417 = vmatmul.bf16.gmra.mxu0 %v888
      %v2418 = vpop.f32.mrf.mxu0
      %v2419 = vadd.f32 %v2395, %v2418
      %v2420 = vpop.f32.mrf.mxu0
      %v2421 = vadd.f32 %v2397, %v2420
      %2422 = vmatmul.bf16.gmra.mxu0 %v894
      %v2423 = vpop.f32.mrf.mxu0
      %v2424 = vadd.f32 %v2400, %v2423
      %v2425 = vpop.f32.mrf.mxu0
      %v2426 = vadd.f32 %v2402, %v2425
      %2427 = vdwg.mxu0
      %2428 = vmatpush.bf16.msra.mxu0 %v1966
      %2429 = vmatpush.bf16.msra.mxu0 %v1960
      %2430 = vmatpush.bf16.msra.mxu0 %v1954
      %2431 = vmatpush.bf16.msra.mxu0 %v1948
      %2432 = vmatpush.bf16.msra.mxu0 %v1942
      %2433 = vmatpush.bf16.msra.mxu0 %v1936
      %2434 = vmatpush.bf16.msra.mxu0 %v1930
      %2435 = vmatpush.bf16.msra.mxu0 %v1924
      %2436 = vmatmul.bf16.gmra.mxu0 %v883
      %v2437 = vpop.f32.mrf.mxu0
      %v2438 = vadd.f32 %v2414, %v2437
      %v2439 = vpop.f32.mrf.mxu0
      %v2440 = vadd.f32 %v2416, %v2439
      %2441 = vmatmul.bf16.gmra.mxu0 %v889
      %v2442 = vpop.f32.mrf.mxu0
      %v2443 = vadd.f32 %v2419, %v2442
      %v2444 = vpop.f32.mrf.mxu0
      %v2445 = vadd.f32 %v2421, %v2444
      %2446 = vmatmul.bf16.gmra.mxu0 %v895
      %v2447 = vpop.f32.mrf.mxu0
      %v2448 = vadd.f32 %v2424, %v2447
      %v2449 = vpop.f32.mrf.mxu0
      %v2450 = vadd.f32 %v2426, %v2449
      %2451 = vdwg.mxu0
      %2452 = vmatpush.bf16.msra.mxu0 %v2014
      %2453 = vmatpush.bf16.msra.mxu0 %v2008
      %2454 = vmatpush.bf16.msra.mxu0 %v2002
      %2455 = vmatpush.bf16.msra.mxu0 %v1996
      %2456 = vmatpush.bf16.msra.mxu0 %v1990
      %2457 = vmatpush.bf16.msra.mxu0 %v1984
      %2458 = vmatpush.bf16.msra.mxu0 %v1978
      %2459 = vmatpush.bf16.msra.mxu0 %v1972
      %2460 = vmatmul.bf16.gmra.mxu0 %v884
      %v2461 = vpop.f32.mrf.mxu0
      %v2462 = vadd.f32 %v2438, %v2461
      %v2463 = vpop.f32.mrf.mxu0
      %v2464 = vadd.f32 %v2440, %v2463
      %2465 = vmatmul.bf16.gmra.mxu0 %v890
      %v2466 = vpop.f32.mrf.mxu0
      %v2467 = vadd.f32 %v2443, %v2466
      %v2468 = vpop.f32.mrf.mxu0
      %v2469 = vadd.f32 %v2445, %v2468
      %2470 = vmatmul.bf16.gmra.mxu0 %v896
      %v2471 = vpop.f32.mrf.mxu0
      %v2472 = vadd.f32 %v2448, %v2471
      %v2473 = vpop.f32.mrf.mxu0
      %v2474 = vadd.f32 %v2450, %v2473
      %2475 = vdwg.mxu0
      %2476 = vmatpush.bf16.msra.mxu0 %v2062
      %2477 = vmatpush.bf16.msra.mxu0 %v2056
      %2478 = vmatpush.bf16.msra.mxu0 %v2050
      %2479 = vmatpush.bf16.msra.mxu0 %v2044
      %2480 = vmatpush.bf16.msra.mxu0 %v2038
      %2481 = vmatpush.bf16.msra.mxu0 %v2032
      %2482 = vmatpush.bf16.msra.mxu0 %v2026
      %2483 = vmatpush.bf16.msra.mxu0 %v2020
      %2484 = vmatmul.bf16.gmra.mxu0 %v885
      %v2485 = vpop.f32.mrf.mxu0
      %v2486 = vadd.f32 %v2462, %v2485
      %v2487 = vpop.f32.mrf.mxu0
      %v2488 = vadd.f32 %v2464, %v2487
      %2489 = vmatmul.bf16.gmra.mxu0 %v891
      %v2490 = vpop.f32.mrf.mxu0
      %v2491 = vadd.f32 %v2467, %v2490
      %v2492 = vpop.f32.mrf.mxu0
      %v2493 = vadd.f32 %v2469, %v2492
      %2494 = vmatmul.bf16.gmra.mxu0 %v897
      %v2495 = vpop.f32.mrf.mxu0
      %v2496 = vadd.f32 %v2472, %v2495
      %v2497 = vpop.f32.mrf.mxu0
      %v2498 = vadd.f32 %v2474, %v2497
      %2499 = vdwg.mxu0
      %2500 = vmatpush.bf16.msra.mxu0 %v1823
      %2501 = vmatpush.bf16.msra.mxu0 %v1817
      %2502 = vmatpush.bf16.msra.mxu0 %v1811
      %2503 = vmatpush.bf16.msra.mxu0 %v1805
      %2504 = vmatpush.bf16.msra.mxu0 %v1799
      %2505 = vmatpush.bf16.msra.mxu0 %v1793
      %2506 = vmatpush.bf16.msra.mxu0 %v1787
      %2507 = vmatpush.bf16.msra.mxu0 %v1781
      %2508 = vmatmul.bf16.gmra.mxu0 %v880
      %v2509 = vpop.f32.mrf.mxu0
      %v2510 = vadd.f32 0.0, %v2509
      %v2511 = vpop.f32.mrf.mxu0
      %v2512 = vadd.f32 0.0, %v2511
      %2513 = vmatmul.bf16.gmra.mxu0 %v886
      %v2514 = vpop.f32.mrf.mxu0
      %v2515 = vadd.f32 0.0, %v2514
      %v2516 = vpop.f32.mrf.mxu0
      %v2517 = vadd.f32 0.0, %v2516
      %2518 = vmatmul.bf16.gmra.mxu0 %v892
      %v2519 = vpop.f32.mrf.mxu0
      %v2520 = vadd.f32 0.0, %v2519
      %v2521 = vpop.f32.mrf.mxu0
      %v2522 = vadd.f32 0.0, %v2521
      %2523 = vdwg.mxu0
      %2524 = vmatpush.bf16.msra.mxu0 %v1871
      %2525 = vmatpush.bf16.msra.mxu0 %v1865
      %2526 = vmatpush.bf16.msra.mxu0 %v1859
      %2527 = vmatpush.bf16.msra.mxu0 %v1853
      %2528 = vmatpush.bf16.msra.mxu0 %v1847
      %2529 = vmatpush.bf16.msra.mxu0 %v1841
      %2530 = vmatpush.bf16.msra.mxu0 %v1835
      %2531 = vmatpush.bf16.msra.mxu0 %v1829
      %2532 = vmatmul.bf16.gmra.mxu0 %v881
      %v2533 = vpop.f32.mrf.mxu0
      %v2534 = vadd.f32 %v2510, %v2533
      %v2535 = vpop.f32.mrf.mxu0
      %v2536 = vadd.f32 %v2512, %v2535
      %2537 = vmatmul.bf16.gmra.mxu0 %v887
      %v2538 = vpop.f32.mrf.mxu0
      %v2539 = vadd.f32 %v2515, %v2538
      %v2540 = vpop.f32.mrf.mxu0
      %v2541 = vadd.f32 %v2517, %v2540
      %2542 = vmatmul.bf16.gmra.mxu0 %v893
      %v2543 = vpop.f32.mrf.mxu0
      %v2544 = vadd.f32 %v2520, %v2543
      %v2545 = vpop.f32.mrf.mxu0
      %v2546 = vadd.f32 %v2522, %v2545
      %2547 = vdwg.mxu0
      %2548 = vmatpush.bf16.msra.mxu0 %v1919
      %2549 = vmatpush.bf16.msra.mxu0 %v1913
      %2550 = vmatpush.bf16.msra.mxu0 %v1907
      %2551 = vmatpush.bf16.msra.mxu0 %v1901
      %2552 = vmatpush.bf16.msra.mxu0 %v1895
      %2553 = vmatpush.bf16.msra.mxu0 %v1889
      %2554 = vmatpush.bf16.msra.mxu0 %v1883
      %2555 = vmatpush.bf16.msra.mxu0 %v1877
      %2556 = vmatmul.bf16.gmra.mxu0 %v882
      %v2557 = vpop.f32.mrf.mxu0
      %v2558 = vadd.f32 %v2534, %v2557
      %v2559 = vpop.f32.mrf.mxu0
      %v2560 = vadd.f32 %v2536, %v2559
      %2561 = vmatmul.bf16.gmra.mxu0 %v888
      %v2562 = vpop.f32.mrf.mxu0
      %v2563 = vadd.f32 %v2539, %v2562
      %v2564 = vpop.f32.mrf.mxu0
      %v2565 = vadd.f32 %v2541, %v2564
      %2566 = vmatmul.bf16.gmra.mxu0 %v894
      %v2567 = vpop.f32.mrf.mxu0
      %v2568 = vadd.f32 %v2544, %v2567
      %v2569 = vpop.f32.mrf.mxu0
      %v2570 = vadd.f32 %v2546, %v2569
      %2571 = vdwg.mxu0
      %2572 = vmatpush.bf16.msra.mxu0 %v1967
      %2573 = vmatpush.bf16.msra.mxu0 %v1961
      %2574 = vmatpush.bf16.msra.mxu0 %v1955
      %2575 = vmatpush.bf16.msra.mxu0 %v1949
      %2576 = vmatpush.bf16.msra.mxu0 %v1943
      %2577 = vmatpush.bf16.msra.mxu0 %v1937
      %2578 = vmatpush.bf16.msra.mxu0 %v1931
      %2579 = vmatpush.bf16.msra.mxu0 %v1925
      %2580 = vmatmul.bf16.gmra.mxu0 %v883
      %v2581 = vpop.f32.mrf.mxu0
      %v2582 = vadd.f32 %v2558, %v2581
      %v2583 = vpop.f32.mrf.mxu0
      %v2584 = vadd.f32 %v2560, %v2583
      %2585 = vmatmul.bf16.gmra.mxu0 %v889
      %v2586 = vpop.f32.mrf.mxu0
      %v2587 = vadd.f32 %v2563, %v2586
      %v2588 = vpop.f32.mrf.mxu0
      %v2589 = vadd.f32 %v2565, %v2588
      %2590 = vmatmul.bf16.gmra.mxu0 %v895
      %v2591 = vpop.f32.mrf.mxu0
      %v2592 = vadd.f32 %v2568, %v2591
      %v2593 = vpop.f32.mrf.mxu0
      %v2594 = vadd.f32 %v2570, %v2593
      %2595 = vdwg.mxu0
      %2596 = vmatpush.bf16.msra.mxu0 %v2015
      %2597 = vmatpush.bf16.msra.mxu0 %v2009
      %2598 = vmatpush.bf16.msra.mxu0 %v2003
      %2599 = vmatpush.bf16.msra.mxu0 %v1997
      %2600 = vmatpush.bf16.msra.mxu0 %v1991
      %2601 = vmatpush.bf16.msra.mxu0 %v1985
      %2602 = vmatpush.bf16.msra.mxu0 %v1979
      %2603 = vmatpush.bf16.msra.mxu0 %v1973
      %2604 = vmatmul.bf16.gmra.mxu0 %v884
      %v2605 = vpop.f32.mrf.mxu0
      %v2606 = vadd.f32 %v2582, %v2605
      %v2607 = vpop.f32.mrf.mxu0
      %v2608 = vadd.f32 %v2584, %v2607
      %2609 = vmatmul.bf16.gmra.mxu0 %v890
      %v2610 = vpop.f32.mrf.mxu0
      %v2611 = vadd.f32 %v2587, %v2610
      %v2612 = vpop.f32.mrf.mxu0
      %v2613 = vadd.f32 %v2589, %v2612
      %2614 = vmatmul.bf16.gmra.mxu0 %v896
      %v2615 = vpop.f32.mrf.mxu0
      %v2616 = vadd.f32 %v2592, %v2615
      %v2617 = vpop.f32.mrf.mxu0
      %v2618 = vadd.f32 %v2594, %v2617
      %2619 = vdwg.mxu0
      %2620 = vmatpush.bf16.msra.mxu0 %v2063
      %2621 = vmatpush.bf16.msra.mxu0 %v2057
      %2622 = vmatpush.bf16.msra.mxu0 %v2051
      %2623 = vmatpush.bf16.msra.mxu0 %v2045
      %2624 = vmatpush.bf16.msra.mxu0 %v2039
      %2625 = vmatpush.bf16.msra.mxu0 %v2033
      %2626 = vmatpush.bf16.msra.mxu0 %v2027
      %2627 = vmatpush.bf16.msra.mxu0 %v2021
      %2628 = vmatmul.bf16.gmra.mxu0 %v885
      %v2629 = vpop.f32.mrf.mxu0
      %v2630 = vadd.f32 %v2606, %v2629
      %v2631 = vpop.f32.mrf.mxu0
      %v2632 = vadd.f32 %v2608, %v2631
      %2633 = vmatmul.bf16.gmra.mxu0 %v891
      %v2634 = vpop.f32.mrf.mxu0
      %v2635 = vadd.f32 %v2611, %v2634
      %v2636 = vpop.f32.mrf.mxu0
      %v2637 = vadd.f32 %v2613, %v2636
      %2638 = vmatmul.bf16.gmra.mxu0 %v897
      %v2639 = vpop.f32.mrf.mxu0
      %v2640 = vadd.f32 %v2616, %v2639
      %v2641 = vpop.f32.mrf.mxu0
      %v2642 = vadd.f32 %v2618, %v2641
      %2643 = vdwg.mxu0
      %2644 = vmatpush.bf16.msra.mxu0 %v1824
      %2645 = vmatpush.bf16.msra.mxu0 %v1818
      %2646 = vmatpush.bf16.msra.mxu0 %v1812
      %2647 = vmatpush.bf16.msra.mxu0 %v1806
      %2648 = vmatpush.bf16.msra.mxu0 %v1800
      %2649 = vmatpush.bf16.msra.mxu0 %v1794
      %2650 = vmatpush.bf16.msra.mxu0 %v1788
      %2651 = vmatpush.bf16.msra.mxu0 %v1782
      %2652 = vmatmul.bf16.gmra.mxu0 %v880
      %v2653 = vpop.f32.mrf.mxu0
      %v2654 = vadd.f32 0.0, %v2653
      %v2655 = vpop.f32.mrf.mxu0
      %v2656 = vadd.f32 0.0, %v2655
      %2657 = vmatmul.bf16.gmra.mxu0 %v886
      %v2658 = vpop.f32.mrf.mxu0
      %v2659 = vadd.f32 0.0, %v2658
      %v2660 = vpop.f32.mrf.mxu0
      %v2661 = vadd.f32 0.0, %v2660
      %2662 = vmatmul.bf16.gmra.mxu0 %v892
      %v2663 = vpop.f32.mrf.mxu0
      %v2664 = vadd.f32 0.0, %v2663
      %v2665 = vpop.f32.mrf.mxu0
      %v2666 = vadd.f32 0.0, %v2665
      %2667 = vdwg.mxu0
      %2668 = vmatpush.bf16.msra.mxu0 %v1872
      %2669 = vmatpush.bf16.msra.mxu0 %v1866
      %2670 = vmatpush.bf16.msra.mxu0 %v1860
      %2671 = vmatpush.bf16.msra.mxu0 %v1854
      %2672 = vmatpush.bf16.msra.mxu0 %v1848
      %2673 = vmatpush.bf16.msra.mxu0 %v1842
      %2674 = vmatpush.bf16.msra.mxu0 %v1836
      %2675 = vmatpush.bf16.msra.mxu0 %v1830
      %2676 = vmatmul.bf16.gmra.mxu0 %v881
      %v2677 = vpop.f32.mrf.mxu0
      %v2678 = vadd.f32 %v2654, %v2677
      %v2679 = vpop.f32.mrf.mxu0
      %v2680 = vadd.f32 %v2656, %v2679
      %2681 = vmatmul.bf16.gmra.mxu0 %v887
      %v2682 = vpop.f32.mrf.mxu0
      %v2683 = vadd.f32 %v2659, %v2682
      %v2684 = vpop.f32.mrf.mxu0
      %v2685 = vadd.f32 %v2661, %v2684
      %2686 = vmatmul.bf16.gmra.mxu0 %v893
      %v2687 = vpop.f32.mrf.mxu0
      %v2688 = vadd.f32 %v2664, %v2687
      %v2689 = vpop.f32.mrf.mxu0
      %v2690 = vadd.f32 %v2666, %v2689
      %2691 = vdwg.mxu0
      %2692 = vmatpush.bf16.msra.mxu0 %v1920
      %2693 = vmatpush.bf16.msra.mxu0 %v1914
      %2694 = vmatpush.bf16.msra.mxu0 %v1908
      %2695 = vmatpush.bf16.msra.mxu0 %v1902
      %2696 = vmatpush.bf16.msra.mxu0 %v1896
      %2697 = vmatpush.bf16.msra.mxu0 %v1890
      %2698 = vmatpush.bf16.msra.mxu0 %v1884
      %2699 = vmatpush.bf16.msra.mxu0 %v1878
      %2700 = vmatmul.bf16.gmra.mxu0 %v882
      %v2701 = vpop.f32.mrf.mxu0
      %v2702 = vadd.f32 %v2678, %v2701
      %v2703 = vpop.f32.mrf.mxu0
      %v2704 = vadd.f32 %v2680, %v2703
      %2705 = vmatmul.bf16.gmra.mxu0 %v888
      %v2706 = vpop.f32.mrf.mxu0
      %v2707 = vadd.f32 %v2683, %v2706
      %v2708 = vpop.f32.mrf.mxu0
      %v2709 = vadd.f32 %v2685, %v2708
      %2710 = vmatmul.bf16.gmra.mxu0 %v894
      %v2711 = vpop.f32.mrf.mxu0
      %v2712 = vadd.f32 %v2688, %v2711
      %v2713 = vpop.f32.mrf.mxu0
      %v2714 = vadd.f32 %v2690, %v2713
      %2715 = vdwg.mxu0
      %2716 = vmatpush.bf16.msra.mxu0 %v1968
      %2717 = vmatpush.bf16.msra.mxu0 %v1962
      %2718 = vmatpush.bf16.msra.mxu0 %v1956
      %2719 = vmatpush.bf16.msra.mxu0 %v1950
      %2720 = vmatpush.bf16.msra.mxu0 %v1944
      %2721 = vmatpush.bf16.msra.mxu0 %v1938
      %2722 = vmatpush.bf16.msra.mxu0 %v1932
      %2723 = vmatpush.bf16.msra.mxu0 %v1926
      %2724 = vmatmul.bf16.gmra.mxu0 %v883
      %v2725 = vpop.f32.mrf.mxu0
      %v2726 = vadd.f32 %v2702, %v2725
      %v2727 = vpop.f32.mrf.mxu0
      %v2728 = vadd.f32 %v2704, %v2727
      %2729 = vmatmul.bf16.gmra.mxu0 %v889
      %v2730 = vpop.f32.mrf.mxu0
      %v2731 = vadd.f32 %v2707, %v2730
      %v2732 = vpop.f32.mrf.mxu0
      %v2733 = vadd.f32 %v2709, %v2732
      %2734 = vmatmul.bf16.gmra.mxu0 %v895
      %v2735 = vpop.f32.mrf.mxu0
      %v2736 = vadd.f32 %v2712, %v2735
      %v2737 = vpop.f32.mrf.mxu0
      %v2738 = vadd.f32 %v2714, %v2737
      %2739 = vdwg.mxu0
      %2740 = vmatpush.bf16.msra.mxu0 %v2016
      %2741 = vmatpush.bf16.msra.mxu0 %v2010
      %2742 = vmatpush.bf16.msra.mxu0 %v2004
      %2743 = vmatpush.bf16.msra.mxu0 %v1998
      %2744 = vmatpush.bf16.msra.mxu0 %v1992
      %2745 = vmatpush.bf16.msra.mxu0 %v1986
      %2746 = vmatpush.bf16.msra.mxu0 %v1980
      %2747 = vmatpush.bf16.msra.mxu0 %v1974
      %2748 = vmatmul.bf16.gmra.mxu0 %v884
      %v2749 = vpop.f32.mrf.mxu0
      %v2750 = vadd.f32 %v2726, %v2749
      %v2751 = vpop.f32.mrf.mxu0
      %v2752 = vadd.f32 %v2728, %v2751
      %2753 = vmatmul.bf16.gmra.mxu0 %v890
      %v2754 = vpop.f32.mrf.mxu0
      %v2755 = vadd.f32 %v2731, %v2754
      %v2756 = vpop.f32.mrf.mxu0
      %v2757 = vadd.f32 %v2733, %v2756
      %2758 = vmatmul.bf16.gmra.mxu0 %v896
      %v2759 = vpop.f32.mrf.mxu0
      %v2760 = vadd.f32 %v2736, %v2759
      %v2761 = vpop.f32.mrf.mxu0
      %v2762 = vadd.f32 %v2738, %v2761
      %2763 = vdwg.mxu0
      %2764 = vmatpush.bf16.msra.mxu0 %v2064
      %2765 = vmatpush.bf16.msra.mxu0 %v2058
      %2766 = vmatpush.bf16.msra.mxu0 %v2052
      %2767 = vmatpush.bf16.msra.mxu0 %v2046
      %2768 = vmatpush.bf16.msra.mxu0 %v2040
      %2769 = vmatpush.bf16.msra.mxu0 %v2034
      %2770 = vmatpush.bf16.msra.mxu0 %v2028
      %2771 = vmatpush.bf16.msra.mxu0 %v2022
      %2772 = vmatmul.bf16.gmra.mxu0 %v885
      %v2773 = vpop.f32.mrf.mxu0
      %v2774 = vadd.f32 %v2750, %v2773
      %v2775 = vpop.f32.mrf.mxu0
      %v2776 = vadd.f32 %v2752, %v2775
      %2777 = vmatmul.bf16.gmra.mxu0 %v891
      %v2778 = vpop.f32.mrf.mxu0
      %v2779 = vadd.f32 %v2755, %v2778
      %v2780 = vpop.f32.mrf.mxu0
      %v2781 = vadd.f32 %v2757, %v2780
      %2782 = vmatmul.bf16.gmra.mxu0 %v897
      %v2783 = vpop.f32.mrf.mxu0
      %v2784 = vadd.f32 %v2760, %v2783
      %v2785 = vpop.f32.mrf.mxu0
      %v2786 = vadd.f32 %v2762, %v2785
      %2787 = vdwg.mxu0
      %2788 = vmatpush.bf16.msra.mxu0 %v1825
      %2789 = vmatpush.bf16.msra.mxu0 %v1819
      %2790 = vmatpush.bf16.msra.mxu0 %v1813
      %2791 = vmatpush.bf16.msra.mxu0 %v1807
      %2792 = vmatpush.bf16.msra.mxu0 %v1801
      %2793 = vmatpush.bf16.msra.mxu0 %v1795
      %2794 = vmatpush.bf16.msra.mxu0 %v1789
      %2795 = vmatpush.bf16.msra.mxu0 %v1783
      %2796 = vmatmul.bf16.gmra.mxu0 %v880
      %v2797 = vpop.f32.mrf.mxu0
      %v2798 = vadd.f32 0.0, %v2797
      %v2799 = vpop.f32.mrf.mxu0
      %v2800 = vadd.f32 0.0, %v2799
      %2801 = vmatmul.bf16.gmra.mxu0 %v886
      %v2802 = vpop.f32.mrf.mxu0
      %v2803 = vadd.f32 0.0, %v2802
      %v2804 = vpop.f32.mrf.mxu0
      %v2805 = vadd.f32 0.0, %v2804
      %2806 = vmatmul.bf16.gmra.mxu0 %v892
      %v2807 = vpop.f32.mrf.mxu0
      %v2808 = vadd.f32 0.0, %v2807
      %v2809 = vpop.f32.mrf.mxu0
      %v2810 = vadd.f32 0.0, %v2809
      %2811 = vdwg.mxu0
      %2812 = vmatpush.bf16.msra.mxu0 %v1873
      %2813 = vmatpush.bf16.msra.mxu0 %v1867
      %2814 = vmatpush.bf16.msra.mxu0 %v1861
      %2815 = vmatpush.bf16.msra.mxu0 %v1855
      %2816 = vmatpush.bf16.msra.mxu0 %v1849
      %2817 = vmatpush.bf16.msra.mxu0 %v1843
      %2818 = vmatpush.bf16.msra.mxu0 %v1837
      %2819 = vmatpush.bf16.msra.mxu0 %v1831
      %2820 = vmatmul.bf16.gmra.mxu0 %v881
      %v2821 = vpop.f32.mrf.mxu0
      %v2822 = vadd.f32 %v2798, %v2821
      %v2823 = vpop.f32.mrf.mxu0
      %v2824 = vadd.f32 %v2800, %v2823
      %2825 = vmatmul.bf16.gmra.mxu0 %v887
      %v2826 = vpop.f32.mrf.mxu0
      %v2827 = vadd.f32 %v2803, %v2826
      %v2828 = vpop.f32.mrf.mxu0
      %v2829 = vadd.f32 %v2805, %v2828
      %2830 = vmatmul.bf16.gmra.mxu0 %v893
      %v2831 = vpop.f32.mrf.mxu0
      %v2832 = vadd.f32 %v2808, %v2831
      %v2833 = vpop.f32.mrf.mxu0
      %v2834 = vadd.f32 %v2810, %v2833
      %2835 = vdwg.mxu0
      %2836 = vmatpush.bf16.msra.mxu0 %v1921
      %2837 = vmatpush.bf16.msra.mxu0 %v1915
      %2838 = vmatpush.bf16.msra.mxu0 %v1909
      %2839 = vmatpush.bf16.msra.mxu0 %v1903
      %2840 = vmatpush.bf16.msra.mxu0 %v1897
      %2841 = vmatpush.bf16.msra.mxu0 %v1891
      %2842 = vmatpush.bf16.msra.mxu0 %v1885
      %2843 = vmatpush.bf16.msra.mxu0 %v1879
      %2844 = vmatmul.bf16.gmra.mxu0 %v882
      %v2845 = vpop.f32.mrf.mxu0
      %v2846 = vadd.f32 %v2822, %v2845
      %v2847 = vpop.f32.mrf.mxu0
      %v2848 = vadd.f32 %v2824, %v2847
      %2849 = vmatmul.bf16.gmra.mxu0 %v888
      %v2850 = vpop.f32.mrf.mxu0
      %v2851 = vadd.f32 %v2827, %v2850
      %v2852 = vpop.f32.mrf.mxu0
      %v2853 = vadd.f32 %v2829, %v2852
      %2854 = vmatmul.bf16.gmra.mxu0 %v894
      %v2855 = vpop.f32.mrf.mxu0
      %v2856 = vadd.f32 %v2832, %v2855
      %v2857 = vpop.f32.mrf.mxu0
      %v2858 = vadd.f32 %v2834, %v2857
      %2859 = vdwg.mxu0
      %2860 = vmatpush.bf16.msra.mxu0 %v1969
      %2861 = vmatpush.bf16.msra.mxu0 %v1963
      %2862 = vmatpush.bf16.msra.mxu0 %v1957
      %2863 = vmatpush.bf16.msra.mxu0 %v1951
      %2864 = vmatpush.bf16.msra.mxu0 %v1945
      %2865 = vmatpush.bf16.msra.mxu0 %v1939
      %2866 = vmatpush.bf16.msra.mxu0 %v1933
      %2867 = vmatpush.bf16.msra.mxu0 %v1927
      %2868 = vmatmul.bf16.gmra.mxu0 %v883
      %v2869 = vpop.f32.mrf.mxu0
      %v2870 = vadd.f32 %v2846, %v2869
      %v2871 = vpop.f32.mrf.mxu0
      %v2872 = vadd.f32 %v2848, %v2871
      %2873 = vmatmul.bf16.gmra.mxu0 %v889
      %v2874 = vpop.f32.mrf.mxu0
      %v2875 = vadd.f32 %v2851, %v2874
      %v2876 = vpop.f32.mrf.mxu0
      %v2877 = vadd.f32 %v2853, %v2876
      %2878 = vmatmul.bf16.gmra.mxu0 %v895
      %v2879 = vpop.f32.mrf.mxu0
      %v2880 = vadd.f32 %v2856, %v2879
      %v2881 = vpop.f32.mrf.mxu0
      %v2882 = vadd.f32 %v2858, %v2881
      %2883 = vdwg.mxu0
      %2884 = vmatpush.bf16.msra.mxu0 %v2017
      %2885 = vmatpush.bf16.msra.mxu0 %v2011
      %2886 = vmatpush.bf16.msra.mxu0 %v2005
      %2887 = vmatpush.bf16.msra.mxu0 %v1999
      %2888 = vmatpush.bf16.msra.mxu0 %v1993
      %2889 = vmatpush.bf16.msra.mxu0 %v1987
      %2890 = vmatpush.bf16.msra.mxu0 %v1981
      %2891 = vmatpush.bf16.msra.mxu0 %v1975
      %2892 = vmatmul.bf16.gmra.mxu0 %v884
      %v2893 = vpop.f32.mrf.mxu0
      %v2894 = vadd.f32 %v2870, %v2893
      %v2895 = vpop.f32.mrf.mxu0
      %v2896 = vadd.f32 %v2872, %v2895
      %2897 = vmatmul.bf16.gmra.mxu0 %v890
      %v2898 = vpop.f32.mrf.mxu0
      %v2899 = vadd.f32 %v2875, %v2898
      %v2900 = vpop.f32.mrf.mxu0
      %v2901 = vadd.f32 %v2877, %v2900
      %2902 = vmatmul.bf16.gmra.mxu0 %v896
      %v2903 = vpop.f32.mrf.mxu0
      %v2904 = vadd.f32 %v2880, %v2903
      %v2905 = vpop.f32.mrf.mxu0
      %v2906 = vadd.f32 %v2882, %v2905
      %2907 = vdwg.mxu0
      %2908 = vmatpush.bf16.msra.mxu0 %v2065
      %2909 = vmatpush.bf16.msra.mxu0 %v2059
      %2910 = vmatpush.bf16.msra.mxu0 %v2053
      %2911 = vmatpush.bf16.msra.mxu0 %v2047
      %2912 = vmatpush.bf16.msra.mxu0 %v2041
      %2913 = vmatpush.bf16.msra.mxu0 %v2035
      %2914 = vmatpush.bf16.msra.mxu0 %v2029
      %2915 = vmatpush.bf16.msra.mxu0 %v2023
      %2916 = vmatmul.bf16.gmra.mxu0 %v885
      %v2917 = vpop.f32.mrf.mxu0
      %v2918 = vadd.f32 %v2894, %v2917
      %v2919 = vpop.f32.mrf.mxu0
      %v2920 = vadd.f32 %v2896, %v2919
      %2921 = vmatmul.bf16.gmra.mxu0 %v891
      %v2922 = vpop.f32.mrf.mxu0
      %v2923 = vadd.f32 %v2899, %v2922
      %v2924 = vpop.f32.mrf.mxu0
      %v2925 = vadd.f32 %v2901, %v2924
      %2926 = vmatmul.bf16.gmra.mxu0 %v897
      %v2927 = vpop.f32.mrf.mxu0
      %v2928 = vadd.f32 %v2904, %v2927
      %v2929 = vpop.f32.mrf.mxu0
      %v2930 = vadd.f32 %v2906, %v2929
      %2931 = vdwg.mxu0
      %2932 = vmatpush.bf16.msra.mxu0 %v1826
      %2933 = vmatpush.bf16.msra.mxu0 %v1820
      %2934 = vmatpush.bf16.msra.mxu0 %v1814
      %2935 = vmatpush.bf16.msra.mxu0 %v1808
      %2936 = vmatpush.bf16.msra.mxu0 %v1802
      %2937 = vmatpush.bf16.msra.mxu0 %v1796
      %2938 = vmatpush.bf16.msra.mxu0 %v1790
      %2939 = vmatpush.bf16.msra.mxu0 %v1784
      %2940 = vmatmul.bf16.gmra.mxu0 %v880
      %v2941 = vpop.f32.mrf.mxu0
      %v2942 = vadd.f32 0.0, %v2941
      %v2943 = vpop.f32.mrf.mxu0
      %v2944 = vadd.f32 0.0, %v2943
      %2945 = vmatmul.bf16.gmra.mxu0 %v886
      %v2946 = vpop.f32.mrf.mxu0
      %v2947 = vadd.f32 0.0, %v2946
      %v2948 = vpop.f32.mrf.mxu0
      %v2949 = vadd.f32 0.0, %v2948
      %2950 = vmatmul.bf16.gmra.mxu0 %v892
      %v2951 = vpop.f32.mrf.mxu0
      %v2952 = vadd.f32 0.0, %v2951
      %v2953 = vpop.f32.mrf.mxu0
      %v2954 = vadd.f32 0.0, %v2953
      %2955 = vdwg.mxu0
      %2956 = vmatpush.bf16.msra.mxu0 %v1874
      %2957 = vmatpush.bf16.msra.mxu0 %v1868
      %2958 = vmatpush.bf16.msra.mxu0 %v1862
      %2959 = vmatpush.bf16.msra.mxu0 %v1856
      %2960 = vmatpush.bf16.msra.mxu0 %v1850
      %2961 = vmatpush.bf16.msra.mxu0 %v1844
      %2962 = vmatpush.bf16.msra.mxu0 %v1838
      %2963 = vmatpush.bf16.msra.mxu0 %v1832
      %2964 = vmatmul.bf16.gmra.mxu0 %v881
      %v2965 = vpop.f32.mrf.mxu0
      %v2966 = vadd.f32 %v2942, %v2965
      %v2967 = vpop.f32.mrf.mxu0
      %v2968 = vadd.f32 %v2944, %v2967
      %2969 = vmatmul.bf16.gmra.mxu0 %v887
      %v2970 = vpop.f32.mrf.mxu0
      %v2971 = vadd.f32 %v2947, %v2970
      %v2972 = vpop.f32.mrf.mxu0
      %v2973 = vadd.f32 %v2949, %v2972
      %2974 = vmatmul.bf16.gmra.mxu0 %v893
      %v2975 = vpop.f32.mrf.mxu0
      %v2976 = vadd.f32 %v2952, %v2975
      %v2977 = vpop.f32.mrf.mxu0
      %v2978 = vadd.f32 %v2954, %v2977
      %2979 = vdwg.mxu0
      %2980 = vmatpush.bf16.msra.mxu0 %v1922
      %2981 = vmatpush.bf16.msra.mxu0 %v1916
      %2982 = vmatpush.bf16.msra.mxu0 %v1910
      %2983 = vmatpush.bf16.msra.mxu0 %v1904
      %2984 = vmatpush.bf16.msra.mxu0 %v1898
      %2985 = vmatpush.bf16.msra.mxu0 %v1892
      %2986 = vmatpush.bf16.msra.mxu0 %v1886
      %2987 = vmatpush.bf16.msra.mxu0 %v1880
      %2988 = vmatmul.bf16.gmra.mxu0 %v882
      %v2989 = vpop.f32.mrf.mxu0
      %v2990 = vadd.f32 %v2966, %v2989
      %v2991 = vpop.f32.mrf.mxu0
      %v2992 = vadd.f32 %v2968, %v2991
      %2993 = vmatmul.bf16.gmra.mxu0 %v888
      %v2994 = vpop.f32.mrf.mxu0
      %v2995 = vadd.f32 %v2971, %v2994
      %v2996 = vpop.f32.mrf.mxu0
      %v2997 = vadd.f32 %v2973, %v2996
      %2998 = vmatmul.bf16.gmra.mxu0 %v894
      %v2999 = vpop.f32.mrf.mxu0
      %v3000 = vadd.f32 %v2976, %v2999
      %v3001 = vpop.f32.mrf.mxu0
      %v3002 = vadd.f32 %v2978, %v3001
      %3003 = vdwg.mxu0
      %3004 = vmatpush.bf16.msra.mxu0 %v1970
      %3005 = vmatpush.bf16.msra.mxu0 %v1964
      %3006 = vmatpush.bf16.msra.mxu0 %v1958
      %3007 = vmatpush.bf16.msra.mxu0 %v1952
      %3008 = vmatpush.bf16.msra.mxu0 %v1946
      %3009 = vmatpush.bf16.msra.mxu0 %v1940
      %3010 = vmatpush.bf16.msra.mxu0 %v1934
      %3011 = vmatpush.bf16.msra.mxu0 %v1928
      %3012 = vmatmul.bf16.gmra.mxu0 %v883
      %v3013 = vpop.f32.mrf.mxu0
      %v3014 = vadd.f32 %v2990, %v3013
      %v3015 = vpop.f32.mrf.mxu0
      %v3016 = vadd.f32 %v2992, %v3015
      %3017 = vmatmul.bf16.gmra.mxu0 %v889
      %v3018 = vpop.f32.mrf.mxu0
      %v3019 = vadd.f32 %v2995, %v3018
      %v3020 = vpop.f32.mrf.mxu0
      %v3021 = vadd.f32 %v2997, %v3020
      %3022 = vmatmul.bf16.gmra.mxu0 %v895
      %v3023 = vpop.f32.mrf.mxu0
      %v3024 = vadd.f32 %v3000, %v3023
      %v3025 = vpop.f32.mrf.mxu0
      %v3026 = vadd.f32 %v3002, %v3025
      %3027 = vdwg.mxu0
      %3028 = vmatpush.bf16.msra.mxu0 %v2018
      %3029 = vmatpush.bf16.msra.mxu0 %v2012
      %3030 = vmatpush.bf16.msra.mxu0 %v2006
      %3031 = vmatpush.bf16.msra.mxu0 %v2000
      %3032 = vmatpush.bf16.msra.mxu0 %v1994
      %3033 = vmatpush.bf16.msra.mxu0 %v1988
      %3034 = vmatpush.bf16.msra.mxu0 %v1982
      %3035 = vmatpush.bf16.msra.mxu0 %v1976
      %3036 = vmatmul.bf16.gmra.mxu0 %v884
      %v3037 = vpop.f32.mrf.mxu0
      %v3038 = vadd.f32 %v3014, %v3037
      %v3039 = vpop.f32.mrf.mxu0
      %v3040 = vadd.f32 %v3016, %v3039
      %3041 = vmatmul.bf16.gmra.mxu0 %v890
      %v3042 = vpop.f32.mrf.mxu0
      %v3043 = vadd.f32 %v3019, %v3042
      %v3044 = vpop.f32.mrf.mxu0
      %v3045 = vadd.f32 %v3021, %v3044
      %3046 = vmatmul.bf16.gmra.mxu0 %v896
      %v3047 = vpop.f32.mrf.mxu0
      %v3048 = vadd.f32 %v3024, %v3047
      %v3049 = vpop.f32.mrf.mxu0
      %v3050 = vadd.f32 %v3026, %v3049
      %3051 = vdwg.mxu0
      %3052 = vmatpush.bf16.msra.mxu0 %v2066
      %3053 = vmatpush.bf16.msra.mxu0 %v2060
      %3054 = vmatpush.bf16.msra.mxu0 %v2054
      %3055 = vmatpush.bf16.msra.mxu0 %v2048
      %3056 = vmatpush.bf16.msra.mxu0 %v2042
      %3057 = vmatpush.bf16.msra.mxu0 %v2036
      %3058 = vmatpush.bf16.msra.mxu0 %v2030
      %3059 = vmatpush.bf16.msra.mxu0 %v2024
      %3060 = vmatmul.bf16.gmra.mxu0 %v885
      %v3061 = vpop.f32.mrf.mxu0
      %v3062 = vadd.f32 %v3038, %v3061
      %v3063 = vpop.f32.mrf.mxu0
      %v3064 = vadd.f32 %v3040, %v3063
      %3065 = vmatmul.bf16.gmra.mxu0 %v891
      %v3066 = vpop.f32.mrf.mxu0
      %v3067 = vadd.f32 %v3043, %v3066
      %v3068 = vpop.f32.mrf.mxu0
      %v3069 = vadd.f32 %v3045, %v3068
      %3070 = vmatmul.bf16.gmra.mxu0 %v897
      %v3071 = vpop.f32.mrf.mxu0
      %v3072 = vadd.f32 %v3048, %v3071
      %v3073 = vpop.f32.mrf.mxu0
      %v3074 = vadd.f32 %v3050, %v3073
      %3075 = vdwg.mxu0
      %3076 = vmatpush.bf16.msra.mxu0 %v1827
      %3077 = vmatpush.bf16.msra.mxu0 %v1821
      %3078 = vmatpush.bf16.msra.mxu0 %v1815
      %3079 = vmatpush.bf16.msra.mxu0 %v1809
      %3080 = vmatpush.bf16.msra.mxu0 %v1803
      %3081 = vmatpush.bf16.msra.mxu0 %v1797
      %3082 = vmatpush.bf16.msra.mxu0 %v1791
      %3083 = vmatpush.bf16.msra.mxu0 %v1785
      %3084 = vmatmul.bf16.gmra.mxu0 %v880
      %v3085 = vpop.f32.mrf.mxu0
      %v3086 = vadd.f32 0.0, %v3085
      %v3087 = vpop.f32.mrf.mxu0
      %v3088 = vadd.f32 0.0, %v3087
      %3089 = vmatmul.bf16.gmra.mxu0 %v886
      %v3090 = vpop.f32.mrf.mxu0
      %v3091 = vadd.f32 0.0, %v3090
      %v3092 = vpop.f32.mrf.mxu0
      %v3093 = vadd.f32 0.0, %v3092
      %3094 = vmatmul.bf16.gmra.mxu0 %v892
      %v3095 = vpop.f32.mrf.mxu0
      %v3096 = vadd.f32 0.0, %v3095
      %v3097 = vpop.f32.mrf.mxu0
      %v3098 = vadd.f32 0.0, %v3097
      %3099 = vdwg.mxu0
      %3100 = vmatpush.bf16.msra.mxu0 %v1875
      %3101 = vmatpush.bf16.msra.mxu0 %v1869
      %3102 = vmatpush.bf16.msra.mxu0 %v1863
      %3103 = vmatpush.bf16.msra.mxu0 %v1857
      %3104 = vmatpush.bf16.msra.mxu0 %v1851
      %3105 = vmatpush.bf16.msra.mxu0 %v1845
      %3106 = vmatpush.bf16.msra.mxu0 %v1839
      %3107 = vmatpush.bf16.msra.mxu0 %v1833
      %3108 = vmatmul.bf16.gmra.mxu0 %v881
      %v3109 = vpop.f32.mrf.mxu0
      %v3110 = vadd.f32 %v3086, %v3109
      %v3111 = vpop.f32.mrf.mxu0
      %v3112 = vadd.f32 %v3088, %v3111
      %3113 = vmatmul.bf16.gmra.mxu0 %v887
      %v3114 = vpop.f32.mrf.mxu0
      %v3115 = vadd.f32 %v3091, %v3114
      %v3116 = vpop.f32.mrf.mxu0
      %v3117 = vadd.f32 %v3093, %v3116
      %3118 = vmatmul.bf16.gmra.mxu0 %v893
      %v3119 = vpop.f32.mrf.mxu0
      %v3120 = vadd.f32 %v3096, %v3119
      %v3121 = vpop.f32.mrf.mxu0
      %v3122 = vadd.f32 %v3098, %v3121
      %3123 = vdwg.mxu0
      %3124 = vmatpush.bf16.msra.mxu0 %v1923
      %3125 = vmatpush.bf16.msra.mxu0 %v1917
      %3126 = vmatpush.bf16.msra.mxu0 %v1911
      %3127 = vmatpush.bf16.msra.mxu0 %v1905
      %3128 = vmatpush.bf16.msra.mxu0 %v1899
      %3129 = vmatpush.bf16.msra.mxu0 %v1893
      %3130 = vmatpush.bf16.msra.mxu0 %v1887
      %3131 = vmatpush.bf16.msra.mxu0 %v1881
      %3132 = vmatmul.bf16.gmra.mxu0 %v882
      %v3133 = vpop.f32.mrf.mxu0
      %v3134 = vadd.f32 %v3110, %v3133
      %v3135 = vpop.f32.mrf.mxu0
      %v3136 = vadd.f32 %v3112, %v3135
      %3137 = vmatmul.bf16.gmra.mxu0 %v888
      %v3138 = vpop.f32.mrf.mxu0
      %v3139 = vadd.f32 %v3115, %v3138
      %v3140 = vpop.f32.mrf.mxu0
      %v3141 = vadd.f32 %v3117, %v3140
      %3142 = vmatmul.bf16.gmra.mxu0 %v894
      %v3143 = vpop.f32.mrf.mxu0
      %v3144 = vadd.f32 %v3120, %v3143
      %v3145 = vpop.f32.mrf.mxu0
      %v3146 = vadd.f32 %v3122, %v3145
      %3147 = vdwg.mxu0
      %3148 = vmatpush.bf16.msra.mxu0 %v1971
      %3149 = vmatpush.bf16.msra.mxu0 %v1965
      %3150 = vmatpush.bf16.msra.mxu0 %v1959
      %3151 = vmatpush.bf16.msra.mxu0 %v1953
      %3152 = vmatpush.bf16.msra.mxu0 %v1947
      %3153 = vmatpush.bf16.msra.mxu0 %v1941
      %3154 = vmatpush.bf16.msra.mxu0 %v1935
      %3155 = vmatpush.bf16.msra.mxu0 %v1929
      %3156 = vmatmul.bf16.gmra.mxu0 %v883
      %v3157 = vpop.f32.mrf.mxu0
      %v3158 = vadd.f32 %v3134, %v3157
      %v3159 = vpop.f32.mrf.mxu0
      %v3160 = vadd.f32 %v3136, %v3159
      %3161 = vmatmul.bf16.gmra.mxu0 %v889
      %v3162 = vpop.f32.mrf.mxu0
      %v3163 = vadd.f32 %v3139, %v3162
      %v3164 = vpop.f32.mrf.mxu0
      %v3165 = vadd.f32 %v3141, %v3164
      %3166 = vmatmul.bf16.gmra.mxu0 %v895
      %v3167 = vpop.f32.mrf.mxu0
      %v3168 = vadd.f32 %v3144, %v3167
      %v3169 = vpop.f32.mrf.mxu0
      %v3170 = vadd.f32 %v3146, %v3169
      %3171 = vdwg.mxu0
      %3172 = vmatpush.bf16.msra.mxu0 %v2019
      %3173 = vmatpush.bf16.msra.mxu0 %v2013
      %3174 = vmatpush.bf16.msra.mxu0 %v2007
      %3175 = vmatpush.bf16.msra.mxu0 %v2001
      %3176 = vmatpush.bf16.msra.mxu0 %v1995
      %3177 = vmatpush.bf16.msra.mxu0 %v1989
      %3178 = vmatpush.bf16.msra.mxu0 %v1983
      %3179 = vmatpush.bf16.msra.mxu0 %v1977
      %3180 = vmatmul.bf16.gmra.mxu0 %v884
      %v3181 = vpop.f32.mrf.mxu0
      %v3182 = vadd.f32 %v3158, %v3181
      %v3183 = vpop.f32.mrf.mxu0
      %v3184 = vadd.f32 %v3160, %v3183
      %3185 = vmatmul.bf16.gmra.mxu0 %v890
      %v3186 = vpop.f32.mrf.mxu0
      %v3187 = vadd.f32 %v3163, %v3186
      %v3188 = vpop.f32.mrf.mxu0
      %v3189 = vadd.f32 %v3165, %v3188
      %3190 = vmatmul.bf16.gmra.mxu0 %v896
      %v3191 = vpop.f32.mrf.mxu0
      %v3192 = vadd.f32 %v3168, %v3191
      %v3193 = vpop.f32.mrf.mxu0
      %v3194 = vadd.f32 %v3170, %v3193
      %3195 = vdwg.mxu0
      %3196 = vmatpush.bf16.msra.mxu0 %v2067
      %3197 = vmatpush.bf16.msra.mxu0 %v2061
      %3198 = vmatpush.bf16.msra.mxu0 %v2055
      %3199 = vmatpush.bf16.msra.mxu0 %v2049
      %3200 = vmatpush.bf16.msra.mxu0 %v2043
      %3201 = vmatpush.bf16.msra.mxu0 %v2037
      %3202 = vmatpush.bf16.msra.mxu0 %v2031
      %3203 = vmatpush.bf16.msra.mxu0 %v2025
      %3204 = vmatmul.bf16.gmra.mxu0 %v885
      %v3205 = vpop.f32.mrf.mxu0
      %v3206 = vadd.f32 %v3182, %v3205
      %v3207 = vpop.f32.mrf.mxu0
      %v3208 = vadd.f32 %v3184, %v3207
      %3209 = vmatmul.bf16.gmra.mxu0 %v891
      %v3210 = vpop.f32.mrf.mxu0
      %v3211 = vadd.f32 %v3187, %v3210
      %v3212 = vpop.f32.mrf.mxu0
      %v3213 = vadd.f32 %v3189, %v3212
      %3214 = vmatmul.bf16.gmra.mxu0 %v897
      %v3215 = vpop.f32.mrf.mxu0
      %v3216 = vadd.f32 %v3192, %v3215
      %v3217 = vpop.f32.mrf.mxu0
      %v3218 = vadd.f32 %v3194, %v3217
      %3219 = vdwg.mxu0
      %v3220 = vadd.f32 %v790, %v2486
      %v3221 = vadd.f32 %v791, %v2630
      %v3222 = vadd.f32 %v792, %v2774
      %v3223 = vadd.f32 %v793, %v2918
      %v3224 = vadd.f32 %v794, %v3062
      %v3225 = vadd.f32 %v795, %v3206
      %v3226 = vadd.f32 %v796, %v2488
      %v3227 = vadd.f32 %v797, %v2632
      %v3228 = vadd.f32 %v798, %v2776
      %v3229 = vadd.f32 %v799, %v2920
      %v3230 = vadd.f32 %v800, %v3064
      %v3231 = vadd.f32 %v801, %v3208
      %v3232 = vadd.f32 %v802, %v2491
      %v3233 = vadd.f32 %v803, %v2635
      %v3234 = vadd.f32 %v804, %v2779
      %v3235 = vadd.f32 %v805, %v2923
      %v3236 = vadd.f32 %v806, %v3067
      %v3237 = vadd.f32 %v807, %v3211
      %v3238 = vadd.f32 %v808, %v2493
      %v3239 = vadd.f32 %v809, %v2637
      %v3240 = vadd.f32 %v810, %v2781
      %v3241 = vadd.f32 %v811, %v2925
      %v3242 = vadd.f32 %v812, %v3069
      %v3243 = vadd.f32 %v813, %v3213
      %v3244 = vadd.f32 %v814, %v2496
      %v3245 = vadd.f32 %v815, %v2640
      %v3246 = vadd.f32 %v816, %v2784
      %v3247 = vadd.f32 %v817, %v2928
      %v3248 = vadd.f32 %v818, %v3072
      %v3249 = vadd.f32 %v819, %v3216
      %v3250 = vadd.f32 %v820, %v2498
      %v3251 = vadd.f32 %v821, %v2642
      %v3252 = vadd.f32 %v822, %v2786
      %v3253 = vadd.f32 %v823, %v2930
      %v3254 = vadd.f32 %v824, %v3074
      %v3255 = vadd.f32 %v825, %v3218
      %3256 = vst [vmem:[#allocation2] sm:$0xff] %v3220
      %3257 = vst [vmem:[#allocation2 + $0x8] sm:$0xff] %v3221
      %3258 = vst [vmem:[#allocation2 + $0x10] sm:$0xff] %v3222
      %3259 = vst [vmem:[#allocation2 + $0x18] sm:$0xff] %v3223
      %3260 = vst [vmem:[#allocation2 + $0x20] sm:$0xff] %v3224
      %3261 = vst [vmem:[#allocation2 + $0x28] sm:$0xff] %v3225
      %3262 = vst [vmem:[#allocation2 + $0x30] sm:$0xff] %v3226
      %3263 = vst [vmem:[#allocation2 + $0x38] sm:$0xff] %v3227
      %3264 = vst [vmem:[#allocation2 + $0x40] sm:$0xff] %v3228
      %3265 = vst [vmem:[#allocation2 + $0x48] sm:$0xff] %v3229
      %3266 = vst [vmem:[#allocation2 + $0x50] sm:$0xff] %v3230
      %3267 = vst [vmem:[#allocation2 + $0x58] sm:$0xff] %v3231
      %3268 = vst [vmem:[#allocation2 + $0x60] sm:$0xff] %v3232
      %3269 = vst [vmem:[#allocation2 + $0x68] sm:$0xff] %v3233
      %3270 = vst [vmem:[#allocation2 + $0x70] sm:$0xff] %v3234
      %3271 = vst [vmem:[#allocation2 + $0x78] sm:$0xff] %v3235
      %3272 = vst [vmem:[#allocation2 + $0x80] sm:$0xff] %v3236
      %3273 = vst [vmem:[#allocation2 + $0x88] sm:$0xff] %v3237
      %3274 = vst [vmem:[#allocation2 + $0x90] sm:$0xff] %v3238
      %3275 = vst [vmem:[#allocation2 + $0x98] sm:$0xff] %v3239
      %3276 = vst [vmem:[#allocation2 + $0xa0] sm:$0xff] %v3240
      %3277 = vst [vmem:[#allocation2 + $0xa8] sm:$0xff] %v3241
      %3278 = vst [vmem:[#allocation2 + $0xb0] sm:$0xff] %v3242
      %3279 = vst [vmem:[#allocation2 + $0xb8] sm:$0xff] %v3243
      %3280 = vst [vmem:[#allocation2 + $0xc0] sm:$0xff] %v3244
      %3281 = vst [vmem:[#allocation2 + $0xc8] sm:$0xff] %v3245
      %3282 = vst [vmem:[#allocation2 + $0xd0] sm:$0xff] %v3246
      %3283 = vst [vmem:[#allocation2 + $0xd8] sm:$0xff] %v3247
      %3284 = vst [vmem:[#allocation2 + $0xe0] sm:$0xff] %v3248
      %3285 = vst [vmem:[#allocation2 + $0xe8] sm:$0xff] %v3249
      %3286 = vst [vmem:[#allocation2 + $0xf0] sm:$0x1f] %v3250
      %3287 = vst [vmem:[#allocation2 + $0xf8] sm:$0x1f] %v3251
      %3288 = vst [vmem:[#allocation2 + $0x100] sm:$0x1f] %v3252
      %3289 = vst [vmem:[#allocation2 + $0x108] sm:$0x1f] %v3253
      %3290 = vst [vmem:[#allocation2 + $0x110] sm:$0x1f] %v3254
      %3291 = vst [vmem:[#allocation2 + $0x118] sm:$0x1f] %v3255
      %s3292 = scalar_lea.vmem [#allocation2], 288
      %v3293 = vld [vmem:[%s3292] sm:$0xff]
      %v3294 = vld [vmem:[%s3292 + $0x8] sm:$0xff]
      %v3295 = vld [vmem:[%s3292 + $0x10] sm:$0xff]
      %v3296 = vld [vmem:[%s3292 + $0x18] sm:$0xff]
      %v3297 = vld [vmem:[%s3292 + $0x20] sm:$0xff]
      %v3298 = vld [vmem:[%s3292 + $0x28] sm:$0xff]
      %v3299 = vld [vmem:[%s3292 + $0x30] sm:$0xff]
      %v3300 = vld [vmem:[%s3292 + $0x38] sm:$0xff]
      %v3301 = vld [vmem:[%s3292 + $0x40] sm:$0xff]
      %v3302 = vld [vmem:[%s3292 + $0x48] sm:$0xff]
      %v3303 = vld [vmem:[%s3292 + $0x50] sm:$0xff]
      %v3304 = vld [vmem:[%s3292 + $0x58] sm:$0xff]
      %v3305 = vld [vmem:[%s3292 + $0x60] sm:$0xff]
      %v3306 = vld [vmem:[%s3292 + $0x68] sm:$0xff]
      %v3307 = vld [vmem:[%s3292 + $0x70] sm:$0xff]
      %v3308 = vld [vmem:[%s3292 + $0x78] sm:$0xff]
      %v3309 = vld [vmem:[%s3292 + $0x80] sm:$0xff]
      %v3310 = vld [vmem:[%s3292 + $0x88] sm:$0xff]
      %v3311 = vld [vmem:[%s3292 + $0x90] sm:$0xff]
      %v3312 = vld [vmem:[%s3292 + $0x98] sm:$0xff]
      %v3313 = vld [vmem:[%s3292 + $0xa0] sm:$0xff]
      %v3314 = vld [vmem:[%s3292 + $0xa8] sm:$0xff]
      %v3315 = vld [vmem:[%s3292 + $0xb0] sm:$0xff]
      %v3316 = vld [vmem:[%s3292 + $0xb8] sm:$0xff]
      %v3317 = vld [vmem:[%s3292 + $0xc0] sm:$0xff]
      %v3318 = vld [vmem:[%s3292 + $0xc8] sm:$0xff]
      %v3319 = vld [vmem:[%s3292 + $0xd0] sm:$0xff]
      %v3320 = vld [vmem:[%s3292 + $0xd8] sm:$0xff]
      %v3321 = vld [vmem:[%s3292 + $0xe0] sm:$0xff]
      %v3322 = vld [vmem:[%s3292 + $0xe8] sm:$0xff]
      %v3323 = vld [vmem:[%s3292 + $0xf0] sm:$0x1f]
      %v3324 = vld [vmem:[%s3292 + $0xf8] sm:$0x1f]
      %v3325 = vld [vmem:[%s3292 + $0x100] sm:$0x1f]
      %v3326 = vld [vmem:[%s3292 + $0x108] sm:$0x1f]
      %v3327 = vld [vmem:[%s3292 + $0x110] sm:$0x1f]
      %v3328 = vld [vmem:[%s3292 + $0x118] sm:$0x1f]
      %v3347 = vunpack.c.l.b16 %v484
      %v3348 = vunpack.c.h.b16 %v484
      %v3349 = vunpack.c.l.b16 %v485
      %v3350 = vunpack.c.h.b16 %v485
      %v3351 = vunpack.c.l.b16 %v486
      %v3352 = vunpack.c.h.b16 %v486
      %v3353 = vunpack.c.l.b16 %v487
      %v3354 = vunpack.c.h.b16 %v487
      %v3355 = vunpack.c.l.b16 %v488
      %v3356 = vunpack.c.h.b16 %v488
      %v3357 = vunpack.c.l.b16 %v489
      %v3358 = vunpack.c.h.b16 %v489
      %v3359 = vunpack.c.l.b16 %v490
      %v3360 = vunpack.c.h.b16 %v490
      %v3361 = vunpack.c.l.b16 %v491
      %v3362 = vunpack.c.h.b16 %v491
      %v3363 = vunpack.c.l.b16 %v492
      %v3364 = vunpack.c.h.b16 %v492
      %v3365 = vunpack.c.l.b16 %v493
      %v3366 = vunpack.c.h.b16 %v493
      %v3367 = vunpack.c.l.b16 %v494
      %v3368 = vunpack.c.h.b16 %v494
      %v3369 = vunpack.c.l.b16 %v495
      %v3370 = vunpack.c.h.b16 %v495
      %v3371 = vunpack.c.l.b16 %v496
      %v3372 = vunpack.c.h.b16 %v496
      %v3373 = vunpack.c.l.b16 %v497
      %v3374 = vunpack.c.h.b16 %v497
      %v3375 = vunpack.c.l.b16 %v498
      %v3376 = vunpack.c.h.b16 %v498
      %v3377 = vunpack.c.l.b16 %v499
      %v3378 = vunpack.c.h.b16 %v499
      %v3379 = vunpack.c.l.b16 %v500
      %v3380 = vunpack.c.h.b16 %v500
      %v3381 = vunpack.c.l.b16 %v501
      %v3382 = vunpack.c.h.b16 %v501
      %v3383 = vpack.c.b16 %v3353, %v3347
      %v3384 = vpack.c.b16 %v3354, %v3348
      %v3385 = vpack.c.b16 %v3355, %v3349
      %v3386 = vpack.c.b16 %v3356, %v3350
      %v3387 = vpack.c.b16 %v3357, %v3351
      %v3388 = vpack.c.b16 %v3358, %v3352
      %v3389 = vpack.c.b16 %v3365, %v3359
      %v3390 = vpack.c.b16 %v3366, %v3360
      %v3391 = vpack.c.b16 %v3367, %v3361
      %v3392 = vpack.c.b16 %v3368, %v3362
      %v3393 = vpack.c.b16 %v3369, %v3363
      %v3394 = vpack.c.b16 %v3370, %v3364
      %v3395 = vpack.c.b16 %v3377, %v3371
      %v3396 = vpack.c.b16 %v3378, %v3372
      %v3397 = vpack.c.b16 %v3379, %v3373
      %v3398 = vpack.c.b16 %v3380, %v3374
      %v3399 = vpack.c.b16 %v3381, %v3375
      %v3400 = vpack.c.b16 %v3382, %v3376
      %3419 = vmatpush.bf16.msra.mxu0 %v1822
      %3420 = vmatpush.bf16.msra.mxu0 %v1816
      %3421 = vmatpush.bf16.msra.mxu0 %v1810
      %3422 = vmatpush.bf16.msra.mxu0 %v1804
      %3423 = vmatpush.bf16.msra.mxu0 %v1798
      %3424 = vmatpush.bf16.msra.mxu0 %v1792
      %3425 = vmatpush.bf16.msra.mxu0 %v1786
      %3426 = vmatpush.bf16.msra.mxu0 %v1780
      %3427 = vmatmul.bf16.gmra.mxu0 %v3383
      %v3428 = vpop.f32.mrf.mxu0
      %v3429 = vadd.f32 0.0, %v3428
      %v3430 = vpop.f32.mrf.mxu0
      %v3431 = vadd.f32 0.0, %v3430
      %3432 = vmatmul.bf16.gmra.mxu0 %v3389
      %v3433 = vpop.f32.mrf.mxu0
      %v3434 = vadd.f32 0.0, %v3433
      %v3435 = vpop.f32.mrf.mxu0
      %v3436 = vadd.f32 0.0, %v3435
      %3437 = vmatmul.bf16.gmra.mxu0 %v3395
      %v3438 = vpop.f32.mrf.mxu0
      %v3439 = vadd.f32 0.0, %v3438
      %v3440 = vpop.f32.mrf.mxu0
      %v3441 = vadd.f32 0.0, %v3440
      %3442 = vdwg.mxu0
      %3443 = vmatpush.bf16.msra.mxu0 %v1870
      %3444 = vmatpush.bf16.msra.mxu0 %v1864
      %3445 = vmatpush.bf16.msra.mxu0 %v1858
      %3446 = vmatpush.bf16.msra.mxu0 %v1852
      %3447 = vmatpush.bf16.msra.mxu0 %v1846
      %3448 = vmatpush.bf16.msra.mxu0 %v1840
      %3449 = vmatpush.bf16.msra.mxu0 %v1834
      %3450 = vmatpush.bf16.msra.mxu0 %v1828
      %3451 = vmatmul.bf16.gmra.mxu0 %v3384
      %v3452 = vpop.f32.mrf.mxu0
      %v3453 = vadd.f32 %v3429, %v3452
      %v3454 = vpop.f32.mrf.mxu0
      %v3455 = vadd.f32 %v3431, %v3454
      %3456 = vmatmul.bf16.gmra.mxu0 %v3390
      %v3457 = vpop.f32.mrf.mxu0
      %v3458 = vadd.f32 %v3434, %v3457
      %v3459 = vpop.f32.mrf.mxu0
      %v3460 = vadd.f32 %v3436, %v3459
      %3461 = vmatmul.bf16.gmra.mxu0 %v3396
      %v3462 = vpop.f32.mrf.mxu0
      %v3463 = vadd.f32 %v3439, %v3462
      %v3464 = vpop.f32.mrf.mxu0
      %v3465 = vadd.f32 %v3441, %v3464
      %3466 = vdwg.mxu0
      %3467 = vmatpush.bf16.msra.mxu0 %v1918
      %3468 = vmatpush.bf16.msra.mxu0 %v1912
      %3469 = vmatpush.bf16.msra.mxu0 %v1906
      %3470 = vmatpush.bf16.msra.mxu0 %v1900
      %3471 = vmatpush.bf16.msra.mxu0 %v1894
      %3472 = vmatpush.bf16.msra.mxu0 %v1888
      %3473 = vmatpush.bf16.msra.mxu0 %v1882
      %3474 = vmatpush.bf16.msra.mxu0 %v1876
      %3475 = vmatmul.bf16.gmra.mxu0 %v3385
      %v3476 = vpop.f32.mrf.mxu0
      %v3477 = vadd.f32 %v3453, %v3476
      %v3478 = vpop.f32.mrf.mxu0
      %v3479 = vadd.f32 %v3455, %v3478
      %3480 = vmatmul.bf16.gmra.mxu0 %v3391
      %v3481 = vpop.f32.mrf.mxu0
      %v3482 = vadd.f32 %v3458, %v3481
      %v3483 = vpop.f32.mrf.mxu0
      %v3484 = vadd.f32 %v3460, %v3483
      %3485 = vmatmul.bf16.gmra.mxu0 %v3397
      %v3486 = vpop.f32.mrf.mxu0
      %v3487 = vadd.f32 %v3463, %v3486
      %v3488 = vpop.f32.mrf.mxu0
      %v3489 = vadd.f32 %v3465, %v3488
      %3490 = vdwg.mxu0
      %3491 = vmatpush.bf16.msra.mxu0 %v1966
      %3492 = vmatpush.bf16.msra.mxu0 %v1960
      %3493 = vmatpush.bf16.msra.mxu0 %v1954
      %3494 = vmatpush.bf16.msra.mxu0 %v1948
      %3495 = vmatpush.bf16.msra.mxu0 %v1942
      %3496 = vmatpush.bf16.msra.mxu0 %v1936
      %3497 = vmatpush.bf16.msra.mxu0 %v1930
      %3498 = vmatpush.bf16.msra.mxu0 %v1924
      %3499 = vmatmul.bf16.gmra.mxu0 %v3386
      %v3500 = vpop.f32.mrf.mxu0
      %v3501 = vadd.f32 %v3477, %v3500
      %v3502 = vpop.f32.mrf.mxu0
      %v3503 = vadd.f32 %v3479, %v3502
      %3504 = vmatmul.bf16.gmra.mxu0 %v3392
      %v3505 = vpop.f32.mrf.mxu0
      %v3506 = vadd.f32 %v3482, %v3505
      %v3507 = vpop.f32.mrf.mxu0
      %v3508 = vadd.f32 %v3484, %v3507
      %3509 = vmatmul.bf16.gmra.mxu0 %v3398
      %v3510 = vpop.f32.mrf.mxu0
      %v3511 = vadd.f32 %v3487, %v3510
      %v3512 = vpop.f32.mrf.mxu0
      %v3513 = vadd.f32 %v3489, %v3512
      %3514 = vdwg.mxu0
      %3515 = vmatpush.bf16.msra.mxu0 %v2014
      %3516 = vmatpush.bf16.msra.mxu0 %v2008
      %3517 = vmatpush.bf16.msra.mxu0 %v2002
      %3518 = vmatpush.bf16.msra.mxu0 %v1996
      %3519 = vmatpush.bf16.msra.mxu0 %v1990
      %3520 = vmatpush.bf16.msra.mxu0 %v1984
      %3521 = vmatpush.bf16.msra.mxu0 %v1978
      %3522 = vmatpush.bf16.msra.mxu0 %v1972
      %3523 = vmatmul.bf16.gmra.mxu0 %v3387
      %v3524 = vpop.f32.mrf.mxu0
      %v3525 = vadd.f32 %v3501, %v3524
      %v3526 = vpop.f32.mrf.mxu0
      %v3527 = vadd.f32 %v3503, %v3526
      %3528 = vmatmul.bf16.gmra.mxu0 %v3393
      %v3529 = vpop.f32.mrf.mxu0
      %v3530 = vadd.f32 %v3506, %v3529
      %v3531 = vpop.f32.mrf.mxu0
      %v3532 = vadd.f32 %v3508, %v3531
      %3533 = vmatmul.bf16.gmra.mxu0 %v3399
      %v3534 = vpop.f32.mrf.mxu0
      %v3535 = vadd.f32 %v3511, %v3534
      %v3536 = vpop.f32.mrf.mxu0
      %v3537 = vadd.f32 %v3513, %v3536
      %3538 = vdwg.mxu0
      %3539 = vmatpush.bf16.msra.mxu0 %v2062
      %3540 = vmatpush.bf16.msra.mxu0 %v2056
      %3541 = vmatpush.bf16.msra.mxu0 %v2050
      %3542 = vmatpush.bf16.msra.mxu0 %v2044
      %3543 = vmatpush.bf16.msra.mxu0 %v2038
      %3544 = vmatpush.bf16.msra.mxu0 %v2032
      %3545 = vmatpush.bf16.msra.mxu0 %v2026
      %3546 = vmatpush.bf16.msra.mxu0 %v2020
      %3547 = vmatmul.bf16.gmra.mxu0 %v3388
      %v3548 = vpop.f32.mrf.mxu0
      %v3549 = vadd.f32 %v3525, %v3548
      %v3550 = vpop.f32.mrf.mxu0
      %v3551 = vadd.f32 %v3527, %v3550
      %3552 = vmatmul.bf16.gmra.mxu0 %v3394
      %v3553 = vpop.f32.mrf.mxu0
      %v3554 = vadd.f32 %v3530, %v3553
      %v3555 = vpop.f32.mrf.mxu0
      %v3556 = vadd.f32 %v3532, %v3555
      %3557 = vmatmul.bf16.gmra.mxu0 %v3400
      %v3558 = vpop.f32.mrf.mxu0
      %v3559 = vadd.f32 %v3535, %v3558
      %v3560 = vpop.f32.mrf.mxu0
      %v3561 = vadd.f32 %v3537, %v3560
      %3562 = vdwg.mxu0
      %3563 = vmatpush.bf16.msra.mxu0 %v1823
      %3564 = vmatpush.bf16.msra.mxu0 %v1817
      %3565 = vmatpush.bf16.msra.mxu0 %v1811
      %3566 = vmatpush.bf16.msra.mxu0 %v1805
      %3567 = vmatpush.bf16.msra.mxu0 %v1799
      %3568 = vmatpush.bf16.msra.mxu0 %v1793
      %3569 = vmatpush.bf16.msra.mxu0 %v1787
      %3570 = vmatpush.bf16.msra.mxu0 %v1781
      %3571 = vmatmul.bf16.gmra.mxu0 %v3383
      %v3572 = vpop.f32.mrf.mxu0
      %v3573 = vadd.f32 0.0, %v3572
      %v3574 = vpop.f32.mrf.mxu0
      %v3575 = vadd.f32 0.0, %v3574
      %3576 = vmatmul.bf16.gmra.mxu0 %v3389
      %v3577 = vpop.f32.mrf.mxu0
      %v3578 = vadd.f32 0.0, %v3577
      %v3579 = vpop.f32.mrf.mxu0
      %v3580 = vadd.f32 0.0, %v3579
      %3581 = vmatmul.bf16.gmra.mxu0 %v3395
      %v3582 = vpop.f32.mrf.mxu0
      %v3583 = vadd.f32 0.0, %v3582
      %v3584 = vpop.f32.mrf.mxu0
      %v3585 = vadd.f32 0.0, %v3584
      %3586 = vdwg.mxu0
      %3587 = vmatpush.bf16.msra.mxu0 %v1871
      %3588 = vmatpush.bf16.msra.mxu0 %v1865
      %3589 = vmatpush.bf16.msra.mxu0 %v1859
      %3590 = vmatpush.bf16.msra.mxu0 %v1853
      %3591 = vmatpush.bf16.msra.mxu0 %v1847
      %3592 = vmatpush.bf16.msra.mxu0 %v1841
      %3593 = vmatpush.bf16.msra.mxu0 %v1835
      %3594 = vmatpush.bf16.msra.mxu0 %v1829
      %3595 = vmatmul.bf16.gmra.mxu0 %v3384
      %v3596 = vpop.f32.mrf.mxu0
      %v3597 = vadd.f32 %v3573, %v3596
      %v3598 = vpop.f32.mrf.mxu0
      %v3599 = vadd.f32 %v3575, %v3598
      %3600 = vmatmul.bf16.gmra.mxu0 %v3390
      %v3601 = vpop.f32.mrf.mxu0
      %v3602 = vadd.f32 %v3578, %v3601
      %v3603 = vpop.f32.mrf.mxu0
      %v3604 = vadd.f32 %v3580, %v3603
      %3605 = vmatmul.bf16.gmra.mxu0 %v3396
      %v3606 = vpop.f32.mrf.mxu0
      %v3607 = vadd.f32 %v3583, %v3606
      %v3608 = vpop.f32.mrf.mxu0
      %v3609 = vadd.f32 %v3585, %v3608
      %3610 = vdwg.mxu0
      %3611 = vmatpush.bf16.msra.mxu0 %v1919
      %3612 = vmatpush.bf16.msra.mxu0 %v1913
      %3613 = vmatpush.bf16.msra.mxu0 %v1907
      %3614 = vmatpush.bf16.msra.mxu0 %v1901
      %3615 = vmatpush.bf16.msra.mxu0 %v1895
      %3616 = vmatpush.bf16.msra.mxu0 %v1889
      %3617 = vmatpush.bf16.msra.mxu0 %v1883
      %3618 = vmatpush.bf16.msra.mxu0 %v1877
      %3619 = vmatmul.bf16.gmra.mxu0 %v3385
      %v3620 = vpop.f32.mrf.mxu0
      %v3621 = vadd.f32 %v3597, %v3620
      %v3622 = vpop.f32.mrf.mxu0
      %v3623 = vadd.f32 %v3599, %v3622
      %3624 = vmatmul.bf16.gmra.mxu0 %v3391
      %v3625 = vpop.f32.mrf.mxu0
      %v3626 = vadd.f32 %v3602, %v3625
      %v3627 = vpop.f32.mrf.mxu0
      %v3628 = vadd.f32 %v3604, %v3627
      %3629 = vmatmul.bf16.gmra.mxu0 %v3397
      %v3630 = vpop.f32.mrf.mxu0
      %v3631 = vadd.f32 %v3607, %v3630
      %v3632 = vpop.f32.mrf.mxu0
      %v3633 = vadd.f32 %v3609, %v3632
      %3634 = vdwg.mxu0
      %3635 = vmatpush.bf16.msra.mxu0 %v1967
      %3636 = vmatpush.bf16.msra.mxu0 %v1961
      %3637 = vmatpush.bf16.msra.mxu0 %v1955
      %3638 = vmatpush.bf16.msra.mxu0 %v1949
      %3639 = vmatpush.bf16.msra.mxu0 %v1943
      %3640 = vmatpush.bf16.msra.mxu0 %v1937
      %3641 = vmatpush.bf16.msra.mxu0 %v1931
      %3642 = vmatpush.bf16.msra.mxu0 %v1925
      %3643 = vmatmul.bf16.gmra.mxu0 %v3386
      %v3644 = vpop.f32.mrf.mxu0
      %v3645 = vadd.f32 %v3621, %v3644
      %v3646 = vpop.f32.mrf.mxu0
      %v3647 = vadd.f32 %v3623, %v3646
      %3648 = vmatmul.bf16.gmra.mxu0 %v3392
      %v3649 = vpop.f32.mrf.mxu0
      %v3650 = vadd.f32 %v3626, %v3649
      %v3651 = vpop.f32.mrf.mxu0
      %v3652 = vadd.f32 %v3628, %v3651
      %3653 = vmatmul.bf16.gmra.mxu0 %v3398
      %v3654 = vpop.f32.mrf.mxu0
      %v3655 = vadd.f32 %v3631, %v3654
      %v3656 = vpop.f32.mrf.mxu0
      %v3657 = vadd.f32 %v3633, %v3656
      %3658 = vdwg.mxu0
      %3659 = vmatpush.bf16.msra.mxu0 %v2015
      %3660 = vmatpush.bf16.msra.mxu0 %v2009
      %3661 = vmatpush.bf16.msra.mxu0 %v2003
      %3662 = vmatpush.bf16.msra.mxu0 %v1997
      %3663 = vmatpush.bf16.msra.mxu0 %v1991
      %3664 = vmatpush.bf16.msra.mxu0 %v1985
      %3665 = vmatpush.bf16.msra.mxu0 %v1979
      %3666 = vmatpush.bf16.msra.mxu0 %v1973
      %3667 = vmatmul.bf16.gmra.mxu0 %v3387
      %v3668 = vpop.f32.mrf.mxu0
      %v3669 = vadd.f32 %v3645, %v3668
      %v3670 = vpop.f32.mrf.mxu0
      %v3671 = vadd.f32 %v3647, %v3670
      %3672 = vmatmul.bf16.gmra.mxu0 %v3393
      %v3673 = vpop.f32.mrf.mxu0
      %v3674 = vadd.f32 %v3650, %v3673
      %v3675 = vpop.f32.mrf.mxu0
      %v3676 = vadd.f32 %v3652, %v3675
      %3677 = vmatmul.bf16.gmra.mxu0 %v3399
      %v3678 = vpop.f32.mrf.mxu0
      %v3679 = vadd.f32 %v3655, %v3678
      %v3680 = vpop.f32.mrf.mxu0
      %v3681 = vadd.f32 %v3657, %v3680
      %3682 = vdwg.mxu0
      %3683 = vmatpush.bf16.msra.mxu0 %v2063
      %3684 = vmatpush.bf16.msra.mxu0 %v2057
      %3685 = vmatpush.bf16.msra.mxu0 %v2051
      %3686 = vmatpush.bf16.msra.mxu0 %v2045
      %3687 = vmatpush.bf16.msra.mxu0 %v2039
      %3688 = vmatpush.bf16.msra.mxu0 %v2033
      %3689 = vmatpush.bf16.msra.mxu0 %v2027
      %3690 = vmatpush.bf16.msra.mxu0 %v2021
      %3691 = vmatmul.bf16.gmra.mxu0 %v3388
      %v3692 = vpop.f32.mrf.mxu0
      %v3693 = vadd.f32 %v3669, %v3692
      %v3694 = vpop.f32.mrf.mxu0
      %v3695 = vadd.f32 %v3671, %v3694
      %3696 = vmatmul.bf16.gmra.mxu0 %v3394
      %v3697 = vpop.f32.mrf.mxu0
      %v3698 = vadd.f32 %v3674, %v3697
      %v3699 = vpop.f32.mrf.mxu0
      %v3700 = vadd.f32 %v3676, %v3699
      %3701 = vmatmul.bf16.gmra.mxu0 %v3400
      %v3702 = vpop.f32.mrf.mxu0
      %v3703 = vadd.f32 %v3679, %v3702
      %v3704 = vpop.f32.mrf.mxu0
      %v3705 = vadd.f32 %v3681, %v3704
      %3706 = vdwg.mxu0
      %3707 = vmatpush.bf16.msra.mxu0 %v1824
      %3708 = vmatpush.bf16.msra.mxu0 %v1818
      %3709 = vmatpush.bf16.msra.mxu0 %v1812
      %3710 = vmatpush.bf16.msra.mxu0 %v1806
      %3711 = vmatpush.bf16.msra.mxu0 %v1800
      %3712 = vmatpush.bf16.msra.mxu0 %v1794
      %3713 = vmatpush.bf16.msra.mxu0 %v1788
      %3714 = vmatpush.bf16.msra.mxu0 %v1782
      %3715 = vmatmul.bf16.gmra.mxu0 %v3383
      %v3716 = vpop.f32.mrf.mxu0
      %v3717 = vadd.f32 0.0, %v3716
      %v3718 = vpop.f32.mrf.mxu0
      %v3719 = vadd.f32 0.0, %v3718
      %3720 = vmatmul.bf16.gmra.mxu0 %v3389
      %v3721 = vpop.f32.mrf.mxu0
      %v3722 = vadd.f32 0.0, %v3721
      %v3723 = vpop.f32.mrf.mxu0
      %v3724 = vadd.f32 0.0, %v3723
      %3725 = vmatmul.bf16.gmra.mxu0 %v3395
      %v3726 = vpop.f32.mrf.mxu0
      %v3727 = vadd.f32 0.0, %v3726
      %v3728 = vpop.f32.mrf.mxu0
      %v3729 = vadd.f32 0.0, %v3728
      %3730 = vdwg.mxu0
      %3731 = vmatpush.bf16.msra.mxu0 %v1872
      %3732 = vmatpush.bf16.msra.mxu0 %v1866
      %3733 = vmatpush.bf16.msra.mxu0 %v1860
      %3734 = vmatpush.bf16.msra.mxu0 %v1854
      %3735 = vmatpush.bf16.msra.mxu0 %v1848
      %3736 = vmatpush.bf16.msra.mxu0 %v1842
      %3737 = vmatpush.bf16.msra.mxu0 %v1836
      %3738 = vmatpush.bf16.msra.mxu0 %v1830
      %3739 = vmatmul.bf16.gmra.mxu0 %v3384
      %v3740 = vpop.f32.mrf.mxu0
      %v3741 = vadd.f32 %v3717, %v3740
      %v3742 = vpop.f32.mrf.mxu0
      %v3743 = vadd.f32 %v3719, %v3742
      %3744 = vmatmul.bf16.gmra.mxu0 %v3390
      %v3745 = vpop.f32.mrf.mxu0
      %v3746 = vadd.f32 %v3722, %v3745
      %v3747 = vpop.f32.mrf.mxu0
      %v3748 = vadd.f32 %v3724, %v3747
      %3749 = vmatmul.bf16.gmra.mxu0 %v3396
      %v3750 = vpop.f32.mrf.mxu0
      %v3751 = vadd.f32 %v3727, %v3750
      %v3752 = vpop.f32.mrf.mxu0
      %v3753 = vadd.f32 %v3729, %v3752
      %3754 = vdwg.mxu0
      %3755 = vmatpush.bf16.msra.mxu0 %v1920
      %3756 = vmatpush.bf16.msra.mxu0 %v1914
      %3757 = vmatpush.bf16.msra.mxu0 %v1908
      %3758 = vmatpush.bf16.msra.mxu0 %v1902
      %3759 = vmatpush.bf16.msra.mxu0 %v1896
      %3760 = vmatpush.bf16.msra.mxu0 %v1890
      %3761 = vmatpush.bf16.msra.mxu0 %v1884
      %3762 = vmatpush.bf16.msra.mxu0 %v1878
      %3763 = vmatmul.bf16.gmra.mxu0 %v3385
      %v3764 = vpop.f32.mrf.mxu0
      %v3765 = vadd.f32 %v3741, %v3764
      %v3766 = vpop.f32.mrf.mxu0
      %v3767 = vadd.f32 %v3743, %v3766
      %3768 = vmatmul.bf16.gmra.mxu0 %v3391
      %v3769 = vpop.f32.mrf.mxu0
      %v3770 = vadd.f32 %v3746, %v3769
      %v3771 = vpop.f32.mrf.mxu0
      %v3772 = vadd.f32 %v3748, %v3771
      %3773 = vmatmul.bf16.gmra.mxu0 %v3397
      %v3774 = vpop.f32.mrf.mxu0
      %v3775 = vadd.f32 %v3751, %v3774
      %v3776 = vpop.f32.mrf.mxu0
      %v3777 = vadd.f32 %v3753, %v3776
      %3778 = vdwg.mxu0
      %3779 = vmatpush.bf16.msra.mxu0 %v1968
      %3780 = vmatpush.bf16.msra.mxu0 %v1962
      %3781 = vmatpush.bf16.msra.mxu0 %v1956
      %3782 = vmatpush.bf16.msra.mxu0 %v1950
      %3783 = vmatpush.bf16.msra.mxu0 %v1944
      %3784 = vmatpush.bf16.msra.mxu0 %v1938
      %3785 = vmatpush.bf16.msra.mxu0 %v1932
      %3786 = vmatpush.bf16.msra.mxu0 %v1926
      %3787 = vmatmul.bf16.gmra.mxu0 %v3386
      %v3788 = vpop.f32.mrf.mxu0
      %v3789 = vadd.f32 %v3765, %v3788
      %v3790 = vpop.f32.mrf.mxu0
      %v3791 = vadd.f32 %v3767, %v3790
      %3792 = vmatmul.bf16.gmra.mxu0 %v3392
      %v3793 = vpop.f32.mrf.mxu0
      %v3794 = vadd.f32 %v3770, %v3793
      %v3795 = vpop.f32.mrf.mxu0
      %v3796 = vadd.f32 %v3772, %v3795
      %3797 = vmatmul.bf16.gmra.mxu0 %v3398
      %v3798 = vpop.f32.mrf.mxu0
      %v3799 = vadd.f32 %v3775, %v3798
      %v3800 = vpop.f32.mrf.mxu0
      %v3801 = vadd.f32 %v3777, %v3800
      %3802 = vdwg.mxu0
      %3803 = vmatpush.bf16.msra.mxu0 %v2016
      %3804 = vmatpush.bf16.msra.mxu0 %v2010
      %3805 = vmatpush.bf16.msra.mxu0 %v2004
      %3806 = vmatpush.bf16.msra.mxu0 %v1998
      %3807 = vmatpush.bf16.msra.mxu0 %v1992
      %3808 = vmatpush.bf16.msra.mxu0 %v1986
      %3809 = vmatpush.bf16.msra.mxu0 %v1980
      %3810 = vmatpush.bf16.msra.mxu0 %v1974
      %3811 = vmatmul.bf16.gmra.mxu0 %v3387
      %v3812 = vpop.f32.mrf.mxu0
      %v3813 = vadd.f32 %v3789, %v3812
      %v3814 = vpop.f32.mrf.mxu0
      %v3815 = vadd.f32 %v3791, %v3814
      %3816 = vmatmul.bf16.gmra.mxu0 %v3393
      %v3817 = vpop.f32.mrf.mxu0
      %v3818 = vadd.f32 %v3794, %v3817
      %v3819 = vpop.f32.mrf.mxu0
      %v3820 = vadd.f32 %v3796, %v3819
      %3821 = vmatmul.bf16.gmra.mxu0 %v3399
      %v3822 = vpop.f32.mrf.mxu0
      %v3823 = vadd.f32 %v3799, %v3822
      %v3824 = vpop.f32.mrf.mxu0
      %v3825 = vadd.f32 %v3801, %v3824
      %3826 = vdwg.mxu0
      %3827 = vmatpush.bf16.msra.mxu0 %v2064
      %3828 = vmatpush.bf16.msra.mxu0 %v2058
      %3829 = vmatpush.bf16.msra.mxu0 %v2052
      %3830 = vmatpush.bf16.msra.mxu0 %v2046
      %3831 = vmatpush.bf16.msra.mxu0 %v2040
      %3832 = vmatpush.bf16.msra.mxu0 %v2034
      %3833 = vmatpush.bf16.msra.mxu0 %v2028
      %3834 = vmatpush.bf16.msra.mxu0 %v2022
      %3835 = vmatmul.bf16.gmra.mxu0 %v3388
      %v3836 = vpop.f32.mrf.mxu0
      %v3837 = vadd.f32 %v3813, %v3836
      %v3838 = vpop.f32.mrf.mxu0
      %v3839 = vadd.f32 %v3815, %v3838
      %3840 = vmatmul.bf16.gmra.mxu0 %v3394
      %v3841 = vpop.f32.mrf.mxu0
      %v3842 = vadd.f32 %v3818, %v3841
      %v3843 = vpop.f32.mrf.mxu0
      %v3844 = vadd.f32 %v3820, %v3843
      %3845 = vmatmul.bf16.gmra.mxu0 %v3400
      %v3846 = vpop.f32.mrf.mxu0
      %v3847 = vadd.f32 %v3823, %v3846
      %v3848 = vpop.f32.mrf.mxu0
      %v3849 = vadd.f32 %v3825, %v3848
      %3850 = vdwg.mxu0
      %3851 = vmatpush.bf16.msra.mxu0 %v1825
      %3852 = vmatpush.bf16.msra.mxu0 %v1819
      %3853 = vmatpush.bf16.msra.mxu0 %v1813
      %3854 = vmatpush.bf16.msra.mxu0 %v1807
      %3855 = vmatpush.bf16.msra.mxu0 %v1801
      %3856 = vmatpush.bf16.msra.mxu0 %v1795
      %3857 = vmatpush.bf16.msra.mxu0 %v1789
      %3858 = vmatpush.bf16.msra.mxu0 %v1783
      %3859 = vmatmul.bf16.gmra.mxu0 %v3383
      %v3860 = vpop.f32.mrf.mxu0
      %v3861 = vadd.f32 0.0, %v3860
      %v3862 = vpop.f32.mrf.mxu0
      %v3863 = vadd.f32 0.0, %v3862
      %3864 = vmatmul.bf16.gmra.mxu0 %v3389
      %v3865 = vpop.f32.mrf.mxu0
      %v3866 = vadd.f32 0.0, %v3865
      %v3867 = vpop.f32.mrf.mxu0
      %v3868 = vadd.f32 0.0, %v3867
      %3869 = vmatmul.bf16.gmra.mxu0 %v3395
      %v3870 = vpop.f32.mrf.mxu0
      %v3871 = vadd.f32 0.0, %v3870
      %v3872 = vpop.f32.mrf.mxu0
      %v3873 = vadd.f32 0.0, %v3872
      %3874 = vdwg.mxu0
      %3875 = vmatpush.bf16.msra.mxu0 %v1873
      %3876 = vmatpush.bf16.msra.mxu0 %v1867
      %3877 = vmatpush.bf16.msra.mxu0 %v1861
      %3878 = vmatpush.bf16.msra.mxu0 %v1855
      %3879 = vmatpush.bf16.msra.mxu0 %v1849
      %3880 = vmatpush.bf16.msra.mxu0 %v1843
      %3881 = vmatpush.bf16.msra.mxu0 %v1837
      %3882 = vmatpush.bf16.msra.mxu0 %v1831
      %3883 = vmatmul.bf16.gmra.mxu0 %v3384
      %v3884 = vpop.f32.mrf.mxu0
      %v3885 = vadd.f32 %v3861, %v3884
      %v3886 = vpop.f32.mrf.mxu0
      %v3887 = vadd.f32 %v3863, %v3886
      %3888 = vmatmul.bf16.gmra.mxu0 %v3390
      %v3889 = vpop.f32.mrf.mxu0
      %v3890 = vadd.f32 %v3866, %v3889
      %v3891 = vpop.f32.mrf.mxu0
      %v3892 = vadd.f32 %v3868, %v3891
      %3893 = vmatmul.bf16.gmra.mxu0 %v3396
      %v3894 = vpop.f32.mrf.mxu0
      %v3895 = vadd.f32 %v3871, %v3894
      %v3896 = vpop.f32.mrf.mxu0
      %v3897 = vadd.f32 %v3873, %v3896
      %3898 = vdwg.mxu0
      %3899 = vmatpush.bf16.msra.mxu0 %v1921
      %3900 = vmatpush.bf16.msra.mxu0 %v1915
      %3901 = vmatpush.bf16.msra.mxu0 %v1909
      %3902 = vmatpush.bf16.msra.mxu0 %v1903
      %3903 = vmatpush.bf16.msra.mxu0 %v1897
      %3904 = vmatpush.bf16.msra.mxu0 %v1891
      %3905 = vmatpush.bf16.msra.mxu0 %v1885
      %3906 = vmatpush.bf16.msra.mxu0 %v1879
      %3907 = vmatmul.bf16.gmra.mxu0 %v3385
      %v3908 = vpop.f32.mrf.mxu0
      %v3909 = vadd.f32 %v3885, %v3908
      %v3910 = vpop.f32.mrf.mxu0
      %v3911 = vadd.f32 %v3887, %v3910
      %3912 = vmatmul.bf16.gmra.mxu0 %v3391
      %v3913 = vpop.f32.mrf.mxu0
      %v3914 = vadd.f32 %v3890, %v3913
      %v3915 = vpop.f32.mrf.mxu0
      %v3916 = vadd.f32 %v3892, %v3915
      %3917 = vmatmul.bf16.gmra.mxu0 %v3397
      %v3918 = vpop.f32.mrf.mxu0
      %v3919 = vadd.f32 %v3895, %v3918
      %v3920 = vpop.f32.mrf.mxu0
      %v3921 = vadd.f32 %v3897, %v3920
      %3922 = vdwg.mxu0
      %3923 = vmatpush.bf16.msra.mxu0 %v1969
      %3924 = vmatpush.bf16.msra.mxu0 %v1963
      %3925 = vmatpush.bf16.msra.mxu0 %v1957
      %3926 = vmatpush.bf16.msra.mxu0 %v1951
      %3927 = vmatpush.bf16.msra.mxu0 %v1945
      %3928 = vmatpush.bf16.msra.mxu0 %v1939
      %3929 = vmatpush.bf16.msra.mxu0 %v1933
      %3930 = vmatpush.bf16.msra.mxu0 %v1927
      %3931 = vmatmul.bf16.gmra.mxu0 %v3386
      %v3932 = vpop.f32.mrf.mxu0
      %v3933 = vadd.f32 %v3909, %v3932
      %v3934 = vpop.f32.mrf.mxu0
      %v3935 = vadd.f32 %v3911, %v3934
      %3936 = vmatmul.bf16.gmra.mxu0 %v3392
      %v3937 = vpop.f32.mrf.mxu0
      %v3938 = vadd.f32 %v3914, %v3937
      %v3939 = vpop.f32.mrf.mxu0
      %v3940 = vadd.f32 %v3916, %v3939
      %3941 = vmatmul.bf16.gmra.mxu0 %v3398
      %v3942 = vpop.f32.mrf.mxu0
      %v3943 = vadd.f32 %v3919, %v3942
      %v3944 = vpop.f32.mrf.mxu0
      %v3945 = vadd.f32 %v3921, %v3944
      %3946 = vdwg.mxu0
      %3947 = vmatpush.bf16.msra.mxu0 %v2017
      %3948 = vmatpush.bf16.msra.mxu0 %v2011
      %3949 = vmatpush.bf16.msra.mxu0 %v2005
      %3950 = vmatpush.bf16.msra.mxu0 %v1999
      %3951 = vmatpush.bf16.msra.mxu0 %v1993
      %3952 = vmatpush.bf16.msra.mxu0 %v1987
      %3953 = vmatpush.bf16.msra.mxu0 %v1981
      %3954 = vmatpush.bf16.msra.mxu0 %v1975
      %3955 = vmatmul.bf16.gmra.mxu0 %v3387
      %v3956 = vpop.f32.mrf.mxu0
      %v3957 = vadd.f32 %v3933, %v3956
      %v3958 = vpop.f32.mrf.mxu0
      %v3959 = vadd.f32 %v3935, %v3958
      %3960 = vmatmul.bf16.gmra.mxu0 %v3393
      %v3961 = vpop.f32.mrf.mxu0
      %v3962 = vadd.f32 %v3938, %v3961
      %v3963 = vpop.f32.mrf.mxu0
      %v3964 = vadd.f32 %v3940, %v3963
      %3965 = vmatmul.bf16.gmra.mxu0 %v3399
      %v3966 = vpop.f32.mrf.mxu0
      %v3967 = vadd.f32 %v3943, %v3966
      %v3968 = vpop.f32.mrf.mxu0
      %v3969 = vadd.f32 %v3945, %v3968
      %3970 = vdwg.mxu0
      %3971 = vmatpush.bf16.msra.mxu0 %v2065
      %3972 = vmatpush.bf16.msra.mxu0 %v2059
      %3973 = vmatpush.bf16.msra.mxu0 %v2053
      %3974 = vmatpush.bf16.msra.mxu0 %v2047
      %3975 = vmatpush.bf16.msra.mxu0 %v2041
      %3976 = vmatpush.bf16.msra.mxu0 %v2035
      %3977 = vmatpush.bf16.msra.mxu0 %v2029
      %3978 = vmatpush.bf16.msra.mxu0 %v2023
      %3979 = vmatmul.bf16.gmra.mxu0 %v3388
      %v3980 = vpop.f32.mrf.mxu0
      %v3981 = vadd.f32 %v3957, %v3980
      %v3982 = vpop.f32.mrf.mxu0
      %v3983 = vadd.f32 %v3959, %v3982
      %3984 = vmatmul.bf16.gmra.mxu0 %v3394
      %v3985 = vpop.f32.mrf.mxu0
      %v3986 = vadd.f32 %v3962, %v3985
      %v3987 = vpop.f32.mrf.mxu0
      %v3988 = vadd.f32 %v3964, %v3987
      %3989 = vmatmul.bf16.gmra.mxu0 %v3400
      %v3990 = vpop.f32.mrf.mxu0
      %v3991 = vadd.f32 %v3967, %v3990
      %v3992 = vpop.f32.mrf.mxu0
      %v3993 = vadd.f32 %v3969, %v3992
      %3994 = vdwg.mxu0
      %3995 = vmatpush.bf16.msra.mxu0 %v1826
      %3996 = vmatpush.bf16.msra.mxu0 %v1820
      %3997 = vmatpush.bf16.msra.mxu0 %v1814
      %3998 = vmatpush.bf16.msra.mxu0 %v1808
      %3999 = vmatpush.bf16.msra.mxu0 %v1802
      %4000 = vmatpush.bf16.msra.mxu0 %v1796
      %4001 = vmatpush.bf16.msra.mxu0 %v1790
      %4002 = vmatpush.bf16.msra.mxu0 %v1784
      %4003 = vmatmul.bf16.gmra.mxu0 %v3383
      %v4004 = vpop.f32.mrf.mxu0
      %v4005 = vadd.f32 0.0, %v4004
      %v4006 = vpop.f32.mrf.mxu0
      %v4007 = vadd.f32 0.0, %v4006
      %4008 = vmatmul.bf16.gmra.mxu0 %v3389
      %v4009 = vpop.f32.mrf.mxu0
      %v4010 = vadd.f32 0.0, %v4009
      %v4011 = vpop.f32.mrf.mxu0
      %v4012 = vadd.f32 0.0, %v4011
      %4013 = vmatmul.bf16.gmra.mxu0 %v3395
      %v4014 = vpop.f32.mrf.mxu0
      %v4015 = vadd.f32 0.0, %v4014
      %v4016 = vpop.f32.mrf.mxu0
      %v4017 = vadd.f32 0.0, %v4016
      %4018 = vdwg.mxu0
      %4019 = vmatpush.bf16.msra.mxu0 %v1874
      %4020 = vmatpush.bf16.msra.mxu0 %v1868
      %4021 = vmatpush.bf16.msra.mxu0 %v1862
      %4022 = vmatpush.bf16.msra.mxu0 %v1856
      %4023 = vmatpush.bf16.msra.mxu0 %v1850
      %4024 = vmatpush.bf16.msra.mxu0 %v1844
      %4025 = vmatpush.bf16.msra.mxu0 %v1838
      %4026 = vmatpush.bf16.msra.mxu0 %v1832
      %4027 = vmatmul.bf16.gmra.mxu0 %v3384
      %v4028 = vpop.f32.mrf.mxu0
      %v4029 = vadd.f32 %v4005, %v4028
      %v4030 = vpop.f32.mrf.mxu0
      %v4031 = vadd.f32 %v4007, %v4030
      %4032 = vmatmul.bf16.gmra.mxu0 %v3390
      %v4033 = vpop.f32.mrf.mxu0
      %v4034 = vadd.f32 %v4010, %v4033
      %v4035 = vpop.f32.mrf.mxu0
      %v4036 = vadd.f32 %v4012, %v4035
      %4037 = vmatmul.bf16.gmra.mxu0 %v3396
      %v4038 = vpop.f32.mrf.mxu0
      %v4039 = vadd.f32 %v4015, %v4038
      %v4040 = vpop.f32.mrf.mxu0
      %v4041 = vadd.f32 %v4017, %v4040
      %4042 = vdwg.mxu0
      %4043 = vmatpush.bf16.msra.mxu0 %v1922
      %4044 = vmatpush.bf16.msra.mxu0 %v1916
      %4045 = vmatpush.bf16.msra.mxu0 %v1910
      %4046 = vmatpush.bf16.msra.mxu0 %v1904
      %4047 = vmatpush.bf16.msra.mxu0 %v1898
      %4048 = vmatpush.bf16.msra.mxu0 %v1892
      %4049 = vmatpush.bf16.msra.mxu0 %v1886
      %4050 = vmatpush.bf16.msra.mxu0 %v1880
      %4051 = vmatmul.bf16.gmra.mxu0 %v3385
      %v4052 = vpop.f32.mrf.mxu0
      %v4053 = vadd.f32 %v4029, %v4052
      %v4054 = vpop.f32.mrf.mxu0
      %v4055 = vadd.f32 %v4031, %v4054
      %4056 = vmatmul.bf16.gmra.mxu0 %v3391
      %v4057 = vpop.f32.mrf.mxu0
      %v4058 = vadd.f32 %v4034, %v4057
      %v4059 = vpop.f32.mrf.mxu0
      %v4060 = vadd.f32 %v4036, %v4059
      %4061 = vmatmul.bf16.gmra.mxu0 %v3397
      %v4062 = vpop.f32.mrf.mxu0
      %v4063 = vadd.f32 %v4039, %v4062
      %v4064 = vpop.f32.mrf.mxu0
      %v4065 = vadd.f32 %v4041, %v4064
      %4066 = vdwg.mxu0
      %4067 = vmatpush.bf16.msra.mxu0 %v1970
      %4068 = vmatpush.bf16.msra.mxu0 %v1964
      %4069 = vmatpush.bf16.msra.mxu0 %v1958
      %4070 = vmatpush.bf16.msra.mxu0 %v1952
      %4071 = vmatpush.bf16.msra.mxu0 %v1946
      %4072 = vmatpush.bf16.msra.mxu0 %v1940
      %4073 = vmatpush.bf16.msra.mxu0 %v1934
      %4074 = vmatpush.bf16.msra.mxu0 %v1928
      %4075 = vmatmul.bf16.gmra.mxu0 %v3386
      %v4076 = vpop.f32.mrf.mxu0
      %v4077 = vadd.f32 %v4053, %v4076
      %v4078 = vpop.f32.mrf.mxu0
      %v4079 = vadd.f32 %v4055, %v4078
      %4080 = vmatmul.bf16.gmra.mxu0 %v3392
      %v4081 = vpop.f32.mrf.mxu0
      %v4082 = vadd.f32 %v4058, %v4081
      %v4083 = vpop.f32.mrf.mxu0
      %v4084 = vadd.f32 %v4060, %v4083
      %4085 = vmatmul.bf16.gmra.mxu0 %v3398
      %v4086 = vpop.f32.mrf.mxu0
      %v4087 = vadd.f32 %v4063, %v4086
      %v4088 = vpop.f32.mrf.mxu0
      %v4089 = vadd.f32 %v4065, %v4088
      %4090 = vdwg.mxu0
      %4091 = vmatpush.bf16.msra.mxu0 %v2018
      %4092 = vmatpush.bf16.msra.mxu0 %v2012
      %4093 = vmatpush.bf16.msra.mxu0 %v2006
      %4094 = vmatpush.bf16.msra.mxu0 %v2000
      %4095 = vmatpush.bf16.msra.mxu0 %v1994
      %4096 = vmatpush.bf16.msra.mxu0 %v1988
      %4097 = vmatpush.bf16.msra.mxu0 %v1982
      %4098 = vmatpush.bf16.msra.mxu0 %v1976
      %4099 = vmatmul.bf16.gmra.mxu0 %v3387
      %v4100 = vpop.f32.mrf.mxu0
      %v4101 = vadd.f32 %v4077, %v4100
      %v4102 = vpop.f32.mrf.mxu0
      %v4103 = vadd.f32 %v4079, %v4102
      %4104 = vmatmul.bf16.gmra.mxu0 %v3393
      %v4105 = vpop.f32.mrf.mxu0
      %v4106 = vadd.f32 %v4082, %v4105
      %v4107 = vpop.f32.mrf.mxu0
      %v4108 = vadd.f32 %v4084, %v4107
      %4109 = vmatmul.bf16.gmra.mxu0 %v3399
      %v4110 = vpop.f32.mrf.mxu0
      %v4111 = vadd.f32 %v4087, %v4110
      %v4112 = vpop.f32.mrf.mxu0
      %v4113 = vadd.f32 %v4089, %v4112
      %4114 = vdwg.mxu0
      %4115 = vmatpush.bf16.msra.mxu0 %v2066
      %4116 = vmatpush.bf16.msra.mxu0 %v2060
      %4117 = vmatpush.bf16.msra.mxu0 %v2054
      %4118 = vmatpush.bf16.msra.mxu0 %v2048
      %4119 = vmatpush.bf16.msra.mxu0 %v2042
      %4120 = vmatpush.bf16.msra.mxu0 %v2036
      %4121 = vmatpush.bf16.msra.mxu0 %v2030
      %4122 = vmatpush.bf16.msra.mxu0 %v2024
      %4123 = vmatmul.bf16.gmra.mxu0 %v3388
      %v4124 = vpop.f32.mrf.mxu0
      %v4125 = vadd.f32 %v4101, %v4124
      %v4126 = vpop.f32.mrf.mxu0
      %v4127 = vadd.f32 %v4103, %v4126
      %4128 = vmatmul.bf16.gmra.mxu0 %v3394
      %v4129 = vpop.f32.mrf.mxu0
      %v4130 = vadd.f32 %v4106, %v4129
      %v4131 = vpop.f32.mrf.mxu0
      %v4132 = vadd.f32 %v4108, %v4131
      %4133 = vmatmul.bf16.gmra.mxu0 %v3400
      %v4134 = vpop.f32.mrf.mxu0
      %v4135 = vadd.f32 %v4111, %v4134
      %v4136 = vpop.f32.mrf.mxu0
      %v4137 = vadd.f32 %v4113, %v4136
      %4138 = vdwg.mxu0
      %4139 = vmatpush.bf16.msra.mxu0 %v1827
      %4140 = vmatpush.bf16.msra.mxu0 %v1821
      %4141 = vmatpush.bf16.msra.mxu0 %v1815
      %4142 = vmatpush.bf16.msra.mxu0 %v1809
      %4143 = vmatpush.bf16.msra.mxu0 %v1803
      %4144 = vmatpush.bf16.msra.mxu0 %v1797
      %4145 = vmatpush.bf16.msra.mxu0 %v1791
      %4146 = vmatpush.bf16.msra.mxu0 %v1785
      %4147 = vmatmul.bf16.gmra.mxu0 %v3383
      %v4148 = vpop.f32.mrf.mxu0
      %v4149 = vadd.f32 0.0, %v4148
      %v4150 = vpop.f32.mrf.mxu0
      %v4151 = vadd.f32 0.0, %v4150
      %4152 = vmatmul.bf16.gmra.mxu0 %v3389
      %v4153 = vpop.f32.mrf.mxu0
      %v4154 = vadd.f32 0.0, %v4153
      %v4155 = vpop.f32.mrf.mxu0
      %v4156 = vadd.f32 0.0, %v4155
      %4157 = vmatmul.bf16.gmra.mxu0 %v3395
      %v4158 = vpop.f32.mrf.mxu0
      %v4159 = vadd.f32 0.0, %v4158
      %v4160 = vpop.f32.mrf.mxu0
      %v4161 = vadd.f32 0.0, %v4160
      %4162 = vdwg.mxu0
      %4163 = vmatpush.bf16.msra.mxu0 %v1875
      %4164 = vmatpush.bf16.msra.mxu0 %v1869
      %4165 = vmatpush.bf16.msra.mxu0 %v1863
      %4166 = vmatpush.bf16.msra.mxu0 %v1857
      %4167 = vmatpush.bf16.msra.mxu0 %v1851
      %4168 = vmatpush.bf16.msra.mxu0 %v1845
      %4169 = vmatpush.bf16.msra.mxu0 %v1839
      %4170 = vmatpush.bf16.msra.mxu0 %v1833
      %4171 = vmatmul.bf16.gmra.mxu0 %v3384
      %v4172 = vpop.f32.mrf.mxu0
      %v4173 = vadd.f32 %v4149, %v4172
      %v4174 = vpop.f32.mrf.mxu0
      %v4175 = vadd.f32 %v4151, %v4174
      %4176 = vmatmul.bf16.gmra.mxu0 %v3390
      %v4177 = vpop.f32.mrf.mxu0
      %v4178 = vadd.f32 %v4154, %v4177
      %v4179 = vpop.f32.mrf.mxu0
      %v4180 = vadd.f32 %v4156, %v4179
      %4181 = vmatmul.bf16.gmra.mxu0 %v3396
      %v4182 = vpop.f32.mrf.mxu0
      %v4183 = vadd.f32 %v4159, %v4182
      %v4184 = vpop.f32.mrf.mxu0
      %v4185 = vadd.f32 %v4161, %v4184
      %4186 = vdwg.mxu0
      %4187 = vmatpush.bf16.msra.mxu0 %v1923
      %4188 = vmatpush.bf16.msra.mxu0 %v1917
      %4189 = vmatpush.bf16.msra.mxu0 %v1911
      %4190 = vmatpush.bf16.msra.mxu0 %v1905
      %4191 = vmatpush.bf16.msra.mxu0 %v1899
      %4192 = vmatpush.bf16.msra.mxu0 %v1893
      %4193 = vmatpush.bf16.msra.mxu0 %v1887
      %4194 = vmatpush.bf16.msra.mxu0 %v1881
      %4195 = vmatmul.bf16.gmra.mxu0 %v3385
      %v4196 = vpop.f32.mrf.mxu0
      %v4197 = vadd.f32 %v4173, %v4196
      %v4198 = vpop.f32.mrf.mxu0
      %v4199 = vadd.f32 %v4175, %v4198
      %4200 = vmatmul.bf16.gmra.mxu0 %v3391
      %v4201 = vpop.f32.mrf.mxu0
      %v4202 = vadd.f32 %v4178, %v4201
      %v4203 = vpop.f32.mrf.mxu0
      %v4204 = vadd.f32 %v4180, %v4203
      %4205 = vmatmul.bf16.gmra.mxu0 %v3397
      %v4206 = vpop.f32.mrf.mxu0
      %v4207 = vadd.f32 %v4183, %v4206
      %v4208 = vpop.f32.mrf.mxu0
      %v4209 = vadd.f32 %v4185, %v4208
      %4210 = vdwg.mxu0
      %4211 = vmatpush.bf16.msra.mxu0 %v1971
      %4212 = vmatpush.bf16.msra.mxu0 %v1965
      %4213 = vmatpush.bf16.msra.mxu0 %v1959
      %4214 = vmatpush.bf16.msra.mxu0 %v1953
      %4215 = vmatpush.bf16.msra.mxu0 %v1947
      %4216 = vmatpush.bf16.msra.mxu0 %v1941
      %4217 = vmatpush.bf16.msra.mxu0 %v1935
      %4218 = vmatpush.bf16.msra.mxu0 %v1929
      %4219 = vmatmul.bf16.gmra.mxu0 %v3386
      %v4220 = vpop.f32.mrf.mxu0
      %v4221 = vadd.f32 %v4197, %v4220
      %v4222 = vpop.f32.mrf.mxu0
      %v4223 = vadd.f32 %v4199, %v4222
      %4224 = vmatmul.bf16.gmra.mxu0 %v3392
      %v4225 = vpop.f32.mrf.mxu0
      %v4226 = vadd.f32 %v4202, %v4225
      %v4227 = vpop.f32.mrf.mxu0
      %v4228 = vadd.f32 %v4204, %v4227
      %4229 = vmatmul.bf16.gmra.mxu0 %v3398
      %v4230 = vpop.f32.mrf.mxu0
      %v4231 = vadd.f32 %v4207, %v4230
      %v4232 = vpop.f32.mrf.mxu0
      %v4233 = vadd.f32 %v4209, %v4232
      %4234 = vdwg.mxu0
      %4235 = vmatpush.bf16.msra.mxu0 %v2019
      %4236 = vmatpush.bf16.msra.mxu0 %v2013
      %4237 = vmatpush.bf16.msra.mxu0 %v2007
      %4238 = vmatpush.bf16.msra.mxu0 %v2001
      %4239 = vmatpush.bf16.msra.mxu0 %v1995
      %4240 = vmatpush.bf16.msra.mxu0 %v1989
      %4241 = vmatpush.bf16.msra.mxu0 %v1983
      %4242 = vmatpush.bf16.msra.mxu0 %v1977
      %4243 = vmatmul.bf16.gmra.mxu0 %v3387
      %v4244 = vpop.f32.mrf.mxu0
      %v4245 = vadd.f32 %v4221, %v4244
      %v4246 = vpop.f32.mrf.mxu0
      %v4247 = vadd.f32 %v4223, %v4246
      %4248 = vmatmul.bf16.gmra.mxu0 %v3393
      %v4249 = vpop.f32.mrf.mxu0
      %v4250 = vadd.f32 %v4226, %v4249
      %v4251 = vpop.f32.mrf.mxu0
      %v4252 = vadd.f32 %v4228, %v4251
      %4253 = vmatmul.bf16.gmra.mxu0 %v3399
      %v4254 = vpop.f32.mrf.mxu0
      %v4255 = vadd.f32 %v4231, %v4254
      %v4256 = vpop.f32.mrf.mxu0
      %v4257 = vadd.f32 %v4233, %v4256
      %4258 = vdwg.mxu0
      %4259 = vmatpush.bf16.msra.mxu0 %v2067
      %4260 = vmatpush.bf16.msra.mxu0 %v2061
      %4261 = vmatpush.bf16.msra.mxu0 %v2055
      %4262 = vmatpush.bf16.msra.mxu0 %v2049
      %4263 = vmatpush.bf16.msra.mxu0 %v2043
      %4264 = vmatpush.bf16.msra.mxu0 %v2037
      %4265 = vmatpush.bf16.msra.mxu0 %v2031
      %4266 = vmatpush.bf16.msra.mxu0 %v2025
      %4267 = vmatmul.bf16.gmra.mxu0 %v3388
      %v4268 = vpop.f32.mrf.mxu0
      %v4269 = vadd.f32 %v4245, %v4268
      %v4270 = vpop.f32.mrf.mxu0
      %v4271 = vadd.f32 %v4247, %v4270
      %4272 = vmatmul.bf16.gmra.mxu0 %v3394
      %v4273 = vpop.f32.mrf.mxu0
      %v4274 = vadd.f32 %v4250, %v4273
      %v4275 = vpop.f32.mrf.mxu0
      %v4276 = vadd.f32 %v4252, %v4275
      %4277 = vmatmul.bf16.gmra.mxu0 %v3400
      %v4278 = vpop.f32.mrf.mxu0
      %v4279 = vadd.f32 %v4255, %v4278
      %v4280 = vpop.f32.mrf.mxu0
      %v4281 = vadd.f32 %v4257, %v4280
      %4282 = vdwg.mxu0
      %v4283 = vadd.f32 %v3293, %v3549
      %v4284 = vadd.f32 %v3294, %v3693
      %v4285 = vadd.f32 %v3295, %v3837
      %v4286 = vadd.f32 %v3296, %v3981
      %v4287 = vadd.f32 %v3297, %v4125
      %v4288 = vadd.f32 %v3298, %v4269
      %v4289 = vadd.f32 %v3299, %v3551
      %v4290 = vadd.f32 %v3300, %v3695
      %v4291 = vadd.f32 %v3301, %v3839
      %v4292 = vadd.f32 %v3302, %v3983
      %v4293 = vadd.f32 %v3303, %v4127
      %v4294 = vadd.f32 %v3304, %v4271
      %v4295 = vadd.f32 %v3305, %v3554
      %v4296 = vadd.f32 %v3306, %v3698
      %v4297 = vadd.f32 %v3307, %v3842
      %v4298 = vadd.f32 %v3308, %v3986
      %v4299 = vadd.f32 %v3309, %v4130
      %v4300 = vadd.f32 %v3310, %v4274
      %v4301 = vadd.f32 %v3311, %v3556
      %v4302 = vadd.f32 %v3312, %v3700
      %v4303 = vadd.f32 %v3313, %v3844
      %v4304 = vadd.f32 %v3314, %v3988
      %v4305 = vadd.f32 %v3315, %v4132
      %v4306 = vadd.f32 %v3316, %v4276
      %v4307 = vadd.f32 %v3317, %v3559
      %v4308 = vadd.f32 %v3318, %v3703
      %v4309 = vadd.f32 %v3319, %v3847
      %v4310 = vadd.f32 %v3320, %v3991
      %v4311 = vadd.f32 %v3321, %v4135
      %v4312 = vadd.f32 %v3322, %v4279
      %v4313 = vadd.f32 %v3323, %v3561
      %v4314 = vadd.f32 %v3324, %v3705
      %v4315 = vadd.f32 %v3325, %v3849
      %v4316 = vadd.f32 %v3326, %v3993
      %v4317 = vadd.f32 %v3327, %v4137
      %v4318 = vadd.f32 %v3328, %v4281
      %4319 = vst [vmem:[%s3292] sm:$0xff] %v4283
      %4320 = vst [vmem:[%s3292 + $0x8] sm:$0xff] %v4284
      %4321 = vst [vmem:[%s3292 + $0x10] sm:$0xff] %v4285
      %4322 = vst [vmem:[%s3292 + $0x18] sm:$0xff] %v4286
      %4323 = vst [vmem:[%s3292 + $0x20] sm:$0xff] %v4287
      %4324 = vst [vmem:[%s3292 + $0x28] sm:$0xff] %v4288
      %4325 = vst [vmem:[%s3292 + $0x30] sm:$0xff] %v4289
      %4326 = vst [vmem:[%s3292 + $0x38] sm:$0xff] %v4290
      %4327 = vst [vmem:[%s3292 + $0x40] sm:$0xff] %v4291
      %4328 = vst [vmem:[%s3292 + $0x48] sm:$0xff] %v4292
      %4329 = vst [vmem:[%s3292 + $0x50] sm:$0xff] %v4293
      %4330 = vst [vmem:[%s3292 + $0x58] sm:$0xff] %v4294
      %4331 = vst [vmem:[%s3292 + $0x60] sm:$0xff] %v4295
      %4332 = vst [vmem:[%s3292 + $0x68] sm:$0xff] %v4296
      %4333 = vst [vmem:[%s3292 + $0x70] sm:$0xff] %v4297
      %4334 = vst [vmem:[%s3292 + $0x78] sm:$0xff] %v4298
      %4335 = vst [vmem:[%s3292 + $0x80] sm:$0xff] %v4299
      %4336 = vst [vmem:[%s3292 + $0x88] sm:$0xff] %v4300
      %4337 = vst [vmem:[%s3292 + $0x90] sm:$0xff] %v4301
      %4338 = vst [vmem:[%s3292 + $0x98] sm:$0xff] %v4302
      %4339 = vst [vmem:[%s3292 + $0xa0] sm:$0xff] %v4303
      %4340 = vst [vmem:[%s3292 + $0xa8] sm:$0xff] %v4304
      %4341 = vst [vmem:[%s3292 + $0xb0] sm:$0xff] %v4305
      %4342 = vst [vmem:[%s3292 + $0xb8] sm:$0xff] %v4306
      %4343 = vst [vmem:[%s3292 + $0xc0] sm:$0xff] %v4307
      %4344 = vst [vmem:[%s3292 + $0xc8] sm:$0xff] %v4308
      %4345 = vst [vmem:[%s3292 + $0xd0] sm:$0xff] %v4309
      %4346 = vst [vmem:[%s3292 + $0xd8] sm:$0xff] %v4310
      %4347 = vst [vmem:[%s3292 + $0xe0] sm:$0xff] %v4311
      %4348 = vst [vmem:[%s3292 + $0xe8] sm:$0xff] %v4312
      %4349 = vst [vmem:[%s3292 + $0xf0] sm:$0x1f] %v4313
      %4350 = vst [vmem:[%s3292 + $0xf8] sm:$0x1f] %v4314
      %4351 = vst [vmem:[%s3292 + $0x100] sm:$0x1f] %v4315
      %4352 = vst [vmem:[%s3292 + $0x108] sm:$0x1f] %v4316
      %4353 = vst [vmem:[%s3292 + $0x110] sm:$0x1f] %v4317
      %4354 = vst [vmem:[%s3292 + $0x118] sm:$0x1f] %v4318
      %p4355 = scmp.eq.s32.totalorder %s23, 3
      // Predicated region
      $region45: #{tpu_custom_call.1} parent=39 // pred_check
        %p4356 = pneg %p4355
      $region46: #{tpu_custom_call.1} parent=39 // pred_check_branch
        %4358 = sbr.rel (%p4356) target = $region48
      $region47: #{tpu_custom_call.1} parent=39 // pred_region
        %v4359 = vld [vmem:[%s307] sm:$0x3]
        %v4360 = vld [vmem:[%s312] sm:$0x3]
        %v4361 = vld [vmem:[#allocation2] sm:$0xff]
        %v4362 = vld [vmem:[#allocation2 + $0x8] sm:$0xff]
        %v4363 = vld [vmem:[#allocation2 + $0x10] sm:$0xff]
        %v4364 = vld [vmem:[#allocation2 + $0x18] sm:$0xff]
        %v4365 = vld [vmem:[#allocation2 + $0x20] sm:$0xff]
        %v4366 = vld [vmem:[#allocation2 + $0x28] sm:$0xff]
        %v4367 = vld [vmem:[#allocation2 + $0x30] sm:$0xff]
        %v4368 = vld [vmem:[#allocation2 + $0x38] sm:$0xff]
        %v4369 = vld [vmem:[#allocation2 + $0x40] sm:$0xff]
        %v4370 = vld [vmem:[#allocation2 + $0x48] sm:$0xff]
        %v4371 = vld [vmem:[#allocation2 + $0x50] sm:$0xff]
        %v4372 = vld [vmem:[#allocation2 + $0x58] sm:$0xff]
        %v4373 = vld [vmem:[#allocation2 + $0x60] sm:$0xff]
        %v4374 = vld [vmem:[#allocation2 + $0x68] sm:$0xff]
        %v4375 = vld [vmem:[#allocation2 + $0x70] sm:$0xff]
        %v4376 = vld [vmem:[#allocation2 + $0x78] sm:$0xff]
        %v4377 = vld [vmem:[#allocation2 + $0x80] sm:$0xff]
        %v4378 = vld [vmem:[#allocation2 + $0x88] sm:$0xff]
        %v4379 = vld [vmem:[#allocation2 + $0x90] sm:$0xff]
        %v4380 = vld [vmem:[#allocation2 + $0x98] sm:$0xff]
        %v4381 = vld [vmem:[#allocation2 + $0xa0] sm:$0xff]
        %v4382 = vld [vmem:[#allocation2 + $0xa8] sm:$0xff]
        %v4383 = vld [vmem:[#allocation2 + $0xb0] sm:$0xff]
        %v4384 = vld [vmem:[#allocation2 + $0xb8] sm:$0xff]
        %v4385 = vld [vmem:[#allocation2 + $0xc0] sm:$0xff]
        %v4386 = vld [vmem:[#allocation2 + $0xc8] sm:$0xff]
        %v4387 = vld [vmem:[#allocation2 + $0xd0] sm:$0xff]
        %v4388 = vld [vmem:[#allocation2 + $0xd8] sm:$0xff]
        %v4389 = vld [vmem:[#allocation2 + $0xe0] sm:$0xff]
        %v4390 = vld [vmem:[#allocation2 + $0xe8] sm:$0xff]
        %v4391 = vld [vmem:[#allocation2 + $0xf0] sm:$0x1f]
        %v4392 = vld [vmem:[#allocation2 + $0xf8] sm:$0x1f]
        %v4393 = vld [vmem:[#allocation2 + $0x100] sm:$0x1f]
        %v4394 = vld [vmem:[#allocation2 + $0x108] sm:$0x1f]
        %v4395 = vld [vmem:[#allocation2 + $0x110] sm:$0x1f]
        %v4396 = vld [vmem:[#allocation2 + $0x118] sm:$0x1f]
        %vm4409 = vcmask 1046528
        %v4410 = vrot.slane %v4363, 1
        %v4411 = vrot.slane %v4369, 1
        %v4412 = vsel %vm4409, %v4410, %v4411
        %v4413 = vrot.slane %v4364, 1
        %v4414 = vrot.slane %v4370, 1
        %v4415 = vsel %vm4409, %v4413, %v4414
        %v4416 = vrot.slane %v4375, 1
        %v4417 = vsel %vm4409, %v4411, %v4416
        %v4418 = vrot.slane %v4376, 1
        %v4419 = vsel %vm4409, %v4414, %v4418
        %v4420 = vrot.slane %v4381, 1
        %v4421 = vsel %vm4409, %v4416, %v4420
        %v4422 = vrot.slane %v4382, 1
        %v4423 = vsel %vm4409, %v4418, %v4422
        %v4424 = vrot.slane %v4387, 1
        %v4425 = vsel %vm4409, %v4420, %v4424
        %v4426 = vrot.slane %v4388, 1
        %v4427 = vsel %vm4409, %v4422, %v4426
        %v4428 = vrot.slane %v4393, 1
        %v4429 = vsel %vm4409, %v4424, %v4428
        %v4430 = vrot.slane %v4394, 1
        %v4431 = vsel %vm4409, %v4426, %v4430
        %v4444 = vadd.f32 %v4361, %v4412
        %v4445 = vadd.f32 %v4362, %v4415
        %v4446 = vadd.f32 %v4367, %v4417
        %v4447 = vadd.f32 %v4368, %v4419
        %v4448 = vadd.f32 %v4373, %v4421
        %v4449 = vadd.f32 %v4374, %v4423
        %v4450 = vadd.f32 %v4379, %v4425
        %v4451 = vadd.f32 %v4380, %v4427
        %v4452 = vadd.f32 %v4385, %v4429
        %v4453 = vadd.f32 %v4386, %v4431
        %v4454 = vadd.f32 %v4391, %v4428
        %v4455 = vadd.f32 %v4392, %v4430
        %vm4468 = vcmask 1045504
        %v4469 = vrot.slane %v4365, 2
        %v4470 = vrot.slane %v4371, 2
        %v4471 = vsel %vm4468, %v4469, %v4470
        %v4472 = vrot.slane %v4366, 2
        %v4473 = vrot.slane %v4372, 2
        %v4474 = vsel %vm4468, %v4472, %v4473
        %v4475 = vrot.slane %v4377, 2
        %v4476 = vsel %vm4468, %v4470, %v4475
        %v4477 = vrot.slane %v4378, 2
        %v4478 = vsel %vm4468, %v4473, %v4477
        %v4479 = vrot.slane %v4383, 2
        %v4480 = vsel %vm4468, %v4475, %v4479
        %v4481 = vrot.slane %v4384, 2
        %v4482 = vsel %vm4468, %v4477, %v4481
        %v4483 = vrot.slane %v4389, 2
        %v4484 = vsel %vm4468, %v4479, %v4483
        %v4485 = vrot.slane %v4390, 2
        %v4486 = vsel %vm4468, %v4481, %v4485
        %v4487 = vrot.slane %v4395, 2
        %v4488 = vsel %vm4468, %v4483, %v4487
        %v4489 = vrot.slane %v4396, 2
        %v4490 = vsel %vm4468, %v4485, %v4489
        %v4503 = vadd.f32 %v4444, %v4471
        %v4504 = vadd.f32 %v4445, %v4474
        %v4505 = vadd.f32 %v4446, %v4476
        %v4506 = vadd.f32 %v4447, %v4478
        %v4507 = vadd.f32 %v4448, %v4480
        %v4508 = vadd.f32 %v4449, %v4482
        %v4509 = vadd.f32 %v4450, %v4484
        %v4510 = vadd.f32 %v4451, %v4486
        %v4511 = vadd.f32 %v4452, %v4488
        %v4512 = vadd.f32 %v4453, %v4490
        %v4513 = vadd.f32 %v4454, %v4487
        %v4514 = vadd.f32 %v4455, %v4489
        %v4516 = vperm.slane %v4359, 0
        %v4517 = vperm.slane %v4359, 1
        %v4520 = vadd.f32 %v4503, %v4516
        %v4521 = vadd.f32 %v4504, %v4517
        %v4522 = vadd.f32 %v4505, %v4516
        %v4523 = vadd.f32 %v4506, %v4517
        %v4524 = vadd.f32 %v4507, %v4516
        %v4525 = vadd.f32 %v4508, %v4517
        %v4526 = vadd.f32 %v4509, %v4516
        %v4527 = vadd.f32 %v4510, %v4517
        %v4528 = vadd.f32 %v4511, %v4516
        %v4529 = vadd.f32 %v4512, %v4517
        %v4530 = vadd.f32 %v4513, %v4516
        %v4531 = vadd.f32 %v4514, %v4517
        %v4532 = vmax.f32 %v4520, %v4524
        %v4533 = vmax.f32 %v4522, %v4526
        %v4534 = vmax.f32 %v4532, %v4528
        %vm4535 = vcmask 1042432
        %v4536 = vsel %vm4535, %v4530, -inf
        %v4537 = vmax.f32 %v4533, %v4536
        %v4538 = vmax.f32 %v4534, %v4537
        %v4539 = vrot.slane %v4538, 4
        %v4540 = vmax.f32 %v4538, %v4539
        %v4541 = vrot.slane %v4540, 2
        %v4542 = vmax.f32 %v4540, %v4541
        %v4543 = vrot.slane %v4542, 1
        %v4544 = vmax.f32 %v4542, %v4543
        %v4545 = vmax.f32 %v4521, %v4525
        %v4546 = vmax.f32 %v4523, %v4527
        %v4547 = vmax.f32 %v4545, %v4529
        %v4548 = vsel %vm4535, %v4531, -inf
        %v4549 = vmax.f32 %v4546, %v4548
        %v4550 = vmax.f32 %v4547, %v4549
        %v4551 = vrot.slane %v4550, 4
        %v4552 = vmax.f32 %v4550, %v4551
        %v4553 = vrot.slane %v4552, 2
        %v4554 = vmax.f32 %v4552, %v4553
        %v4555 = vrot.slane %v4554, 1
        %v4556 = vmax.f32 %v4554, %v4555
        %v4557 = vmax.f32 %v4544, 0.0
        %v4558 = vmax.f32 %v4556, 0.0
        %v4560 = vperm.slane %v4360, 0
        %v4561 = vperm.slane %v4360, 1
        %v4564 = vmul.f32 %v4557, %v4560
        %v4565 = vmul.f32 %v4558, %v4561
        %vm4566 = vcmask 1040384
        %v4567 = vsel %vm4566, %v4564, 0.0
        %v4568 = vsel %vm4566, %v4565, 0.0
        %v4569 = vadd.f32 %v4567, %v4568
        %4570 = vadd.xlane.f32.xlu0 %v4569
        %v4571 = vpop.xlane.xlu0 %4570
        %v4572 = vld [vmem:[%s3292] sm:$0xff]
        %v4573 = vld [vmem:[%s3292 + $0x8] sm:$0xff]
        %v4574 = vld [vmem:[%s3292 + $0x10] sm:$0xff]
        %v4575 = vld [vmem:[%s3292 + $0x18] sm:$0xff]
        %v4576 = vld [vmem:[%s3292 + $0x20] sm:$0xff]
        %v4577 = vld [vmem:[%s3292 + $0x28] sm:$0xff]
        %v4578 = vld [vmem:[%s3292 + $0x30] sm:$0xff]
        %v4579 = vld [vmem:[%s3292 + $0x38] sm:$0xff]
        %v4580 = vld [vmem:[%s3292 + $0x40] sm:$0xff]
        %v4581 = vld [vmem:[%s3292 + $0x48] sm:$0xff]
        %v4582 = vld [vmem:[%s3292 + $0x50] sm:$0xff]
        %v4583 = vld [vmem:[%s3292 + $0x58] sm:$0xff]
        %v4584 = vld [vmem:[%s3292 + $0x60] sm:$0xff]
        %v4585 = vld [vmem:[%s3292 + $0x68] sm:$0xff]
        %v4586 = vld [vmem:[%s3292 + $0x70] sm:$0xff]
        %v4587 = vld [vmem:[%s3292 + $0x78] sm:$0xff]
        %v4588 = vld [vmem:[%s3292 + $0x80] sm:$0xff]
        %v4589 = vld [vmem:[%s3292 + $0x88] sm:$0xff]
        %v4590 = vld [vmem:[%s3292 + $0x90] sm:$0xff]
        %v4591 = vld [vmem:[%s3292 + $0x98] sm:$0xff]
        %v4592 = vld [vmem:[%s3292 + $0xa0] sm:$0xff]
        %v4593 = vld [vmem:[%s3292 + $0xa8] sm:$0xff]
        %v4594 = vld [vmem:[%s3292 + $0xb0] sm:$0xff]
        %v4595 = vld [vmem:[%s3292 + $0xb8] sm:$0xff]
        %v4596 = vld [vmem:[%s3292 + $0xc0] sm:$0xff]
        %v4597 = vld [vmem:[%s3292 + $0xc8] sm:$0xff]
        %v4598 = vld [vmem:[%s3292 + $0xd0] sm:$0xff]
        %v4599 = vld [vmem:[%s3292 + $0xd8] sm:$0xff]
        %v4600 = vld [vmem:[%s3292 + $0xe0] sm:$0xff]
        %v4601 = vld [vmem:[%s3292 + $0xe8] sm:$0xff]
        %v4602 = vld [vmem:[%s3292 + $0xf0] sm:$0x1f]
        %v4603 = vld [vmem:[%s3292 + $0xf8] sm:$0x1f]
        %v4604 = vld [vmem:[%s3292 + $0x100] sm:$0x1f]
        %v4605 = vld [vmem:[%s3292 + $0x108] sm:$0x1f]
        %v4606 = vld [vmem:[%s3292 + $0x110] sm:$0x1f]
        %v4607 = vld [vmem:[%s3292 + $0x118] sm:$0x1f]
        %v4620 = vrot.slane %v4574, 1
        %v4621 = vrot.slane %v4580, 1
        %v4622 = vsel %vm4409, %v4620, %v4621
        %v4623 = vrot.slane %v4575, 1
        %v4624 = vrot.slane %v4581, 1
        %v4625 = vsel %vm4409, %v4623, %v4624
        %v4626 = vrot.slane %v4586, 1
        %v4627 = vsel %vm4409, %v4621, %v4626
        %v4628 = vrot.slane %v4587, 1
        %v4629 = vsel %vm4409, %v4624, %v4628
        %v4630 = vrot.slane %v4592, 1
        %v4631 = vsel %vm4409, %v4626, %v4630
        %v4632 = vrot.slane %v4593, 1
        %v4633 = vsel %vm4409, %v4628, %v4632
        %v4634 = vrot.slane %v4598, 1
        %v4635 = vsel %vm4409, %v4630, %v4634
        %v4636 = vrot.slane %v4599, 1
        %v4637 = vsel %vm4409, %v4632, %v4636
        %v4638 = vrot.slane %v4604, 1
        %v4639 = vsel %vm4409, %v4634, %v4638
        %v4640 = vrot.slane %v4605, 1
        %v4641 = vsel %vm4409, %v4636, %v4640
        %v4654 = vadd.f32 %v4572, %v4622
        %v4655 = vadd.f32 %v4573, %v4625
        %v4656 = vadd.f32 %v4578, %v4627
        %v4657 = vadd.f32 %v4579, %v4629
        %v4658 = vadd.f32 %v4584, %v4631
        %v4659 = vadd.f32 %v4585, %v4633
        %v4660 = vadd.f32 %v4590, %v4635
        %v4661 = vadd.f32 %v4591, %v4637
        %v4662 = vadd.f32 %v4596, %v4639
        %v4663 = vadd.f32 %v4597, %v4641
        %v4664 = vadd.f32 %v4602, %v4638
        %v4665 = vadd.f32 %v4603, %v4640
        %v4678 = vrot.slane %v4576, 2
        %v4679 = vrot.slane %v4582, 2
        %v4680 = vsel %vm4468, %v4678, %v4679
        %v4681 = vrot.slane %v4577, 2
        %v4682 = vrot.slane %v4583, 2
        %v4683 = vsel %vm4468, %v4681, %v4682
        %v4684 = vrot.slane %v4588, 2
        %v4685 = vsel %vm4468, %v4679, %v4684
        %v4686 = vrot.slane %v4589, 2
        %v4687 = vsel %vm4468, %v4682, %v4686
        %v4688 = vrot.slane %v4594, 2
        %v4689 = vsel %vm4468, %v4684, %v4688
        %v4690 = vrot.slane %v4595, 2
        %v4691 = vsel %vm4468, %v4686, %v4690
        %v4692 = vrot.slane %v4600, 2
        %v4693 = vsel %vm4468, %v4688, %v4692
        %v4694 = vrot.slane %v4601, 2
        %v4695 = vsel %vm4468, %v4690, %v4694
        %v4696 = vrot.slane %v4606, 2
        %v4697 = vsel %vm4468, %v4692, %v4696
        %v4698 = vrot.slane %v4607, 2
        %v4699 = vsel %vm4468, %v4694, %v4698
        %v4712 = vadd.f32 %v4654, %v4680
        %v4713 = vadd.f32 %v4655, %v4683
        %v4714 = vadd.f32 %v4656, %v4685
        %v4715 = vadd.f32 %v4657, %v4687
        %v4716 = vadd.f32 %v4658, %v4689
        %v4717 = vadd.f32 %v4659, %v4691
        %v4718 = vadd.f32 %v4660, %v4693
        %v4719 = vadd.f32 %v4661, %v4695
        %v4720 = vadd.f32 %v4662, %v4697
        %v4721 = vadd.f32 %v4663, %v4699
        %v4722 = vadd.f32 %v4664, %v4696
        %v4723 = vadd.f32 %v4665, %v4698
        %v4724 = vadd.f32 %v4712, %v4516
        %v4725 = vadd.f32 %v4713, %v4517
        %v4726 = vadd.f32 %v4714, %v4516
        %v4727 = vadd.f32 %v4715, %v4517
        %v4728 = vadd.f32 %v4716, %v4516
        %v4729 = vadd.f32 %v4717, %v4517
        %v4730 = vadd.f32 %v4718, %v4516
        %v4731 = vadd.f32 %v4719, %v4517
        %v4732 = vadd.f32 %v4720, %v4516
        %v4733 = vadd.f32 %v4721, %v4517
        %v4734 = vadd.f32 %v4722, %v4516
        %v4735 = vadd.f32 %v4723, %v4517
        %v4736 = vmax.f32 %v4724, %v4728
        %v4737 = vmax.f32 %v4726, %v4730
        %v4738 = vmax.f32 %v4736, %v4732
        %v4739 = vsel %vm4535, %v4734, -inf
        %v4740 = vmax.f32 %v4737, %v4739
        %v4741 = vmax.f32 %v4738, %v4740
        %v4742 = vrot.slane %v4741, 4
        %v4743 = vmax.f32 %v4741, %v4742
        %v4744 = vrot.slane %v4743, 2
        %v4745 = vmax.f32 %v4743, %v4744
        %v4746 = vrot.slane %v4745, 1
        %v4747 = vmax.f32 %v4745, %v4746
        %v4748 = vmax.f32 %v4725, %v4729
        %v4749 = vmax.f32 %v4727, %v4731
        %v4750 = vmax.f32 %v4748, %v4733
        %v4751 = vsel %vm4535, %v4735, -inf
        %v4752 = vmax.f32 %v4749, %v4751
        %v4753 = vmax.f32 %v4750, %v4752
        %v4754 = vrot.slane %v4753, 4
        %v4755 = vmax.f32 %v4753, %v4754
        %v4756 = vrot.slane %v4755, 2
        %v4757 = vmax.f32 %v4755, %v4756
        %v4758 = vrot.slane %v4757, 1
        %v4759 = vmax.f32 %v4757, %v4758
        %v4760 = vmax.f32 %v4747, 0.0
        %v4761 = vmax.f32 %v4759, 0.0
        %v4762 = vmul.f32 %v4760, %v4560
        %v4763 = vmul.f32 %v4761, %v4561
        %v4764 = vsel %vm4566, %v4762, 0.0
        %v4765 = vsel %vm4566, %v4763, 0.0
        %v4766 = vadd.f32 %v4764, %v4765
        %4767 = vadd.xlane.f32.xlu0 %v4766
        %v4768 = vpop.xlane.xlu0 %4767
        %v4770 = vrot.slane %v4768, 7
        %v4772 = vsel %vm4566, %v4571, %v4770
        %v4773 = vld [vmem:[#allocation3] sm:$0x1]
        %v4775 = vperm.slane %v4773, 0
        %v4777 = vadd.f32 %v4772, %v4775
        %v4778 = vxor.u32 %v4777, 2147483648
        %v4779 = vmul.f32 %v4778, 1.442695
        %v4780 = vpow.pop %v4779
        %v4781 = vadd.f32 %v4780, 1.0
        %v4782 = vrcp.pop %v4781
        %v4783 = vmul.f32 %v4781, %v4782
        %v4784 = vsub.f32 1.0, %v4783
        %v4785 = vmul.f32 %v4782, %v4784
        %v4786 = vadd.f32 %v4782, %v4785
        %vm4787 = vweird.f32 %v4781
        %vm4788 = vweird.f32 %v4782
        %vm4789 = vmor %vm4787, %vm4788
        %v4790 = vsel %vm4789, %v4782, %v4786
        %v4791 = vand.u32 2147483647, %v4781
        %vm4792 = vcmp.eq.f32.partialorder %v4791, 8.507059e+37
        %v4793 = vand.u32 %v4781, 2147483648
        %v4794 = vor.u32 1.1754944e-38, %v4793
        %v4795 = vsel %vm4792, %v4794, %v4790
        %v4796 = vmul.f32 1.0, %v4795
        %vm4797 = vcmask 1024
        %4798 = vst.msk [vmem:[%s317] sm:$0x3] %vm4797, %v4796
      $region48: #{tpu_custom_call.1} parent=39 // pred_fallthru
        _
      %p4799 = scmp.lt.s32.totalorder %s22, 0
      %s4800 = scalar_select %p4799, %s22, 0
      %s4801 = smul.addr %s4800, 2
      %s4802 = scalar_lea.vmem %s5, %s4801
      // Predicated region
      $region49: #{tpu_custom_call.1} parent=39 // pred_check
        %p4803 = pneg %p177
      $region50: #{tpu_custom_call.1} parent=39 // pred_check_branch
        %4805 = sbr.rel (%p4803) target = $region52
      $region51: #{tpu_custom_call.1} parent=39 // pred_region
        _
      $region52: #{tpu_custom_call.1} parent=39 // pred_fallthru
        _
      // Predicated region
      $region53: #{tpu_custom_call.1} parent=39 // pred_check
        %p4806 = pneg %p177
      $region54: #{tpu_custom_call.1} parent=39 // pred_check_branch
        %4808 = sbr.rel (%p4806) target = $region56
      $region55: #{tpu_custom_call.1} parent=39 // pred_region
        %p4809 = scmp.lt.s32.totalorder %s22, 0
        %s4810 = scalar_select %p4809, %s22, 0
        %s4811 = smul.addr %s4810, 2
        %s4812 = scalar_lea.vmem %s5, %s4811
      $region56: #{tpu_custom_call.1} parent=39 // pred_fallthru
        _
    $region40: #{tpu_custom_call.1} parent=5 // pred_fallthru
      _
    %p4813 = scmp.le.s32.totalorder 2, %s13
    // Predicated region
    $region57: #{tpu_custom_call.1} parent=5 // pred_check
      %p4814 = pneg %p4813
    $region58: #{tpu_custom_call.1} parent=5 // pred_check_branch
      %4816 = sbr.rel (%p4814) target = $region60
    $region59: #{tpu_custom_call.1} parent=5 // pred_region
      %s4817 = ssub.s32 %s13, 2
    $region60: #{tpu_custom_call.1} parent=5 // pred_fallthru
      _
  $region6: #{tpu_custom_call.1} parent=0 // loop_footer
    %s17 = sadd.s32 1, %s13
  $region7: #{tpu_custom_call.1} parent=0 // loop_footer_branch
    %12 = sbr.rel target = $region3
  $region8: #{tpu_custom_call.1} parent=0 // loop_exit
    _

</llo_original>
